<compile_context>
chip_gen: v7x
topology: tpu7x:2x2x1
jax: 0.10.0
libtpu: 0.0.40
codegen_flags: <defaults>
</compile_context>

<pallas_src>
import functools

import jax
import jax.numpy as jnp
from jax.experimental import pallas as pl
from jax.experimental.pallas import tpu as pltpu

_LANE = 128
_ACC_VREG_BUDGET = 16          # f32 vregs allowed for one register-tile accumulator
_MAX_OUT_BLOCK_BYTES = 4 << 20  # cap on one output block (VMEM headroom is ample)


def _cdiv(a, b):
    return -(-a // b)


def _make_xcorr_kernel(rs):
    """Build the kernel body for a given (static) register row-tile size rs."""

    def kernel(x_ref, z_ref, o_ref):
        # x_ref: (1, Hx_pad, Wx, CT)  search features (CT = 128 lanes)
        # z_ref: (1, Hz,     Wz, CT)  template features (per-channel kernel)
        # o_ref: (1, RC,     Wo, CT)  output row chunk (RC = n_sub * rs)
        _, hz, wz, ct = z_ref.shape
        _, rc, wo, _ = o_ref.shape
        n_sub = rc // rs

        row0 = pl.program_id(2) * rc           # first output row of this chunk

        for sub in range(n_sub):                # static, small
            base = row0 + sub * rs

            # f32 accumulator: one (1, Wo, CT) slab per output row of this
            # register tile.  rs * ceil(Wo/8) <= _ACC_VREG_BUDGET vregs, so it
            # lives in registers across the whole (q, p) loop and is written
            # to o_ref exactly once (no per-q read-modify-write).
            acc = [jnp.zeros((1, wo, ct), jnp.float32) for _ in range(rs)]

            for q in range(wz):                 # static template W offsets
                # Template column q, all Hz rows, held in registers.
                zq = [z_ref[0, pl.ds(p, 1), pl.ds(q, 1), :].astype(jnp.float32)
                      for p in range(hz)]       # each (1, 1, CT)

                # Stream the W-shifted search window one row at a time: each
                # row is loaded ONCE (single misaligned W slice, input dtype,
                # upcast at use) and scattered into the <= Hz accumulator rows
                # it contributes to.  No scratch copy, no scratch stores.
                for r in range(rs + hz - 1):
                    xrow = x_ref[
                        0, pl.ds(base + r, 1), pl.ds(q, wo), :
                    ].astype(jnp.float32)       # (1, Wo, CT)
                    p_lo = max(0, r - rs + 1)
                    p_hi = min(hz - 1, r)
                    for p in range(p_lo, p_hi + 1):
                        acc[r - p] = acc[r - p] + xrow * zq[p]

            for i in range(rs):
                o_ref[0, pl.ds(sub * rs + i, 1), :, :] = acc[i].astype(o_ref.dtype)

    return kernel


def _choose_tiling(ho, wo, n_parallel_other, row_chunk):
    """Pick (rs, rc, n_chunks): register row tile, grid row chunk, #chunks."""
    wtiles = _cdiv(wo, 8)                       # sublane tiles per output row
    rs = max(1, min(ho, _ACC_VREG_BUDGET // max(1, wtiles)))
    subs_total = _cdiv(ho, rs)

    if row_chunk is not None:
        subs_per_chunk = max(1, min(subs_total, _cdiv(row_chunk, rs)))
    else:
        # One big chunk (fewest grid steps) unless the other grid axes give no
        # parallelism; then keep >= 2 chunks so v7x's second TensorCore works.
        want_chunks = 1 if n_parallel_other >= 2 else min(2, subs_total)
        subs_per_chunk = _cdiv(subs_total, want_chunks)

    # Cap the output block size (keeps VMEM use modest for very large maps).
    bytes_per_row = wo * _LANE * 4
    max_subs = max(1, _MAX_OUT_BLOCK_BYTES // max(1, rs * bytes_per_row))
    subs_per_chunk = min(subs_per_chunk, max_subs)

    rc = subs_per_chunk * rs
    n_chunks = _cdiv(subs_total, subs_per_chunk)
    return rs, rc, n_chunks


def _pad_axis(a, axis, amount):
    if amount == 0:
        return a
    pads = [(0, 0)] * a.ndim
    pads[axis] = (0, amount)
    return jnp.pad(a, pads)


@functools.partial(jax.jit, static_argnames=("row_chunk",))
def ban_xcorr_depthwise_nhwc(x_nhwc, z_nhwc, *, row_chunk=None):
    """Depthwise cross-correlation, NHWC in / NHWC out (preferred entry point)."""
    b, hx, wx, c = x_nhwc.shape
    bz, hz, wz, cz = z_nhwc.shape
    assert (b, c) == (bz, cz), "batch/channel mismatch between z_f and x_f"
    assert hz <= hx and wz <= wx, (
        "template spatial size must not exceed search spatial size")
    ho, wo = hx - hz + 1, wx - wz + 1

    # Lane-dense channels: pad C to a multiple of 128 so all loads/stores are
    # full-lane; zero channels contribute nothing and are cropped below.
    # (NOTE: C < 128, as in the 64-channel demo, does redundant lane work.)
    c_extra = (-c) % _LANE
    cp = c + c_extra
    c_tiles = cp // _LANE
    x_p = _pad_axis(x_nhwc, 3, c_extra)
    z_p = _pad_axis(z_nhwc, 3, c_extra)

    rs, rc, n_chunks = _choose_tiling(ho, wo, b * c_tiles, row_chunk)
    ho_pad = n_chunks * rc
    hx_pad = ho_pad + hz - 1
    x_p = _pad_axis(x_p, 1, hx_pad - hx)   # zero rows; padded output is cropped

    grid = (b, c_tiles, n_chunks)          # batch x channel tiles x row chunks

    out = pl.pallas_call(
        _make_xcorr_kernel(rs),
        out_shape=jax.ShapeDtypeStruct((b, ho_pad, wo, cp), x_nhwc.dtype),
        grid=grid,
        in_specs=[
            pl.BlockSpec((1, hx_pad, wx, _LANE),
                         lambda bi, ci, ri: (bi, 0, 0, ci)),
            pl.BlockSpec((1, hz, wz, _LANE),
                         lambda bi, ci, ri: (bi, 0, 0, ci)),
        ],
        out_specs=pl.BlockSpec((1, rc, wo, _LANE),
                               lambda bi, ci, ri: (bi, ri, 0, ci)),
        compiler_params=pltpu.CompilerParams(
            dimension_semantics=("parallel", "parallel", "parallel")),
    )(x_p, z_p)

    return out[:, :ho, :, :c]


@jax.jit
def ban_xcorr_depthwise(z_f, x_f):
    """BAN head core op, PyTorch NCHW convention.

    z_f: (B, C, Hz, Wz) template features; x_f: (B, C, Hx, Wx) search features.
    Returns (B, C, Hx-Hz+1, Wx-Wz+1) response map (NCHW).
    """
    # TODO(synk): in production keep activations NHWC end-to-end and call
    #             ban_xcorr_depthwise_nhwc directly; these transposes are full
    #             HBM passes comparable to the kernel runtime.
    x_nhwc = jnp.transpose(x_f, (0, 2, 3, 1))
    z_nhwc = jnp.transpose(z_f, (0, 2, 3, 1))
    out_nhwc = ban_xcorr_depthwise_nhwc(x_nhwc, z_nhwc)
    return jnp.transpose(out_nhwc, (0, 3, 1, 2))


def _reference_xcorr_depthwise(z_f, x_f):
    """Pure-JAX reference (NCHW), mirrors F.conv2d(x, z, groups=B*C) semantics."""
    _, _, hz, wz = z_f.shape
    _, _, hx, wx = x_f.shape
    ho, wo = hx - hz + 1, wx - wz + 1
    out = jnp.zeros(z_f.shape[:2] + (ho, wo), jnp.float32)
    for p in range(hz):
        for q in range(wz):
            out = out + (x_f[:, :, p:p + ho, q:q + wo].astype(jnp.float32)
                         * z_f[:, :, p:p + 1, q:q + 1].astype(jnp.float32))
    return out.astype(x_f.dtype)


if __name__ == "__main__":
    key = jax.random.PRNGKey(0)
    k_z, k_x = jax.random.split(key)

    B, C = 2, 64       # C < 128 exercises the lane-dense channel padding
    Hz = Wz = 4        # template spatial size
    Hx = Wx = 16       # search spatial size -> Ho = Wo = 13 (row padding path)

    z_f = jax.random.normal(k_z, (B, C, Hz, Wz), dtype=jnp.float32)
    x_f = jax.random.normal(k_x, (B, C, Hx, Wx), dtype=jnp.float32)

    out = jax.block_until_ready(ban_xcorr_depthwise(z_f, x_f))
    ref = _reference_xcorr_depthwise(z_f, x_f)

    assert out.shape == (B, C, Hx - Hz + 1, Wx - Wz + 1), out.shape
    assert jnp.allclose(out, ref, atol=1e-4, rtol=1e-4), "mismatch vs reference"

    print("KERNEL_OK")
</pallas_src>

<mosaic_0001>
module attributes {stable_mosaic.version = 11 : i64} {
  func.func @kernel(%arg0: i32, %arg1: i32, %arg2: i32, %arg3: memref<1x19x16x128xf32, #tpu.memory_space<vmem>>, %arg4: memref<1x4x4x128xf32, #tpu.memory_space<vmem>>, %arg5: memref<1x16x13x128xf32, #tpu.memory_space<vmem>>) attributes {dimension_semantics = [#tpu.dimension_semantics<parallel>, #tpu.dimension_semantics<parallel>, #tpu.dimension_semantics<parallel>], iteration_bounds = array<i64: 2, 1, 1>, scalar_prefetch = 0 : i64, scratch_operands = 0 : i64, tpu.core_type = #tpu.core_type<tc>, window_params = [{transform_indices = @transform_0, window_bounds = array<i64: 1, 19, 16, 128>}, {transform_indices = @transform_1, window_bounds = array<i64: 1, 4, 4, 128>}, {transform_indices = @transform_2, window_bounds = array<i64: 1, 16, 13, 128>}]} {
    %c16_i32 = arith.constant 16 : i32
    %0 = arith.muli %arg2, %c16_i32 : i32
    %c0_i32 = arith.constant 0 : i32
    %1 = arith.addi %0, %c0_i32 : i32
    %cst = arith.constant 0.000000e+00 : f32
    %2 = vector.broadcast %cst : f32 to vector<1x13x128xf32>
    %cst_0 = arith.constant 0.000000e+00 : f32
    %3 = vector.broadcast %cst_0 : f32 to vector<1x13x128xf32>
    %cst_1 = arith.constant 0.000000e+00 : f32
    %4 = vector.broadcast %cst_1 : f32 to vector<1x13x128xf32>
    %cst_2 = arith.constant 0.000000e+00 : f32
    %5 = vector.broadcast %cst_2 : f32 to vector<1x13x128xf32>
    %cst_3 = arith.constant 0.000000e+00 : f32
    %6 = vector.broadcast %cst_3 : f32 to vector<1x13x128xf32>
    %cst_4 = arith.constant 0.000000e+00 : f32
    %7 = vector.broadcast %cst_4 : f32 to vector<1x13x128xf32>
    %cst_5 = arith.constant 0.000000e+00 : f32
    %8 = vector.broadcast %cst_5 : f32 to vector<1x13x128xf32>
    %cst_6 = arith.constant 0.000000e+00 : f32
    %9 = vector.broadcast %cst_6 : f32 to vector<1x13x128xf32>
    %c0 = arith.constant 0 : index
    %c0_7 = arith.constant 0 : index
    %c0_8 = arith.constant 0 : index
    %c0_9 = arith.constant 0 : index
    %10 = vector.load %arg4[%c0, %c0_7, %c0_8, %c0_9] : memref<1x4x4x128xf32, #tpu.memory_space<vmem>>, vector<1x1x1x128xf32>
    %11 = vector.shape_cast %10 : vector<1x1x1x128xf32> to vector<1x1x128xf32>
    %c0_10 = arith.constant 0 : index
    %c1 = arith.constant 1 : index
    %c0_11 = arith.constant 0 : index
    %c0_12 = arith.constant 0 : index
    %12 = vector.load %arg4[%c0_10, %c1, %c0_11, %c0_12] : memref<1x4x4x128xf32, #tpu.memory_space<vmem>>, vector<1x1x1x128xf32>
    %13 = vector.shape_cast %12 : vector<1x1x1x128xf32> to vector<1x1x128xf32>
    %c0_13 = arith.constant 0 : index
    %c2 = arith.constant 2 : index
    %c0_14 = arith.constant 0 : index
    %c0_15 = arith.constant 0 : index
    %14 = vector.load %arg4[%c0_13, %c2, %c0_14, %c0_15] : memref<1x4x4x128xf32, #tpu.memory_space<vmem>>, vector<1x1x1x128xf32>
    %15 = vector.shape_cast %14 : vector<1x1x1x128xf32> to vector<1x1x128xf32>
    %c0_16 = arith.constant 0 : index
    %c3 = arith.constant 3 : index
    %c0_17 = arith.constant 0 : index
    %c0_18 = arith.constant 0 : index
    %16 = vector.load %arg4[%c0_16, %c3, %c0_17, %c0_18] : memref<1x4x4x128xf32, #tpu.memory_space<vmem>>, vector<1x1x1x128xf32>
    %17 = vector.shape_cast %16 : vector<1x1x1x128xf32> to vector<1x1x128xf32>
    %c0_i32_19 = arith.constant 0 : i32
    %18 = arith.addi %1, %c0_i32_19 : i32
    %c0_20 = arith.constant 0 : index
    %19 = arith.index_cast %18 : i32 to index
    %c0_21 = arith.constant 0 : index
    %c0_22 = arith.constant 0 : index
    %20 = vector.load %arg3[%c0_20, %19, %c0_21, %c0_22] : memref<1x19x16x128xf32, #tpu.memory_space<vmem>>, vector<1x1x13x128xf32>
    %21 = vector.shape_cast %20 : vector<1x1x13x128xf32> to vector<1x13x128xf32>
    %22 = vector.broadcast %11 : vector<1x1x128xf32> to vector<1x13x128xf32>
    %23 = arith.mulf %21, %22 : vector<1x13x128xf32>
    %24 = arith.addf %2, %23 : vector<1x13x128xf32>
    %c1_i32 = arith.constant 1 : i32
    %25 = arith.addi %1, %c1_i32 : i32
    %c0_23 = arith.constant 0 : index
    %26 = arith.index_cast %25 : i32 to index
    %c0_24 = arith.constant 0 : index
    %c0_25 = arith.constant 0 : index
    %27 = vector.load %arg3[%c0_23, %26, %c0_24, %c0_25] : memref<1x19x16x128xf32, #tpu.memory_space<vmem>>, vector<1x1x13x128xf32>
    %28 = vector.shape_cast %27 : vector<1x1x13x128xf32> to vector<1x13x128xf32>
    %29 = vector.broadcast %11 : vector<1x1x128xf32> to vector<1x13x128xf32>
    %30 = arith.mulf %28, %29 : vector<1x13x128xf32>
    %31 = arith.addf %3, %30 : vector<1x13x128xf32>
    %32 = vector.broadcast %13 : vector<1x1x128xf32> to vector<1x13x128xf32>
    %33 = arith.mulf %28, %32 : vector<1x13x128xf32>
    %34 = arith.addf %24, %33 : vector<1x13x128xf32>
    %c2_i32 = arith.constant 2 : i32
    %35 = arith.addi %1, %c2_i32 : i32
    %c0_26 = arith.constant 0 : index
    %36 = arith.index_cast %35 : i32 to index
    %c0_27 = arith.constant 0 : index
    %c0_28 = arith.constant 0 : index
    %37 = vector.load %arg3[%c0_26, %36, %c0_27, %c0_28] : memref<1x19x16x128xf32, #tpu.memory_space<vmem>>, vector<1x1x13x128xf32>
    %38 = vector.shape_cast %37 : vector<1x1x13x128xf32> to vector<1x13x128xf32>
    %39 = vector.broadcast %11 : vector<1x1x128xf32> to vector<1x13x128xf32>
    %40 = arith.mulf %38, %39 : vector<1x13x128xf32>
    %41 = arith.addf %4, %40 : vector<1x13x128xf32>
    %42 = vector.broadcast %13 : vector<1x1x128xf32> to vector<1x13x128xf32>
    %43 = arith.mulf %38, %42 : vector<1x13x128xf32>
    %44 = arith.addf %31, %43 : vector<1x13x128xf32>
    %45 = vector.broadcast %15 : vector<1x1x128xf32> to vector<1x13x128xf32>
    %46 = arith.mulf %38, %45 : vector<1x13x128xf32>
    %47 = arith.addf %34, %46 : vector<1x13x128xf32>
    %c3_i32 = arith.constant 3 : i32
    %48 = arith.addi %1, %c3_i32 : i32
    %c0_29 = arith.constant 0 : index
    %49 = arith.index_cast %48 : i32 to index
    %c0_30 = arith.constant 0 : index
    %c0_31 = arith.constant 0 : index
    %50 = vector.load %arg3[%c0_29, %49, %c0_30, %c0_31] : memref<1x19x16x128xf32, #tpu.memory_space<vmem>>, vector<1x1x13x128xf32>
    %51 = vector.shape_cast %50 : vector<1x1x13x128xf32> to vector<1x13x128xf32>
    %52 = vector.broadcast %11 : vector<1x1x128xf32> to vector<1x13x128xf32>
    %53 = arith.mulf %51, %52 : vector<1x13x128xf32>
    %54 = arith.addf %5, %53 : vector<1x13x128xf32>
    %55 = vector.broadcast %13 : vector<1x1x128xf32> to vector<1x13x128xf32>
    %56 = arith.mulf %51, %55 : vector<1x13x128xf32>
    %57 = arith.addf %41, %56 : vector<1x13x128xf32>
    %58 = vector.broadcast %15 : vector<1x1x128xf32> to vector<1x13x128xf32>
    %59 = arith.mulf %51, %58 : vector<1x13x128xf32>
    %60 = arith.addf %44, %59 : vector<1x13x128xf32>
    %61 = vector.broadcast %17 : vector<1x1x128xf32> to vector<1x13x128xf32>
    %62 = arith.mulf %51, %61 : vector<1x13x128xf32>
    %63 = arith.addf %47, %62 : vector<1x13x128xf32>
    %c4_i32 = arith.constant 4 : i32
    %64 = arith.addi %1, %c4_i32 : i32
    %c0_32 = arith.constant 0 : index
    %65 = arith.index_cast %64 : i32 to index
    %c0_33 = arith.constant 0 : index
    %c0_34 = arith.constant 0 : index
    %66 = vector.load %arg3[%c0_32, %65, %c0_33, %c0_34] : memref<1x19x16x128xf32, #tpu.memory_space<vmem>>, vector<1x1x13x128xf32>
    %67 = vector.shape_cast %66 : vector<1x1x13x128xf32> to vector<1x13x128xf32>
    %68 = vector.broadcast %11 : vector<1x1x128xf32> to vector<1x13x128xf32>
    %69 = arith.mulf %67, %68 : vector<1x13x128xf32>
    %70 = arith.addf %6, %69 : vector<1x13x128xf32>
    %71 = vector.broadcast %13 : vector<1x1x128xf32> to vector<1x13x128xf32>
    %72 = arith.mulf %67, %71 : vector<1x13x128xf32>
    %73 = arith.addf %54, %72 : vector<1x13x128xf32>
    %74 = vector.broadcast %15 : vector<1x1x128xf32> to vector<1x13x128xf32>
    %75 = arith.mulf %67, %74 : vector<1x13x128xf32>
    %76 = arith.addf %57, %75 : vector<1x13x128xf32>
    %77 = vector.broadcast %17 : vector<1x1x128xf32> to vector<1x13x128xf32>
    %78 = arith.mulf %67, %77 : vector<1x13x128xf32>
    %79 = arith.addf %60, %78 : vector<1x13x128xf32>
    %c5_i32 = arith.constant 5 : i32
    %80 = arith.addi %1, %c5_i32 : i32
    %c0_35 = arith.constant 0 : index
    %81 = arith.index_cast %80 : i32 to index
    %c0_36 = arith.constant 0 : index
    %c0_37 = arith.constant 0 : index
    %82 = vector.load %arg3[%c0_35, %81, %c0_36, %c0_37] : memref<1x19x16x128xf32, #tpu.memory_space<vmem>>, vector<1x1x13x128xf32>
    %83 = vector.shape_cast %82 : vector<1x1x13x128xf32> to vector<1x13x128xf32>
    %84 = vector.broadcast %11 : vector<1x1x128xf32> to vector<1x13x128xf32>
    %85 = arith.mulf %83, %84 : vector<1x13x128xf32>
    %86 = arith.addf %7, %85 : vector<1x13x128xf32>
    %87 = vector.broadcast %13 : vector<1x1x128xf32> to vector<1x13x128xf32>
    %88 = arith.mulf %83, %87 : vector<1x13x128xf32>
    %89 = arith.addf %70, %88 : vector<1x13x128xf32>
    %90 = vector.broadcast %15 : vector<1x1x128xf32> to vector<1x13x128xf32>
    %91 = arith.mulf %83, %90 : vector<1x13x128xf32>
    %92 = arith.addf %73, %91 : vector<1x13x128xf32>
    %93 = vector.broadcast %17 : vector<1x1x128xf32> to vector<1x13x128xf32>
    %94 = arith.mulf %83, %93 : vector<1x13x128xf32>
    %95 = arith.addf %76, %94 : vector<1x13x128xf32>
    %c6_i32 = arith.constant 6 : i32
    %96 = arith.addi %1, %c6_i32 : i32
    %c0_38 = arith.constant 0 : index
    %97 = arith.index_cast %96 : i32 to index
    %c0_39 = arith.constant 0 : index
    %c0_40 = arith.constant 0 : index
    %98 = vector.load %arg3[%c0_38, %97, %c0_39, %c0_40] : memref<1x19x16x128xf32, #tpu.memory_space<vmem>>, vector<1x1x13x128xf32>
    %99 = vector.shape_cast %98 : vector<1x1x13x128xf32> to vector<1x13x128xf32>
    %100 = vector.broadcast %11 : vector<1x1x128xf32> to vector<1x13x128xf32>
    %101 = arith.mulf %99, %100 : vector<1x13x128xf32>
    %102 = arith.addf %8, %101 : vector<1x13x128xf32>
    %103 = vector.broadcast %13 : vector<1x1x128xf32> to vector<1x13x128xf32>
    %104 = arith.mulf %99, %103 : vector<1x13x128xf32>
    %105 = arith.addf %86, %104 : vector<1x13x128xf32>
    %106 = vector.broadcast %15 : vector<1x1x128xf32> to vector<1x13x128xf32>
    %107 = arith.mulf %99, %106 : vector<1x13x128xf32>
    %108 = arith.addf %89, %107 : vector<1x13x128xf32>
    %109 = vector.broadcast %17 : vector<1x1x128xf32> to vector<1x13x128xf32>
    %110 = arith.mulf %99, %109 : vector<1x13x128xf32>
    %111 = arith.addf %92, %110 : vector<1x13x128xf32>
    %c7_i32 = arith.constant 7 : i32
    %112 = arith.addi %1, %c7_i32 : i32
    %c0_41 = arith.constant 0 : index
    %113 = arith.index_cast %112 : i32 to index
    %c0_42 = arith.constant 0 : index
    %c0_43 = arith.constant 0 : index
    %114 = vector.load %arg3[%c0_41, %113, %c0_42, %c0_43] : memref<1x19x16x128xf32, #tpu.memory_space<vmem>>, vector<1x1x13x128xf32>
    %115 = vector.shape_cast %114 : vector<1x1x13x128xf32> to vector<1x13x128xf32>
    %116 = vector.broadcast %11 : vector<1x1x128xf32> to vector<1x13x128xf32>
    %117 = arith.mulf %115, %116 : vector<1x13x128xf32>
    %118 = arith.addf %9, %117 : vector<1x13x128xf32>
    %119 = vector.broadcast %13 : vector<1x1x128xf32> to vector<1x13x128xf32>
    %120 = arith.mulf %115, %119 : vector<1x13x128xf32>
    %121 = arith.addf %102, %120 : vector<1x13x128xf32>
    %122 = vector.broadcast %15 : vector<1x1x128xf32> to vector<1x13x128xf32>
    %123 = arith.mulf %115, %122 : vector<1x13x128xf32>
    %124 = arith.addf %105, %123 : vector<1x13x128xf32>
    %125 = vector.broadcast %17 : vector<1x1x128xf32> to vector<1x13x128xf32>
    %126 = arith.mulf %115, %125 : vector<1x13x128xf32>
    %127 = arith.addf %108, %126 : vector<1x13x128xf32>
    %c8_i32 = arith.constant 8 : i32
    %128 = arith.addi %1, %c8_i32 : i32
    %c0_44 = arith.constant 0 : index
    %129 = arith.index_cast %128 : i32 to index
    %c0_45 = arith.constant 0 : index
    %c0_46 = arith.constant 0 : index
    %130 = vector.load %arg3[%c0_44, %129, %c0_45, %c0_46] : memref<1x19x16x128xf32, #tpu.memory_space<vmem>>, vector<1x1x13x128xf32>
    %131 = vector.shape_cast %130 : vector<1x1x13x128xf32> to vector<1x13x128xf32>
    %132 = vector.broadcast %13 : vector<1x1x128xf32> to vector<1x13x128xf32>
    %133 = arith.mulf %131, %132 : vector<1x13x128xf32>
    %134 = arith.addf %118, %133 : vector<1x13x128xf32>
    %135 = vector.broadcast %15 : vector<1x1x128xf32> to vector<1x13x128xf32>
    %136 = arith.mulf %131, %135 : vector<1x13x128xf32>
    %137 = arith.addf %121, %136 : vector<1x13x128xf32>
    %138 = vector.broadcast %17 : vector<1x1x128xf32> to vector<1x13x128xf32>
    %139 = arith.mulf %131, %138 : vector<1x13x128xf32>
    %140 = arith.addf %124, %139 : vector<1x13x128xf32>
    %c9_i32 = arith.constant 9 : i32
    %141 = arith.addi %1, %c9_i32 : i32
    %c0_47 = arith.constant 0 : index
    %142 = arith.index_cast %141 : i32 to index
    %c0_48 = arith.constant 0 : index
    %c0_49 = arith.constant 0 : index
    %143 = vector.load %arg3[%c0_47, %142, %c0_48, %c0_49] : memref<1x19x16x128xf32, #tpu.memory_space<vmem>>, vector<1x1x13x128xf32>
    %144 = vector.shape_cast %143 : vector<1x1x13x128xf32> to vector<1x13x128xf32>
    %145 = vector.broadcast %15 : vector<1x1x128xf32> to vector<1x13x128xf32>
    %146 = arith.mulf %144, %145 : vector<1x13x128xf32>
    %147 = arith.addf %134, %146 : vector<1x13x128xf32>
    %148 = vector.broadcast %17 : vector<1x1x128xf32> to vector<1x13x128xf32>
    %149 = arith.mulf %144, %148 : vector<1x13x128xf32>
    %150 = arith.addf %137, %149 : vector<1x13x128xf32>
    %c10_i32 = arith.constant 10 : i32
    %151 = arith.addi %1, %c10_i32 : i32
    %c0_50 = arith.constant 0 : index
    %152 = arith.index_cast %151 : i32 to index
    %c0_51 = arith.constant 0 : index
    %c0_52 = arith.constant 0 : index
    %153 = vector.load %arg3[%c0_50, %152, %c0_51, %c0_52] : memref<1x19x16x128xf32, #tpu.memory_space<vmem>>, vector<1x1x13x128xf32>
    %154 = vector.shape_cast %153 : vector<1x1x13x128xf32> to vector<1x13x128xf32>
    %155 = vector.broadcast %17 : vector<1x1x128xf32> to vector<1x13x128xf32>
    %156 = arith.mulf %154, %155 : vector<1x13x128xf32>
    %157 = arith.addf %147, %156 : vector<1x13x128xf32>
    %c0_53 = arith.constant 0 : index
    %c0_54 = arith.constant 0 : index
    %c1_55 = arith.constant 1 : index
    %c0_56 = arith.constant 0 : index
    %158 = vector.load %arg4[%c0_53, %c0_54, %c1_55, %c0_56] : memref<1x4x4x128xf32, #tpu.memory_space<vmem>>, vector<1x1x1x128xf32>
    %159 = vector.shape_cast %158 : vector<1x1x1x128xf32> to vector<1x1x128xf32>
    %c0_57 = arith.constant 0 : index
    %c1_58 = arith.constant 1 : index
    %c1_59 = arith.constant 1 : index
    %c0_60 = arith.constant 0 : index
    %160 = vector.load %arg4[%c0_57, %c1_58, %c1_59, %c0_60] : memref<1x4x4x128xf32, #tpu.memory_space<vmem>>, vector<1x1x1x128xf32>
    %161 = vector.shape_cast %160 : vector<1x1x1x128xf32> to vector<1x1x128xf32>
    %c0_61 = arith.constant 0 : index
    %c2_62 = arith.constant 2 : index
    %c1_63 = arith.constant 1 : index
    %c0_64 = arith.constant 0 : index
    %162 = vector.load %arg4[%c0_61, %c2_62, %c1_63, %c0_64] : memref<1x4x4x128xf32, #tpu.memory_space<vmem>>, vector<1x1x1x128xf32>
    %163 = vector.shape_cast %162 : vector<1x1x1x128xf32> to vector<1x1x128xf32>
    %c0_65 = arith.constant 0 : index
    %c3_66 = arith.constant 3 : index
    %c1_67 = arith.constant 1 : index
    %c0_68 = arith.constant 0 : index
    %164 = vector.load %arg4[%c0_65, %c3_66, %c1_67, %c0_68] : memref<1x4x4x128xf32, #tpu.memory_space<vmem>>, vector<1x1x1x128xf32>
    %165 = vector.shape_cast %164 : vector<1x1x1x128xf32> to vector<1x1x128xf32>
    %c0_i32_69 = arith.constant 0 : i32
    %166 = arith.addi %1, %c0_i32_69 : i32
    %c0_70 = arith.constant 0 : index
    %167 = arith.index_cast %166 : i32 to index
    %c1_71 = arith.constant 1 : index
    %c0_72 = arith.constant 0 : index
    %168 = vector.load %arg3[%c0_70, %167, %c1_71, %c0_72] : memref<1x19x16x128xf32, #tpu.memory_space<vmem>>, vector<1x1x13x128xf32>
    %169 = vector.shape_cast %168 : vector<1x1x13x128xf32> to vector<1x13x128xf32>
    %170 = vector.broadcast %159 : vector<1x1x128xf32> to vector<1x13x128xf32>
    %171 = arith.mulf %169, %170 : vector<1x13x128xf32>
    %172 = arith.addf %63, %171 : vector<1x13x128xf32>
    %c1_i32_73 = arith.constant 1 : i32
    %173 = arith.addi %1, %c1_i32_73 : i32
    %c0_74 = arith.constant 0 : index
    %174 = arith.index_cast %173 : i32 to index
    %c1_75 = arith.constant 1 : index
    %c0_76 = arith.constant 0 : index
    %175 = vector.load %arg3[%c0_74, %174, %c1_75, %c0_76] : memref<1x19x16x128xf32, #tpu.memory_space<vmem>>, vector<1x1x13x128xf32>
    %176 = vector.shape_cast %175 : vector<1x1x13x128xf32> to vector<1x13x128xf32>
    %177 = vector.broadcast %159 : vector<1x1x128xf32> to vector<1x13x128xf32>
    %178 = arith.mulf %176, %177 : vector<1x13x128xf32>
    %179 = arith.addf %79, %178 : vector<1x13x128xf32>
    %180 = vector.broadcast %161 : vector<1x1x128xf32> to vector<1x13x128xf32>
    %181 = arith.mulf %176, %180 : vector<1x13x128xf32>
    %182 = arith.addf %172, %181 : vector<1x13x128xf32>
    %c2_i32_77 = arith.constant 2 : i32
    %183 = arith.addi %1, %c2_i32_77 : i32
    %c0_78 = arith.constant 0 : index
    %184 = arith.index_cast %183 : i32 to index
    %c1_79 = arith.constant 1 : index
    %c0_80 = arith.constant 0 : index
    %185 = vector.load %arg3[%c0_78, %184, %c1_79, %c0_80] : memref<1x19x16x128xf32, #tpu.memory_space<vmem>>, vector<1x1x13x128xf32>
    %186 = vector.shape_cast %185 : vector<1x1x13x128xf32> to vector<1x13x128xf32>
    %187 = vector.broadcast %159 : vector<1x1x128xf32> to vector<1x13x128xf32>
    %188 = arith.mulf %186, %187 : vector<1x13x128xf32>
    %189 = arith.addf %95, %188 : vector<1x13x128xf32>
    %190 = vector.broadcast %161 : vector<1x1x128xf32> to vector<1x13x128xf32>
    %191 = arith.mulf %186, %190 : vector<1x13x128xf32>
    %192 = arith.addf %179, %191 : vector<1x13x128xf32>
    %193 = vector.broadcast %163 : vector<1x1x128xf32> to vector<1x13x128xf32>
    %194 = arith.mulf %186, %193 : vector<1x13x128xf32>
    %195 = arith.addf %182, %194 : vector<1x13x128xf32>
    %c3_i32_81 = arith.constant 3 : i32
    %196 = arith.addi %1, %c3_i32_81 : i32
    %c0_82 = arith.constant 0 : index
    %197 = arith.index_cast %196 : i32 to index
    %c1_83 = arith.constant 1 : index
    %c0_84 = arith.constant 0 : index
    %198 = vector.load %arg3[%c0_82, %197, %c1_83, %c0_84] : memref<1x19x16x128xf32, #tpu.memory_space<vmem>>, vector<1x1x13x128xf32>
    %199 = vector.shape_cast %198 : vector<1x1x13x128xf32> to vector<1x13x128xf32>
    %200 = vector.broadcast %159 : vector<1x1x128xf32> to vector<1x13x128xf32>
    %201 = arith.mulf %199, %200 : vector<1x13x128xf32>
    %202 = arith.addf %111, %201 : vector<1x13x128xf32>
    %203 = vector.broadcast %161 : vector<1x1x128xf32> to vector<1x13x128xf32>
    %204 = arith.mulf %199, %203 : vector<1x13x128xf32>
    %205 = arith.addf %189, %204 : vector<1x13x128xf32>
    %206 = vector.broadcast %163 : vector<1x1x128xf32> to vector<1x13x128xf32>
    %207 = arith.mulf %199, %206 : vector<1x13x128xf32>
    %208 = arith.addf %192, %207 : vector<1x13x128xf32>
    %209 = vector.broadcast %165 : vector<1x1x128xf32> to vector<1x13x128xf32>
    %210 = arith.mulf %199, %209 : vector<1x13x128xf32>
    %211 = arith.addf %195, %210 : vector<1x13x128xf32>
    %c4_i32_85 = arith.constant 4 : i32
    %212 = arith.addi %1, %c4_i32_85 : i32
    %c0_86 = arith.constant 0 : index
    %213 = arith.index_cast %212 : i32 to index
    %c1_87 = arith.constant 1 : index
    %c0_88 = arith.constant 0 : index
    %214 = vector.load %arg3[%c0_86, %213, %c1_87, %c0_88] : memref<1x19x16x128xf32, #tpu.memory_space<vmem>>, vector<1x1x13x128xf32>
    %215 = vector.shape_cast %214 : vector<1x1x13x128xf32> to vector<1x13x128xf32>
    %216 = vector.broadcast %159 : vector<1x1x128xf32> to vector<1x13x128xf32>
    %217 = arith.mulf %215, %216 : vector<1x13x128xf32>
    %218 = arith.addf %127, %217 : vector<1x13x128xf32>
    %219 = vector.broadcast %161 : vector<1x1x128xf32> to vector<1x13x128xf32>
    %220 = arith.mulf %215, %219 : vector<1x13x128xf32>
    %221 = arith.addf %202, %220 : vector<1x13x128xf32>
    %222 = vector.broadcast %163 : vector<1x1x128xf32> to vector<1x13x128xf32>
    %223 = arith.mulf %215, %222 : vector<1x13x128xf32>
    %224 = arith.addf %205, %223 : vector<1x13x128xf32>
    %225 = vector.broadcast %165 : vector<1x1x128xf32> to vector<1x13x128xf32>
    %226 = arith.mulf %215, %225 : vector<1x13x128xf32>
    %227 = arith.addf %208, %226 : vector<1x13x128xf32>
    %c5_i32_89 = arith.constant 5 : i32
    %228 = arith.addi %1, %c5_i32_89 : i32
    %c0_90 = arith.constant 0 : index
    %229 = arith.index_cast %228 : i32 to index
    %c1_91 = arith.constant 1 : index
    %c0_92 = arith.constant 0 : index
    %230 = vector.load %arg3[%c0_90, %229, %c1_91, %c0_92] : memref<1x19x16x128xf32, #tpu.memory_space<vmem>>, vector<1x1x13x128xf32>
    %231 = vector.shape_cast %230 : vector<1x1x13x128xf32> to vector<1x13x128xf32>
    %232 = vector.broadcast %159 : vector<1x1x128xf32> to vector<1x13x128xf32>
    %233 = arith.mulf %231, %232 : vector<1x13x128xf32>
    %234 = arith.addf %140, %233 : vector<1x13x128xf32>
    %235 = vector.broadcast %161 : vector<1x1x128xf32> to vector<1x13x128xf32>
    %236 = arith.mulf %231, %235 : vector<1x13x128xf32>
    %237 = arith.addf %218, %236 : vector<1x13x128xf32>
    %238 = vector.broadcast %163 : vector<1x1x128xf32> to vector<1x13x128xf32>
    %239 = arith.mulf %231, %238 : vector<1x13x128xf32>
    %240 = arith.addf %221, %239 : vector<1x13x128xf32>
    %241 = vector.broadcast %165 : vector<1x1x128xf32> to vector<1x13x128xf32>
    %242 = arith.mulf %231, %241 : vector<1x13x128xf32>
    %243 = arith.addf %224, %242 : vector<1x13x128xf32>
    %c6_i32_93 = arith.constant 6 : i32
    %244 = arith.addi %1, %c6_i32_93 : i32
    %c0_94 = arith.constant 0 : index
    %245 = arith.index_cast %244 : i32 to index
    %c1_95 = arith.constant 1 : index
    %c0_96 = arith.constant 0 : index
    %246 = vector.load %arg3[%c0_94, %245, %c1_95, %c0_96] : memref<1x19x16x128xf32, #tpu.memory_space<vmem>>, vector<1x1x13x128xf32>
    %247 = vector.shape_cast %246 : vector<1x1x13x128xf32> to vector<1x13x128xf32>
    %248 = vector.broadcast %159 : vector<1x1x128xf32> to vector<1x13x128xf32>
    %249 = arith.mulf %247, %248 : vector<1x13x128xf32>
    %250 = arith.addf %150, %249 : vector<1x13x128xf32>
    %251 = vector.broadcast %161 : vector<1x1x128xf32> to vector<1x13x128xf32>
    %252 = arith.mulf %247, %251 : vector<1x13x128xf32>
    %253 = arith.addf %234, %252 : vector<1x13x128xf32>
    %254 = vector.broadcast %163 : vector<1x1x128xf32> to vector<1x13x128xf32>
    %255 = arith.mulf %247, %254 : vector<1x13x128xf32>
    %256 = arith.addf %237, %255 : vector<1x13x128xf32>
    %257 = vector.broadcast %165 : vector<1x1x128xf32> to vector<1x13x128xf32>
    %258 = arith.mulf %247, %257 : vector<1x13x128xf32>
    %259 = arith.addf %240, %258 : vector<1x13x128xf32>
    %c7_i32_97 = arith.constant 7 : i32
    %260 = arith.addi %1, %c7_i32_97 : i32
    %c0_98 = arith.constant 0 : index
    %261 = arith.index_cast %260 : i32 to index
    %c1_99 = arith.constant 1 : index
    %c0_100 = arith.constant 0 : index
    %262 = vector.load %arg3[%c0_98, %261, %c1_99, %c0_100] : memref<1x19x16x128xf32, #tpu.memory_space<vmem>>, vector<1x1x13x128xf32>
    %263 = vector.shape_cast %262 : vector<1x1x13x128xf32> to vector<1x13x128xf32>
    %264 = vector.broadcast %159 : vector<1x1x128xf32> to vector<1x13x128xf32>
    %265 = arith.mulf %263, %264 : vector<1x13x128xf32>
    %266 = arith.addf %157, %265 : vector<1x13x128xf32>
    %267 = vector.broadcast %161 : vector<1x1x128xf32> to vector<1x13x128xf32>
    %268 = arith.mulf %263, %267 : vector<1x13x128xf32>
    %269 = arith.addf %250, %268 : vector<1x13x128xf32>
    %270 = vector.broadcast %163 : vector<1x1x128xf32> to vector<1x13x128xf32>
    %271 = arith.mulf %263, %270 : vector<1x13x128xf32>
    %272 = arith.addf %253, %271 : vector<1x13x128xf32>
    %273 = vector.broadcast %165 : vector<1x1x128xf32> to vector<1x13x128xf32>
    %274 = arith.mulf %263, %273 : vector<1x13x128xf32>
    %275 = arith.addf %256, %274 : vector<1x13x128xf32>
    %c8_i32_101 = arith.constant 8 : i32
    %276 = arith.addi %1, %c8_i32_101 : i32
    %c0_102 = arith.constant 0 : index
    %277 = arith.index_cast %276 : i32 to index
    %c1_103 = arith.constant 1 : index
    %c0_104 = arith.constant 0 : index
    %278 = vector.load %arg3[%c0_102, %277, %c1_103, %c0_104] : memref<1x19x16x128xf32, #tpu.memory_space<vmem>>, vector<1x1x13x128xf32>
    %279 = vector.shape_cast %278 : vector<1x1x13x128xf32> to vector<1x13x128xf32>
    %280 = vector.broadcast %161 : vector<1x1x128xf32> to vector<1x13x128xf32>
    %281 = arith.mulf %279, %280 : vector<1x13x128xf32>
    %282 = arith.addf %266, %281 : vector<1x13x128xf32>
    %283 = vector.broadcast %163 : vector<1x1x128xf32> to vector<1x13x128xf32>
    %284 = arith.mulf %279, %283 : vector<1x13x128xf32>
    %285 = arith.addf %269, %284 : vector<1x13x128xf32>
    %286 = vector.broadcast %165 : vector<1x1x128xf32> to vector<1x13x128xf32>
    %287 = arith.mulf %279, %286 : vector<1x13x128xf32>
    %288 = arith.addf %272, %287 : vector<1x13x128xf32>
    %c9_i32_105 = arith.constant 9 : i32
    %289 = arith.addi %1, %c9_i32_105 : i32
    %c0_106 = arith.constant 0 : index
    %290 = arith.index_cast %289 : i32 to index
    %c1_107 = arith.constant 1 : index
    %c0_108 = arith.constant 0 : index
    %291 = vector.load %arg3[%c0_106, %290, %c1_107, %c0_108] : memref<1x19x16x128xf32, #tpu.memory_space<vmem>>, vector<1x1x13x128xf32>
    %292 = vector.shape_cast %291 : vector<1x1x13x128xf32> to vector<1x13x128xf32>
    %293 = vector.broadcast %163 : vector<1x1x128xf32> to vector<1x13x128xf32>
    %294 = arith.mulf %292, %293 : vector<1x13x128xf32>
    %295 = arith.addf %282, %294 : vector<1x13x128xf32>
    %296 = vector.broadcast %165 : vector<1x1x128xf32> to vector<1x13x128xf32>
    %297 = arith.mulf %292, %296 : vector<1x13x128xf32>
    %298 = arith.addf %285, %297 : vector<1x13x128xf32>
    %c10_i32_109 = arith.constant 10 : i32
    %299 = arith.addi %1, %c10_i32_109 : i32
    %c0_110 = arith.constant 0 : index
    %300 = arith.index_cast %299 : i32 to index
    %c1_111 = arith.constant 1 : index
    %c0_112 = arith.constant 0 : index
    %301 = vector.load %arg3[%c0_110, %300, %c1_111, %c0_112] : memref<1x19x16x128xf32, #tpu.memory_space<vmem>>, vector<1x1x13x128xf32>
    %302 = vector.shape_cast %301 : vector<1x1x13x128xf32> to vector<1x13x128xf32>
    %303 = vector.broadcast %165 : vector<1x1x128xf32> to vector<1x13x128xf32>
    %304 = arith.mulf %302, %303 : vector<1x13x128xf32>
    %305 = arith.addf %295, %304 : vector<1x13x128xf32>
    %c0_113 = arith.constant 0 : index
    %c0_114 = arith.constant 0 : index
    %c2_115 = arith.constant 2 : index
    %c0_116 = arith.constant 0 : index
    %306 = vector.load %arg4[%c0_113, %c0_114, %c2_115, %c0_116] : memref<1x4x4x128xf32, #tpu.memory_space<vmem>>, vector<1x1x1x128xf32>
    %307 = vector.shape_cast %306 : vector<1x1x1x128xf32> to vector<1x1x128xf32>
    %c0_117 = arith.constant 0 : index
    %c1_118 = arith.constant 1 : index
    %c2_119 = arith.constant 2 : index
    %c0_120 = arith.constant 0 : index
    %308 = vector.load %arg4[%c0_117, %c1_118, %c2_119, %c0_120] : memref<1x4x4x128xf32, #tpu.memory_space<vmem>>, vector<1x1x1x128xf32>
    %309 = vector.shape_cast %308 : vector<1x1x1x128xf32> to vector<1x1x128xf32>
    %c0_121 = arith.constant 0 : index
    %c2_122 = arith.constant 2 : index
    %c2_123 = arith.constant 2 : index
    %c0_124 = arith.constant 0 : index
    %310 = vector.load %arg4[%c0_121, %c2_122, %c2_123, %c0_124] : memref<1x4x4x128xf32, #tpu.memory_space<vmem>>, vector<1x1x1x128xf32>
    %311 = vector.shape_cast %310 : vector<1x1x1x128xf32> to vector<1x1x128xf32>
    %c0_125 = arith.constant 0 : index
    %c3_126 = arith.constant 3 : index
    %c2_127 = arith.constant 2 : index
    %c0_128 = arith.constant 0 : index
    %312 = vector.load %arg4[%c0_125, %c3_126, %c2_127, %c0_128] : memref<1x4x4x128xf32, #tpu.memory_space<vmem>>, vector<1x1x1x128xf32>
    %313 = vector.shape_cast %312 : vector<1x1x1x128xf32> to vector<1x1x128xf32>
    %c0_i32_129 = arith.constant 0 : i32
    %314 = arith.addi %1, %c0_i32_129 : i32
    %c0_130 = arith.constant 0 : index
    %315 = arith.index_cast %314 : i32 to index
    %c2_131 = arith.constant 2 : index
    %c0_132 = arith.constant 0 : index
    %316 = vector.load %arg3[%c0_130, %315, %c2_131, %c0_132] : memref<1x19x16x128xf32, #tpu.memory_space<vmem>>, vector<1x1x13x128xf32>
    %317 = vector.shape_cast %316 : vector<1x1x13x128xf32> to vector<1x13x128xf32>
    %318 = vector.broadcast %307 : vector<1x1x128xf32> to vector<1x13x128xf32>
    %319 = arith.mulf %317, %318 : vector<1x13x128xf32>
    %320 = arith.addf %211, %319 : vector<1x13x128xf32>
    %c1_i32_133 = arith.constant 1 : i32
    %321 = arith.addi %1, %c1_i32_133 : i32
    %c0_134 = arith.constant 0 : index
    %322 = arith.index_cast %321 : i32 to index
    %c2_135 = arith.constant 2 : index
    %c0_136 = arith.constant 0 : index
    %323 = vector.load %arg3[%c0_134, %322, %c2_135, %c0_136] : memref<1x19x16x128xf32, #tpu.memory_space<vmem>>, vector<1x1x13x128xf32>
    %324 = vector.shape_cast %323 : vector<1x1x13x128xf32> to vector<1x13x128xf32>
    %325 = vector.broadcast %307 : vector<1x1x128xf32> to vector<1x13x128xf32>
    %326 = arith.mulf %324, %325 : vector<1x13x128xf32>
    %327 = arith.addf %227, %326 : vector<1x13x128xf32>
    %328 = vector.broadcast %309 : vector<1x1x128xf32> to vector<1x13x128xf32>
    %329 = arith.mulf %324, %328 : vector<1x13x128xf32>
    %330 = arith.addf %320, %329 : vector<1x13x128xf32>
    %c2_i32_137 = arith.constant 2 : i32
    %331 = arith.addi %1, %c2_i32_137 : i32
    %c0_138 = arith.constant 0 : index
    %332 = arith.index_cast %331 : i32 to index
    %c2_139 = arith.constant 2 : index
    %c0_140 = arith.constant 0 : index
    %333 = vector.load %arg3[%c0_138, %332, %c2_139, %c0_140] : memref<1x19x16x128xf32, #tpu.memory_space<vmem>>, vector<1x1x13x128xf32>
    %334 = vector.shape_cast %333 : vector<1x1x13x128xf32> to vector<1x13x128xf32>
    %335 = vector.broadcast %307 : vector<1x1x128xf32> to vector<1x13x128xf32>
    %336 = arith.mulf %334, %335 : vector<1x13x128xf32>
    %337 = arith.addf %243, %336 : vector<1x13x128xf32>
    %338 = vector.broadcast %309 : vector<1x1x128xf32> to vector<1x13x128xf32>
    %339 = arith.mulf %334, %338 : vector<1x13x128xf32>
    %340 = arith.addf %327, %339 : vector<1x13x128xf32>
    %341 = vector.broadcast %311 : vector<1x1x128xf32> to vector<1x13x128xf32>
    %342 = arith.mulf %334, %341 : vector<1x13x128xf32>
    %343 = arith.addf %330, %342 : vector<1x13x128xf32>
    %c3_i32_141 = arith.constant 3 : i32
    %344 = arith.addi %1, %c3_i32_141 : i32
    %c0_142 = arith.constant 0 : index
    %345 = arith.index_cast %344 : i32 to index
    %c2_143 = arith.constant 2 : index
    %c0_144 = arith.constant 0 : index
    %346 = vector.load %arg3[%c0_142, %345, %c2_143, %c0_144] : memref<1x19x16x128xf32, #tpu.memory_space<vmem>>, vector<1x1x13x128xf32>
    %347 = vector.shape_cast %346 : vector<1x1x13x128xf32> to vector<1x13x128xf32>
    %348 = vector.broadcast %307 : vector<1x1x128xf32> to vector<1x13x128xf32>
    %349 = arith.mulf %347, %348 : vector<1x13x128xf32>
    %350 = arith.addf %259, %349 : vector<1x13x128xf32>
    %351 = vector.broadcast %309 : vector<1x1x128xf32> to vector<1x13x128xf32>
    %352 = arith.mulf %347, %351 : vector<1x13x128xf32>
    %353 = arith.addf %337, %352 : vector<1x13x128xf32>
    %354 = vector.broadcast %311 : vector<1x1x128xf32> to vector<1x13x128xf32>
    %355 = arith.mulf %347, %354 : vector<1x13x128xf32>
    %356 = arith.addf %340, %355 : vector<1x13x128xf32>
    %357 = vector.broadcast %313 : vector<1x1x128xf32> to vector<1x13x128xf32>
    %358 = arith.mulf %347, %357 : vector<1x13x128xf32>
    %359 = arith.addf %343, %358 : vector<1x13x128xf32>
    %c4_i32_145 = arith.constant 4 : i32
    %360 = arith.addi %1, %c4_i32_145 : i32
    %c0_146 = arith.constant 0 : index
    %361 = arith.index_cast %360 : i32 to index
    %c2_147 = arith.constant 2 : index
    %c0_148 = arith.constant 0 : index
    %362 = vector.load %arg3[%c0_146, %361, %c2_147, %c0_148] : memref<1x19x16x128xf32, #tpu.memory_space<vmem>>, vector<1x1x13x128xf32>
    %363 = vector.shape_cast %362 : vector<1x1x13x128xf32> to vector<1x13x128xf32>
    %364 = vector.broadcast %307 : vector<1x1x128xf32> to vector<1x13x128xf32>
    %365 = arith.mulf %363, %364 : vector<1x13x128xf32>
    %366 = arith.addf %275, %365 : vector<1x13x128xf32>
    %367 = vector.broadcast %309 : vector<1x1x128xf32> to vector<1x13x128xf32>
    %368 = arith.mulf %363, %367 : vector<1x13x128xf32>
    %369 = arith.addf %350, %368 : vector<1x13x128xf32>
    %370 = vector.broadcast %311 : vector<1x1x128xf32> to vector<1x13x128xf32>
    %371 = arith.mulf %363, %370 : vector<1x13x128xf32>
    %372 = arith.addf %353, %371 : vector<1x13x128xf32>
    %373 = vector.broadcast %313 : vector<1x1x128xf32> to vector<1x13x128xf32>
    %374 = arith.mulf %363, %373 : vector<1x13x128xf32>
    %375 = arith.addf %356, %374 : vector<1x13x128xf32>
    %c5_i32_149 = arith.constant 5 : i32
    %376 = arith.addi %1, %c5_i32_149 : i32
    %c0_150 = arith.constant 0 : index
    %377 = arith.index_cast %376 : i32 to index
    %c2_151 = arith.constant 2 : index
    %c0_152 = arith.constant 0 : index
    %378 = vector.load %arg3[%c0_150, %377, %c2_151, %c0_152] : memref<1x19x16x128xf32, #tpu.memory_space<vmem>>, vector<1x1x13x128xf32>
    %379 = vector.shape_cast %378 : vector<1x1x13x128xf32> to vector<1x13x128xf32>
    %380 = vector.broadcast %307 : vector<1x1x128xf32> to vector<1x13x128xf32>
    %381 = arith.mulf %379, %380 : vector<1x13x128xf32>
    %382 = arith.addf %288, %381 : vector<1x13x128xf32>
    %383 = vector.broadcast %309 : vector<1x1x128xf32> to vector<1x13x128xf32>
    %384 = arith.mulf %379, %383 : vector<1x13x128xf32>
    %385 = arith.addf %366, %384 : vector<1x13x128xf32>
    %386 = vector.broadcast %311 : vector<1x1x128xf32> to vector<1x13x128xf32>
    %387 = arith.mulf %379, %386 : vector<1x13x128xf32>
    %388 = arith.addf %369, %387 : vector<1x13x128xf32>
    %389 = vector.broadcast %313 : vector<1x1x128xf32> to vector<1x13x128xf32>
    %390 = arith.mulf %379, %389 : vector<1x13x128xf32>
    %391 = arith.addf %372, %390 : vector<1x13x128xf32>
    %c6_i32_153 = arith.constant 6 : i32
    %392 = arith.addi %1, %c6_i32_153 : i32
    %c0_154 = arith.constant 0 : index
    %393 = arith.index_cast %392 : i32 to index
    %c2_155 = arith.constant 2 : index
    %c0_156 = arith.constant 0 : index
    %394 = vector.load %arg3[%c0_154, %393, %c2_155, %c0_156] : memref<1x19x16x128xf32, #tpu.memory_space<vmem>>, vector<1x1x13x128xf32>
    %395 = vector.shape_cast %394 : vector<1x1x13x128xf32> to vector<1x13x128xf32>
    %396 = vector.broadcast %307 : vector<1x1x128xf32> to vector<1x13x128xf32>
    %397 = arith.mulf %395, %396 : vector<1x13x128xf32>
    %398 = arith.addf %298, %397 : vector<1x13x128xf32>
    %399 = vector.broadcast %309 : vector<1x1x128xf32> to vector<1x13x128xf32>
    %400 = arith.mulf %395, %399 : vector<1x13x128xf32>
    %401 = arith.addf %382, %400 : vector<1x13x128xf32>
    %402 = vector.broadcast %311 : vector<1x1x128xf32> to vector<1x13x128xf32>
    %403 = arith.mulf %395, %402 : vector<1x13x128xf32>
    %404 = arith.addf %385, %403 : vector<1x13x128xf32>
    %405 = vector.broadcast %313 : vector<1x1x128xf32> to vector<1x13x128xf32>
    %406 = arith.mulf %395, %405 : vector<1x13x128xf32>
    %407 = arith.addf %388, %406 : vector<1x13x128xf32>
    %c7_i32_157 = arith.constant 7 : i32
    %408 = arith.addi %1, %c7_i32_157 : i32
    %c0_158 = arith.constant 0 : index
    %409 = arith.index_cast %408 : i32 to index
    %c2_159 = arith.constant 2 : index
    %c0_160 = arith.constant 0 : index
    %410 = vector.load %arg3[%c0_158, %409, %c2_159, %c0_160] : memref<1x19x16x128xf32, #tpu.memory_space<vmem>>, vector<1x1x13x128xf32>
    %411 = vector.shape_cast %410 : vector<1x1x13x128xf32> to vector<1x13x128xf32>
    %412 = vector.broadcast %307 : vector<1x1x128xf32> to vector<1x13x128xf32>
    %413 = arith.mulf %411, %412 : vector<1x13x128xf32>
    %414 = arith.addf %305, %413 : vector<1x13x128xf32>
    %415 = vector.broadcast %309 : vector<1x1x128xf32> to vector<1x13x128xf32>
    %416 = arith.mulf %411, %415 : vector<1x13x128xf32>
    %417 = arith.addf %398, %416 : vector<1x13x128xf32>
    %418 = vector.broadcast %311 : vector<1x1x128xf32> to vector<1x13x128xf32>
    %419 = arith.mulf %411, %418 : vector<1x13x128xf32>
    %420 = arith.addf %401, %419 : vector<1x13x128xf32>
    %421 = vector.broadcast %313 : vector<1x1x128xf32> to vector<1x13x128xf32>
    %422 = arith.mulf %411, %421 : vector<1x13x128xf32>
    %423 = arith.addf %404, %422 : vector<1x13x128xf32>
    %c8_i32_161 = arith.constant 8 : i32
    %424 = arith.addi %1, %c8_i32_161 : i32
    %c0_162 = arith.constant 0 : index
    %425 = arith.index_cast %424 : i32 to index
    %c2_163 = arith.constant 2 : index
    %c0_164 = arith.constant 0 : index
    %426 = vector.load %arg3[%c0_162, %425, %c2_163, %c0_164] : memref<1x19x16x128xf32, #tpu.memory_space<vmem>>, vector<1x1x13x128xf32>
    %427 = vector.shape_cast %426 : vector<1x1x13x128xf32> to vector<1x13x128xf32>
    %428 = vector.broadcast %309 : vector<1x1x128xf32> to vector<1x13x128xf32>
    %429 = arith.mulf %427, %428 : vector<1x13x128xf32>
    %430 = arith.addf %414, %429 : vector<1x13x128xf32>
    %431 = vector.broadcast %311 : vector<1x1x128xf32> to vector<1x13x128xf32>
    %432 = arith.mulf %427, %431 : vector<1x13x128xf32>
    %433 = arith.addf %417, %432 : vector<1x13x128xf32>
    %434 = vector.broadcast %313 : vector<1x1x128xf32> to vector<1x13x128xf32>
    %435 = arith.mulf %427, %434 : vector<1x13x128xf32>
    %436 = arith.addf %420, %435 : vector<1x13x128xf32>
    %c9_i32_165 = arith.constant 9 : i32
    %437 = arith.addi %1, %c9_i32_165 : i32
    %c0_166 = arith.constant 0 : index
    %438 = arith.index_cast %437 : i32 to index
    %c2_167 = arith.constant 2 : index
    %c0_168 = arith.constant 0 : index
    %439 = vector.load %arg3[%c0_166, %438, %c2_167, %c0_168] : memref<1x19x16x128xf32, #tpu.memory_space<vmem>>, vector<1x1x13x128xf32>
    %440 = vector.shape_cast %439 : vector<1x1x13x128xf32> to vector<1x13x128xf32>
    %441 = vector.broadcast %311 : vector<1x1x128xf32> to vector<1x13x128xf32>
    %442 = arith.mulf %440, %441 : vector<1x13x128xf32>
    %443 = arith.addf %430, %442 : vector<1x13x128xf32>
    %444 = vector.broadcast %313 : vector<1x1x128xf32> to vector<1x13x128xf32>
    %445 = arith.mulf %440, %444 : vector<1x13x128xf32>
    %446 = arith.addf %433, %445 : vector<1x13x128xf32>
    %c10_i32_169 = arith.constant 10 : i32
    %447 = arith.addi %1, %c10_i32_169 : i32
    %c0_170 = arith.constant 0 : index
    %448 = arith.index_cast %447 : i32 to index
    %c2_171 = arith.constant 2 : index
    %c0_172 = arith.constant 0 : index
    %449 = vector.load %arg3[%c0_170, %448, %c2_171, %c0_172] : memref<1x19x16x128xf32, #tpu.memory_space<vmem>>, vector<1x1x13x128xf32>
    %450 = vector.shape_cast %449 : vector<1x1x13x128xf32> to vector<1x13x128xf32>
    %451 = vector.broadcast %313 : vector<1x1x128xf32> to vector<1x13x128xf32>
    %452 = arith.mulf %450, %451 : vector<1x13x128xf32>
    %453 = arith.addf %443, %452 : vector<1x13x128xf32>
    %c0_173 = arith.constant 0 : index
    %c0_174 = arith.constant 0 : index
    %c3_175 = arith.constant 3 : index
    %c0_176 = arith.constant 0 : index
    %454 = vector.load %arg4[%c0_173, %c0_174, %c3_175, %c0_176] : memref<1x4x4x128xf32, #tpu.memory_space<vmem>>, vector<1x1x1x128xf32>
    %455 = vector.shape_cast %454 : vector<1x1x1x128xf32> to vector<1x1x128xf32>
    %c0_177 = arith.constant 0 : index
    %c1_178 = arith.constant 1 : index
    %c3_179 = arith.constant 3 : index
    %c0_180 = arith.constant 0 : index
    %456 = vector.load %arg4[%c0_177, %c1_178, %c3_179, %c0_180] : memref<1x4x4x128xf32, #tpu.memory_space<vmem>>, vector<1x1x1x128xf32>
    %457 = vector.shape_cast %456 : vector<1x1x1x128xf32> to vector<1x1x128xf32>
    %c0_181 = arith.constant 0 : index
    %c2_182 = arith.constant 2 : index
    %c3_183 = arith.constant 3 : index
    %c0_184 = arith.constant 0 : index
    %458 = vector.load %arg4[%c0_181, %c2_182, %c3_183, %c0_184] : memref<1x4x4x128xf32, #tpu.memory_space<vmem>>, vector<1x1x1x128xf32>
    %459 = vector.shape_cast %458 : vector<1x1x1x128xf32> to vector<1x1x128xf32>
    %c0_185 = arith.constant 0 : index
    %c3_186 = arith.constant 3 : index
    %c3_187 = arith.constant 3 : index
    %c0_188 = arith.constant 0 : index
    %460 = vector.load %arg4[%c0_185, %c3_186, %c3_187, %c0_188] : memref<1x4x4x128xf32, #tpu.memory_space<vmem>>, vector<1x1x1x128xf32>
    %461 = vector.shape_cast %460 : vector<1x1x1x128xf32> to vector<1x1x128xf32>
    %c0_i32_189 = arith.constant 0 : i32
    %462 = arith.addi %1, %c0_i32_189 : i32
    %c0_190 = arith.constant 0 : index
    %463 = arith.index_cast %462 : i32 to index
    %c3_191 = arith.constant 3 : index
    %c0_192 = arith.constant 0 : index
    %464 = vector.load %arg3[%c0_190, %463, %c3_191, %c0_192] : memref<1x19x16x128xf32, #tpu.memory_space<vmem>>, vector<1x1x13x128xf32>
    %465 = vector.shape_cast %464 : vector<1x1x13x128xf32> to vector<1x13x128xf32>
    %466 = vector.broadcast %455 : vector<1x1x128xf32> to vector<1x13x128xf32>
    %467 = arith.mulf %465, %466 : vector<1x13x128xf32>
    %468 = arith.addf %359, %467 : vector<1x13x128xf32>
    %c1_i32_193 = arith.constant 1 : i32
    %469 = arith.addi %1, %c1_i32_193 : i32
    %c0_194 = arith.constant 0 : index
    %470 = arith.index_cast %469 : i32 to index
    %c3_195 = arith.constant 3 : index
    %c0_196 = arith.constant 0 : index
    %471 = vector.load %arg3[%c0_194, %470, %c3_195, %c0_196] : memref<1x19x16x128xf32, #tpu.memory_space<vmem>>, vector<1x1x13x128xf32>
    %472 = vector.shape_cast %471 : vector<1x1x13x128xf32> to vector<1x13x128xf32>
    %473 = vector.broadcast %455 : vector<1x1x128xf32> to vector<1x13x128xf32>
    %474 = arith.mulf %472, %473 : vector<1x13x128xf32>
    %475 = arith.addf %375, %474 : vector<1x13x128xf32>
    %476 = vector.broadcast %457 : vector<1x1x128xf32> to vector<1x13x128xf32>
    %477 = arith.mulf %472, %476 : vector<1x13x128xf32>
    %478 = arith.addf %468, %477 : vector<1x13x128xf32>
    %c2_i32_197 = arith.constant 2 : i32
    %479 = arith.addi %1, %c2_i32_197 : i32
    %c0_198 = arith.constant 0 : index
    %480 = arith.index_cast %479 : i32 to index
    %c3_199 = arith.constant 3 : index
    %c0_200 = arith.constant 0 : index
    %481 = vector.load %arg3[%c0_198, %480, %c3_199, %c0_200] : memref<1x19x16x128xf32, #tpu.memory_space<vmem>>, vector<1x1x13x128xf32>
    %482 = vector.shape_cast %481 : vector<1x1x13x128xf32> to vector<1x13x128xf32>
    %483 = vector.broadcast %455 : vector<1x1x128xf32> to vector<1x13x128xf32>
    %484 = arith.mulf %482, %483 : vector<1x13x128xf32>
    %485 = arith.addf %391, %484 : vector<1x13x128xf32>
    %486 = vector.broadcast %457 : vector<1x1x128xf32> to vector<1x13x128xf32>
    %487 = arith.mulf %482, %486 : vector<1x13x128xf32>
    %488 = arith.addf %475, %487 : vector<1x13x128xf32>
    %489 = vector.broadcast %459 : vector<1x1x128xf32> to vector<1x13x128xf32>
    %490 = arith.mulf %482, %489 : vector<1x13x128xf32>
    %491 = arith.addf %478, %490 : vector<1x13x128xf32>
    %c3_i32_201 = arith.constant 3 : i32
    %492 = arith.addi %1, %c3_i32_201 : i32
    %c0_202 = arith.constant 0 : index
    %493 = arith.index_cast %492 : i32 to index
    %c3_203 = arith.constant 3 : index
    %c0_204 = arith.constant 0 : index
    %494 = vector.load %arg3[%c0_202, %493, %c3_203, %c0_204] : memref<1x19x16x128xf32, #tpu.memory_space<vmem>>, vector<1x1x13x128xf32>
    %495 = vector.shape_cast %494 : vector<1x1x13x128xf32> to vector<1x13x128xf32>
    %496 = vector.broadcast %455 : vector<1x1x128xf32> to vector<1x13x128xf32>
    %497 = arith.mulf %495, %496 : vector<1x13x128xf32>
    %498 = arith.addf %407, %497 : vector<1x13x128xf32>
    %499 = vector.broadcast %457 : vector<1x1x128xf32> to vector<1x13x128xf32>
    %500 = arith.mulf %495, %499 : vector<1x13x128xf32>
    %501 = arith.addf %485, %500 : vector<1x13x128xf32>
    %502 = vector.broadcast %459 : vector<1x1x128xf32> to vector<1x13x128xf32>
    %503 = arith.mulf %495, %502 : vector<1x13x128xf32>
    %504 = arith.addf %488, %503 : vector<1x13x128xf32>
    %505 = vector.broadcast %461 : vector<1x1x128xf32> to vector<1x13x128xf32>
    %506 = arith.mulf %495, %505 : vector<1x13x128xf32>
    %507 = arith.addf %491, %506 : vector<1x13x128xf32>
    %c4_i32_205 = arith.constant 4 : i32
    %508 = arith.addi %1, %c4_i32_205 : i32
    %c0_206 = arith.constant 0 : index
    %509 = arith.index_cast %508 : i32 to index
    %c3_207 = arith.constant 3 : index
    %c0_208 = arith.constant 0 : index
    %510 = vector.load %arg3[%c0_206, %509, %c3_207, %c0_208] : memref<1x19x16x128xf32, #tpu.memory_space<vmem>>, vector<1x1x13x128xf32>
    %511 = vector.shape_cast %510 : vector<1x1x13x128xf32> to vector<1x13x128xf32>
    %512 = vector.broadcast %455 : vector<1x1x128xf32> to vector<1x13x128xf32>
    %513 = arith.mulf %511, %512 : vector<1x13x128xf32>
    %514 = arith.addf %423, %513 : vector<1x13x128xf32>
    %515 = vector.broadcast %457 : vector<1x1x128xf32> to vector<1x13x128xf32>
    %516 = arith.mulf %511, %515 : vector<1x13x128xf32>
    %517 = arith.addf %498, %516 : vector<1x13x128xf32>
    %518 = vector.broadcast %459 : vector<1x1x128xf32> to vector<1x13x128xf32>
    %519 = arith.mulf %511, %518 : vector<1x13x128xf32>
    %520 = arith.addf %501, %519 : vector<1x13x128xf32>
    %521 = vector.broadcast %461 : vector<1x1x128xf32> to vector<1x13x128xf32>
    %522 = arith.mulf %511, %521 : vector<1x13x128xf32>
    %523 = arith.addf %504, %522 : vector<1x13x128xf32>
    %c5_i32_209 = arith.constant 5 : i32
    %524 = arith.addi %1, %c5_i32_209 : i32
    %c0_210 = arith.constant 0 : index
    %525 = arith.index_cast %524 : i32 to index
    %c3_211 = arith.constant 3 : index
    %c0_212 = arith.constant 0 : index
    %526 = vector.load %arg3[%c0_210, %525, %c3_211, %c0_212] : memref<1x19x16x128xf32, #tpu.memory_space<vmem>>, vector<1x1x13x128xf32>
    %527 = vector.shape_cast %526 : vector<1x1x13x128xf32> to vector<1x13x128xf32>
    %528 = vector.broadcast %455 : vector<1x1x128xf32> to vector<1x13x128xf32>
    %529 = arith.mulf %527, %528 : vector<1x13x128xf32>
    %530 = arith.addf %436, %529 : vector<1x13x128xf32>
    %531 = vector.broadcast %457 : vector<1x1x128xf32> to vector<1x13x128xf32>
    %532 = arith.mulf %527, %531 : vector<1x13x128xf32>
    %533 = arith.addf %514, %532 : vector<1x13x128xf32>
    %534 = vector.broadcast %459 : vector<1x1x128xf32> to vector<1x13x128xf32>
    %535 = arith.mulf %527, %534 : vector<1x13x128xf32>
    %536 = arith.addf %517, %535 : vector<1x13x128xf32>
    %537 = vector.broadcast %461 : vector<1x1x128xf32> to vector<1x13x128xf32>
    %538 = arith.mulf %527, %537 : vector<1x13x128xf32>
    %539 = arith.addf %520, %538 : vector<1x13x128xf32>
    %c6_i32_213 = arith.constant 6 : i32
    %540 = arith.addi %1, %c6_i32_213 : i32
    %c0_214 = arith.constant 0 : index
    %541 = arith.index_cast %540 : i32 to index
    %c3_215 = arith.constant 3 : index
    %c0_216 = arith.constant 0 : index
    %542 = vector.load %arg3[%c0_214, %541, %c3_215, %c0_216] : memref<1x19x16x128xf32, #tpu.memory_space<vmem>>, vector<1x1x13x128xf32>
    %543 = vector.shape_cast %542 : vector<1x1x13x128xf32> to vector<1x13x128xf32>
    %544 = vector.broadcast %455 : vector<1x1x128xf32> to vector<1x13x128xf32>
    %545 = arith.mulf %543, %544 : vector<1x13x128xf32>
    %546 = arith.addf %446, %545 : vector<1x13x128xf32>
    %547 = vector.broadcast %457 : vector<1x1x128xf32> to vector<1x13x128xf32>
    %548 = arith.mulf %543, %547 : vector<1x13x128xf32>
    %549 = arith.addf %530, %548 : vector<1x13x128xf32>
    %550 = vector.broadcast %459 : vector<1x1x128xf32> to vector<1x13x128xf32>
    %551 = arith.mulf %543, %550 : vector<1x13x128xf32>
    %552 = arith.addf %533, %551 : vector<1x13x128xf32>
    %553 = vector.broadcast %461 : vector<1x1x128xf32> to vector<1x13x128xf32>
    %554 = arith.mulf %543, %553 : vector<1x13x128xf32>
    %555 = arith.addf %536, %554 : vector<1x13x128xf32>
    %c7_i32_217 = arith.constant 7 : i32
    %556 = arith.addi %1, %c7_i32_217 : i32
    %c0_218 = arith.constant 0 : index
    %557 = arith.index_cast %556 : i32 to index
    %c3_219 = arith.constant 3 : index
    %c0_220 = arith.constant 0 : index
    %558 = vector.load %arg3[%c0_218, %557, %c3_219, %c0_220] : memref<1x19x16x128xf32, #tpu.memory_space<vmem>>, vector<1x1x13x128xf32>
    %559 = vector.shape_cast %558 : vector<1x1x13x128xf32> to vector<1x13x128xf32>
    %560 = vector.broadcast %455 : vector<1x1x128xf32> to vector<1x13x128xf32>
    %561 = arith.mulf %559, %560 : vector<1x13x128xf32>
    %562 = arith.addf %453, %561 : vector<1x13x128xf32>
    %563 = vector.broadcast %457 : vector<1x1x128xf32> to vector<1x13x128xf32>
    %564 = arith.mulf %559, %563 : vector<1x13x128xf32>
    %565 = arith.addf %546, %564 : vector<1x13x128xf32>
    %566 = vector.broadcast %459 : vector<1x1x128xf32> to vector<1x13x128xf32>
    %567 = arith.mulf %559, %566 : vector<1x13x128xf32>
    %568 = arith.addf %549, %567 : vector<1x13x128xf32>
    %569 = vector.broadcast %461 : vector<1x1x128xf32> to vector<1x13x128xf32>
    %570 = arith.mulf %559, %569 : vector<1x13x128xf32>
    %571 = arith.addf %552, %570 : vector<1x13x128xf32>
    %c8_i32_221 = arith.constant 8 : i32
    %572 = arith.addi %1, %c8_i32_221 : i32
    %c0_222 = arith.constant 0 : index
    %573 = arith.index_cast %572 : i32 to index
    %c3_223 = arith.constant 3 : index
    %c0_224 = arith.constant 0 : index
    %574 = vector.load %arg3[%c0_222, %573, %c3_223, %c0_224] : memref<1x19x16x128xf32, #tpu.memory_space<vmem>>, vector<1x1x13x128xf32>
    %575 = vector.shape_cast %574 : vector<1x1x13x128xf32> to vector<1x13x128xf32>
    %576 = vector.broadcast %457 : vector<1x1x128xf32> to vector<1x13x128xf32>
    %577 = arith.mulf %575, %576 : vector<1x13x128xf32>
    %578 = arith.addf %562, %577 : vector<1x13x128xf32>
    %579 = vector.broadcast %459 : vector<1x1x128xf32> to vector<1x13x128xf32>
    %580 = arith.mulf %575, %579 : vector<1x13x128xf32>
    %581 = arith.addf %565, %580 : vector<1x13x128xf32>
    %582 = vector.broadcast %461 : vector<1x1x128xf32> to vector<1x13x128xf32>
    %583 = arith.mulf %575, %582 : vector<1x13x128xf32>
    %584 = arith.addf %568, %583 : vector<1x13x128xf32>
    %c9_i32_225 = arith.constant 9 : i32
    %585 = arith.addi %1, %c9_i32_225 : i32
    %c0_226 = arith.constant 0 : index
    %586 = arith.index_cast %585 : i32 to index
    %c3_227 = arith.constant 3 : index
    %c0_228 = arith.constant 0 : index
    %587 = vector.load %arg3[%c0_226, %586, %c3_227, %c0_228] : memref<1x19x16x128xf32, #tpu.memory_space<vmem>>, vector<1x1x13x128xf32>
    %588 = vector.shape_cast %587 : vector<1x1x13x128xf32> to vector<1x13x128xf32>
    %589 = vector.broadcast %459 : vector<1x1x128xf32> to vector<1x13x128xf32>
    %590 = arith.mulf %588, %589 : vector<1x13x128xf32>
    %591 = arith.addf %578, %590 : vector<1x13x128xf32>
    %592 = vector.broadcast %461 : vector<1x1x128xf32> to vector<1x13x128xf32>
    %593 = arith.mulf %588, %592 : vector<1x13x128xf32>
    %594 = arith.addf %581, %593 : vector<1x13x128xf32>
    %c10_i32_229 = arith.constant 10 : i32
    %595 = arith.addi %1, %c10_i32_229 : i32
    %c0_230 = arith.constant 0 : index
    %596 = arith.index_cast %595 : i32 to index
    %c3_231 = arith.constant 3 : index
    %c0_232 = arith.constant 0 : index
    %597 = vector.load %arg3[%c0_230, %596, %c3_231, %c0_232] : memref<1x19x16x128xf32, #tpu.memory_space<vmem>>, vector<1x1x13x128xf32>
    %598 = vector.shape_cast %597 : vector<1x1x13x128xf32> to vector<1x13x128xf32>
    %599 = vector.broadcast %461 : vector<1x1x128xf32> to vector<1x13x128xf32>
    %600 = arith.mulf %598, %599 : vector<1x13x128xf32>
    %601 = arith.addf %591, %600 : vector<1x13x128xf32>
    %c0_233 = arith.constant 0 : index
    %c0_234 = arith.constant 0 : index
    %c0_235 = arith.constant 0 : index
    %c0_236 = arith.constant 0 : index
    %602 = vector.load %arg5[%c0_233, %c0_234, %c0_235, %c0_236] : memref<1x16x13x128xf32, #tpu.memory_space<vmem>>, vector<1x1x13x128xf32>
    %603 = vector.shape_cast %602 : vector<1x1x13x128xf32> to vector<1x13x128xf32>
    %604 = vector.shape_cast %507 : vector<1x13x128xf32> to vector<1x1x13x128xf32>
    tpu.vector_store %arg5[%c0_233, %c0_234, %c0_235, %c0_236], %604 {strides = array<i32>} : memref<1x16x13x128xf32, #tpu.memory_space<vmem>>, vector<1x1x13x128xf32>,
    %c0_237 = arith.constant 0 : index
    %c1_238 = arith.constant 1 : index
    %c0_239 = arith.constant 0 : index
    %c0_240 = arith.constant 0 : index
    %605 = vector.load %arg5[%c0_237, %c1_238, %c0_239, %c0_240] : memref<1x16x13x128xf32, #tpu.memory_space<vmem>>, vector<1x1x13x128xf32>
    %606 = vector.shape_cast %605 : vector<1x1x13x128xf32> to vector<1x13x128xf32>
    %607 = vector.shape_cast %523 : vector<1x13x128xf32> to vector<1x1x13x128xf32>
    tpu.vector_store %arg5[%c0_237, %c1_238, %c0_239, %c0_240], %607 {strides = array<i32>} : memref<1x16x13x128xf32, #tpu.memory_space<vmem>>, vector<1x1x13x128xf32>,
    %c0_241 = arith.constant 0 : index
    %c2_242 = arith.constant 2 : index
    %c0_243 = arith.constant 0 : index
    %c0_244 = arith.constant 0 : index
    %608 = vector.load %arg5[%c0_241, %c2_242, %c0_243, %c0_244] : memref<1x16x13x128xf32, #tpu.memory_space<vmem>>, vector<1x1x13x128xf32>
    %609 = vector.shape_cast %608 : vector<1x1x13x128xf32> to vector<1x13x128xf32>
    %610 = vector.shape_cast %539 : vector<1x13x128xf32> to vector<1x1x13x128xf32>
    tpu.vector_store %arg5[%c0_241, %c2_242, %c0_243, %c0_244], %610 {strides = array<i32>} : memref<1x16x13x128xf32, #tpu.memory_space<vmem>>, vector<1x1x13x128xf32>,
    %c0_245 = arith.constant 0 : index
    %c3_246 = arith.constant 3 : index
    %c0_247 = arith.constant 0 : index
    %c0_248 = arith.constant 0 : index
    %611 = vector.load %arg5[%c0_245, %c3_246, %c0_247, %c0_248] : memref<1x16x13x128xf32, #tpu.memory_space<vmem>>, vector<1x1x13x128xf32>
    %612 = vector.shape_cast %611 : vector<1x1x13x128xf32> to vector<1x13x128xf32>
    %613 = vector.shape_cast %555 : vector<1x13x128xf32> to vector<1x1x13x128xf32>
    tpu.vector_store %arg5[%c0_245, %c3_246, %c0_247, %c0_248], %613 {strides = array<i32>} : memref<1x16x13x128xf32, #tpu.memory_space<vmem>>, vector<1x1x13x128xf32>,
    %c0_249 = arith.constant 0 : index
    %c4 = arith.constant 4 : index
    %c0_250 = arith.constant 0 : index
    %c0_251 = arith.constant 0 : index
    %614 = vector.load %arg5[%c0_249, %c4, %c0_250, %c0_251] : memref<1x16x13x128xf32, #tpu.memory_space<vmem>>, vector<1x1x13x128xf32>
    %615 = vector.shape_cast %614 : vector<1x1x13x128xf32> to vector<1x13x128xf32>
    %616 = vector.shape_cast %571 : vector<1x13x128xf32> to vector<1x1x13x128xf32>
    tpu.vector_store %arg5[%c0_249, %c4, %c0_250, %c0_251], %616 {strides = array<i32>} : memref<1x16x13x128xf32, #tpu.memory_space<vmem>>, vector<1x1x13x128xf32>,
    %c0_252 = arith.constant 0 : index
    %c5 = arith.constant 5 : index
    %c0_253 = arith.constant 0 : index
    %c0_254 = arith.constant 0 : index
    %617 = vector.load %arg5[%c0_252, %c5, %c0_253, %c0_254] : memref<1x16x13x128xf32, #tpu.memory_space<vmem>>, vector<1x1x13x128xf32>
    %618 = vector.shape_cast %617 : vector<1x1x13x128xf32> to vector<1x13x128xf32>
    %619 = vector.shape_cast %584 : vector<1x13x128xf32> to vector<1x1x13x128xf32>
    tpu.vector_store %arg5[%c0_252, %c5, %c0_253, %c0_254], %619 {strides = array<i32>} : memref<1x16x13x128xf32, #tpu.memory_space<vmem>>, vector<1x1x13x128xf32>,
    %c0_255 = arith.constant 0 : index
    %c6 = arith.constant 6 : index
    %c0_256 = arith.constant 0 : index
    %c0_257 = arith.constant 0 : index
    %620 = vector.load %arg5[%c0_255, %c6, %c0_256, %c0_257] : memref<1x16x13x128xf32, #tpu.memory_space<vmem>>, vector<1x1x13x128xf32>
    %621 = vector.shape_cast %620 : vector<1x1x13x128xf32> to vector<1x13x128xf32>
    %622 = vector.shape_cast %594 : vector<1x13x128xf32> to vector<1x1x13x128xf32>
    tpu.vector_store %arg5[%c0_255, %c6, %c0_256, %c0_257], %622 {strides = array<i32>} : memref<1x16x13x128xf32, #tpu.memory_space<vmem>>, vector<1x1x13x128xf32>,
    %c0_258 = arith.constant 0 : index
    %c7 = arith.constant 7 : index
    %c0_259 = arith.constant 0 : index
    %c0_260 = arith.constant 0 : index
    %623 = vector.load %arg5[%c0_258, %c7, %c0_259, %c0_260] : memref<1x16x13x128xf32, #tpu.memory_space<vmem>>, vector<1x1x13x128xf32>
    %624 = vector.shape_cast %623 : vector<1x1x13x128xf32> to vector<1x13x128xf32>
    %625 = vector.shape_cast %601 : vector<1x13x128xf32> to vector<1x1x13x128xf32>
    tpu.vector_store %arg5[%c0_258, %c7, %c0_259, %c0_260], %625 {strides = array<i32>} : memref<1x16x13x128xf32, #tpu.memory_space<vmem>>, vector<1x1x13x128xf32>,
    %c8_i32_261 = arith.constant 8 : i32
    %626 = arith.addi %0, %c8_i32_261 : i32
    %cst_262 = arith.constant 0.000000e+00 : f32
    %627 = vector.broadcast %cst_262 : f32 to vector<1x13x128xf32>
    %cst_263 = arith.constant 0.000000e+00 : f32
    %628 = vector.broadcast %cst_263 : f32 to vector<1x13x128xf32>
    %cst_264 = arith.constant 0.000000e+00 : f32
    %629 = vector.broadcast %cst_264 : f32 to vector<1x13x128xf32>
    %cst_265 = arith.constant 0.000000e+00 : f32
    %630 = vector.broadcast %cst_265 : f32 to vector<1x13x128xf32>
    %cst_266 = arith.constant 0.000000e+00 : f32
    %631 = vector.broadcast %cst_266 : f32 to vector<1x13x128xf32>
    %cst_267 = arith.constant 0.000000e+00 : f32
    %632 = vector.broadcast %cst_267 : f32 to vector<1x13x128xf32>
    %cst_268 = arith.constant 0.000000e+00 : f32
    %633 = vector.broadcast %cst_268 : f32 to vector<1x13x128xf32>
    %cst_269 = arith.constant 0.000000e+00 : f32
    %634 = vector.broadcast %cst_269 : f32 to vector<1x13x128xf32>
    %c0_270 = arith.constant 0 : index
    %c0_271 = arith.constant 0 : index
    %c0_272 = arith.constant 0 : index
    %c0_273 = arith.constant 0 : index
    %635 = vector.load %arg4[%c0_270, %c0_271, %c0_272, %c0_273] : memref<1x4x4x128xf32, #tpu.memory_space<vmem>>, vector<1x1x1x128xf32>
    %636 = vector.shape_cast %635 : vector<1x1x1x128xf32> to vector<1x1x128xf32>
    %c0_274 = arith.constant 0 : index
    %c1_275 = arith.constant 1 : index
    %c0_276 = arith.constant 0 : index
    %c0_277 = arith.constant 0 : index
    %637 = vector.load %arg4[%c0_274, %c1_275, %c0_276, %c0_277] : memref<1x4x4x128xf32, #tpu.memory_space<vmem>>, vector<1x1x1x128xf32>
    %638 = vector.shape_cast %637 : vector<1x1x1x128xf32> to vector<1x1x128xf32>
    %c0_278 = arith.constant 0 : index
    %c2_279 = arith.constant 2 : index
    %c0_280 = arith.constant 0 : index
    %c0_281 = arith.constant 0 : index
    %639 = vector.load %arg4[%c0_278, %c2_279, %c0_280, %c0_281] : memref<1x4x4x128xf32, #tpu.memory_space<vmem>>, vector<1x1x1x128xf32>
    %640 = vector.shape_cast %639 : vector<1x1x1x128xf32> to vector<1x1x128xf32>
    %c0_282 = arith.constant 0 : index
    %c3_283 = arith.constant 3 : index
    %c0_284 = arith.constant 0 : index
    %c0_285 = arith.constant 0 : index
    %641 = vector.load %arg4[%c0_282, %c3_283, %c0_284, %c0_285] : memref<1x4x4x128xf32, #tpu.memory_space<vmem>>, vector<1x1x1x128xf32>
    %642 = vector.shape_cast %641 : vector<1x1x1x128xf32> to vector<1x1x128xf32>
    %c0_i32_286 = arith.constant 0 : i32
    %643 = arith.addi %626, %c0_i32_286 : i32
    %c0_287 = arith.constant 0 : index
    %644 = arith.index_cast %643 : i32 to index
    %c0_288 = arith.constant 0 : index
    %c0_289 = arith.constant 0 : index
    %645 = vector.load %arg3[%c0_287, %644, %c0_288, %c0_289] : memref<1x19x16x128xf32, #tpu.memory_space<vmem>>, vector<1x1x13x128xf32>
    %646 = vector.shape_cast %645 : vector<1x1x13x128xf32> to vector<1x13x128xf32>
    %647 = vector.broadcast %636 : vector<1x1x128xf32> to vector<1x13x128xf32>
    %648 = arith.mulf %646, %647 : vector<1x13x128xf32>
    %649 = arith.addf %627, %648 : vector<1x13x128xf32>
    %c1_i32_290 = arith.constant 1 : i32
    %650 = arith.addi %626, %c1_i32_290 : i32
    %c0_291 = arith.constant 0 : index
    %651 = arith.index_cast %650 : i32 to index
    %c0_292 = arith.constant 0 : index
    %c0_293 = arith.constant 0 : index
    %652 = vector.load %arg3[%c0_291, %651, %c0_292, %c0_293] : memref<1x19x16x128xf32, #tpu.memory_space<vmem>>, vector<1x1x13x128xf32>
    %653 = vector.shape_cast %652 : vector<1x1x13x128xf32> to vector<1x13x128xf32>
    %654 = vector.broadcast %636 : vector<1x1x128xf32> to vector<1x13x128xf32>
    %655 = arith.mulf %653, %654 : vector<1x13x128xf32>
    %656 = arith.addf %628, %655 : vector<1x13x128xf32>
    %657 = vector.broadcast %638 : vector<1x1x128xf32> to vector<1x13x128xf32>
    %658 = arith.mulf %653, %657 : vector<1x13x128xf32>
    %659 = arith.addf %649, %658 : vector<1x13x128xf32>
    %c2_i32_294 = arith.constant 2 : i32
    %660 = arith.addi %626, %c2_i32_294 : i32
    %c0_295 = arith.constant 0 : index
    %661 = arith.index_cast %660 : i32 to index
    %c0_296 = arith.constant 0 : index
    %c0_297 = arith.constant 0 : index
    %662 = vector.load %arg3[%c0_295, %661, %c0_296, %c0_297] : memref<1x19x16x128xf32, #tpu.memory_space<vmem>>, vector<1x1x13x128xf32>
    %663 = vector.shape_cast %662 : vector<1x1x13x128xf32> to vector<1x13x128xf32>
    %664 = vector.broadcast %636 : vector<1x1x128xf32> to vector<1x13x128xf32>
    %665 = arith.mulf %663, %664 : vector<1x13x128xf32>
    %666 = arith.addf %629, %665 : vector<1x13x128xf32>
    %667 = vector.broadcast %638 : vector<1x1x128xf32> to vector<1x13x128xf32>
    %668 = arith.mulf %663, %667 : vector<1x13x128xf32>
    %669 = arith.addf %656, %668 : vector<1x13x128xf32>
    %670 = vector.broadcast %640 : vector<1x1x128xf32> to vector<1x13x128xf32>
    %671 = arith.mulf %663, %670 : vector<1x13x128xf32>
    %672 = arith.addf %659, %671 : vector<1x13x128xf32>
    %c3_i32_298 = arith.constant 3 : i32
    %673 = arith.addi %626, %c3_i32_298 : i32
    %c0_299 = arith.constant 0 : index
    %674 = arith.index_cast %673 : i32 to index
    %c0_300 = arith.constant 0 : index
    %c0_301 = arith.constant 0 : index
    %675 = vector.load %arg3[%c0_299, %674, %c0_300, %c0_301] : memref<1x19x16x128xf32, #tpu.memory_space<vmem>>, vector<1x1x13x128xf32>
    %676 = vector.shape_cast %675 : vector<1x1x13x128xf32> to vector<1x13x128xf32>
    %677 = vector.broadcast %636 : vector<1x1x128xf32> to vector<1x13x128xf32>
    %678 = arith.mulf %676, %677 : vector<1x13x128xf32>
    %679 = arith.addf %630, %678 : vector<1x13x128xf32>
    %680 = vector.broadcast %638 : vector<1x1x128xf32> to vector<1x13x128xf32>
    %681 = arith.mulf %676, %680 : vector<1x13x128xf32>
    %682 = arith.addf %666, %681 : vector<1x13x128xf32>
    %683 = vector.broadcast %640 : vector<1x1x128xf32> to vector<1x13x128xf32>
    %684 = arith.mulf %676, %683 : vector<1x13x128xf32>
    %685 = arith.addf %669, %684 : vector<1x13x128xf32>
    %686 = vector.broadcast %642 : vector<1x1x128xf32> to vector<1x13x128xf32>
    %687 = arith.mulf %676, %686 : vector<1x13x128xf32>
    %688 = arith.addf %672, %687 : vector<1x13x128xf32>
    %c4_i32_302 = arith.constant 4 : i32
    %689 = arith.addi %626, %c4_i32_302 : i32
    %c0_303 = arith.constant 0 : index
    %690 = arith.index_cast %689 : i32 to index
    %c0_304 = arith.constant 0 : index
    %c0_305 = arith.constant 0 : index
    %691 = vector.load %arg3[%c0_303, %690, %c0_304, %c0_305] : memref<1x19x16x128xf32, #tpu.memory_space<vmem>>, vector<1x1x13x128xf32>
    %692 = vector.shape_cast %691 : vector<1x1x13x128xf32> to vector<1x13x128xf32>
    %693 = vector.broadcast %636 : vector<1x1x128xf32> to vector<1x13x128xf32>
    %694 = arith.mulf %692, %693 : vector<1x13x128xf32>
    %695 = arith.addf %631, %694 : vector<1x13x128xf32>
    %696 = vector.broadcast %638 : vector<1x1x128xf32> to vector<1x13x128xf32>
    %697 = arith.mulf %692, %696 : vector<1x13x128xf32>
    %698 = arith.addf %679, %697 : vector<1x13x128xf32>
    %699 = vector.broadcast %640 : vector<1x1x128xf32> to vector<1x13x128xf32>
    %700 = arith.mulf %692, %699 : vector<1x13x128xf32>
    %701 = arith.addf %682, %700 : vector<1x13x128xf32>
    %702 = vector.broadcast %642 : vector<1x1x128xf32> to vector<1x13x128xf32>
    %703 = arith.mulf %692, %702 : vector<1x13x128xf32>
    %704 = arith.addf %685, %703 : vector<1x13x128xf32>
    %c5_i32_306 = arith.constant 5 : i32
    %705 = arith.addi %626, %c5_i32_306 : i32
    %c0_307 = arith.constant 0 : index
    %706 = arith.index_cast %705 : i32 to index
    %c0_308 = arith.constant 0 : index
    %c0_309 = arith.constant 0 : index
    %707 = vector.load %arg3[%c0_307, %706, %c0_308, %c0_309] : memref<1x19x16x128xf32, #tpu.memory_space<vmem>>, vector<1x1x13x128xf32>
    %708 = vector.shape_cast %707 : vector<1x1x13x128xf32> to vector<1x13x128xf32>
    %709 = vector.broadcast %636 : vector<1x1x128xf32> to vector<1x13x128xf32>
    %710 = arith.mulf %708, %709 : vector<1x13x128xf32>
    %711 = arith.addf %632, %710 : vector<1x13x128xf32>
    %712 = vector.broadcast %638 : vector<1x1x128xf32> to vector<1x13x128xf32>
    %713 = arith.mulf %708, %712 : vector<1x13x128xf32>
    %714 = arith.addf %695, %713 : vector<1x13x128xf32>
    %715 = vector.broadcast %640 : vector<1x1x128xf32> to vector<1x13x128xf32>
    %716 = arith.mulf %708, %715 : vector<1x13x128xf32>
    %717 = arith.addf %698, %716 : vector<1x13x128xf32>
    %718 = vector.broadcast %642 : vector<1x1x128xf32> to vector<1x13x128xf32>
    %719 = arith.mulf %708, %718 : vector<1x13x128xf32>
    %720 = arith.addf %701, %719 : vector<1x13x128xf32>
    %c6_i32_310 = arith.constant 6 : i32
    %721 = arith.addi %626, %c6_i32_310 : i32
    %c0_311 = arith.constant 0 : index
    %722 = arith.index_cast %721 : i32 to index
    %c0_312 = arith.constant 0 : index
    %c0_313 = arith.constant 0 : index
    %723 = vector.load %arg3[%c0_311, %722, %c0_312, %c0_313] : memref<1x19x16x128xf32, #tpu.memory_space<vmem>>, vector<1x1x13x128xf32>
    %724 = vector.shape_cast %723 : vector<1x1x13x128xf32> to vector<1x13x128xf32>
    %725 = vector.broadcast %636 : vector<1x1x128xf32> to vector<1x13x128xf32>
    %726 = arith.mulf %724, %725 : vector<1x13x128xf32>
    %727 = arith.addf %633, %726 : vector<1x13x128xf32>
    %728 = vector.broadcast %638 : vector<1x1x128xf32> to vector<1x13x128xf32>
    %729 = arith.mulf %724, %728 : vector<1x13x128xf32>
    %730 = arith.addf %711, %729 : vector<1x13x128xf32>
    %731 = vector.broadcast %640 : vector<1x1x128xf32> to vector<1x13x128xf32>
    %732 = arith.mulf %724, %731 : vector<1x13x128xf32>
    %733 = arith.addf %714, %732 : vector<1x13x128xf32>
    %734 = vector.broadcast %642 : vector<1x1x128xf32> to vector<1x13x128xf32>
    %735 = arith.mulf %724, %734 : vector<1x13x128xf32>
    %736 = arith.addf %717, %735 : vector<1x13x128xf32>
    %c7_i32_314 = arith.constant 7 : i32
    %737 = arith.addi %626, %c7_i32_314 : i32
    %c0_315 = arith.constant 0 : index
    %738 = arith.index_cast %737 : i32 to index
    %c0_316 = arith.constant 0 : index
    %c0_317 = arith.constant 0 : index
    %739 = vector.load %arg3[%c0_315, %738, %c0_316, %c0_317] : memref<1x19x16x128xf32, #tpu.memory_space<vmem>>, vector<1x1x13x128xf32>
    %740 = vector.shape_cast %739 : vector<1x1x13x128xf32> to vector<1x13x128xf32>
    %741 = vector.broadcast %636 : vector<1x1x128xf32> to vector<1x13x128xf32>
    %742 = arith.mulf %740, %741 : vector<1x13x128xf32>
    %743 = arith.addf %634, %742 : vector<1x13x128xf32>
    %744 = vector.broadcast %638 : vector<1x1x128xf32> to vector<1x13x128xf32>
    %745 = arith.mulf %740, %744 : vector<1x13x128xf32>
    %746 = arith.addf %727, %745 : vector<1x13x128xf32>
    %747 = vector.broadcast %640 : vector<1x1x128xf32> to vector<1x13x128xf32>
    %748 = arith.mulf %740, %747 : vector<1x13x128xf32>
    %749 = arith.addf %730, %748 : vector<1x13x128xf32>
    %750 = vector.broadcast %642 : vector<1x1x128xf32> to vector<1x13x128xf32>
    %751 = arith.mulf %740, %750 : vector<1x13x128xf32>
    %752 = arith.addf %733, %751 : vector<1x13x128xf32>
    %c8_i32_318 = arith.constant 8 : i32
    %753 = arith.addi %626, %c8_i32_318 : i32
    %c0_319 = arith.constant 0 : index
    %754 = arith.index_cast %753 : i32 to index
    %c0_320 = arith.constant 0 : index
    %c0_321 = arith.constant 0 : index
    %755 = vector.load %arg3[%c0_319, %754, %c0_320, %c0_321] : memref<1x19x16x128xf32, #tpu.memory_space<vmem>>, vector<1x1x13x128xf32>
    %756 = vector.shape_cast %755 : vector<1x1x13x128xf32> to vector<1x13x128xf32>
    %757 = vector.broadcast %638 : vector<1x1x128xf32> to vector<1x13x128xf32>
    %758 = arith.mulf %756, %757 : vector<1x13x128xf32>
    %759 = arith.addf %743, %758 : vector<1x13x128xf32>
    %760 = vector.broadcast %640 : vector<1x1x128xf32> to vector<1x13x128xf32>
    %761 = arith.mulf %756, %760 : vector<1x13x128xf32>
    %762 = arith.addf %746, %761 : vector<1x13x128xf32>
    %763 = vector.broadcast %642 : vector<1x1x128xf32> to vector<1x13x128xf32>
    %764 = arith.mulf %756, %763 : vector<1x13x128xf32>
    %765 = arith.addf %749, %764 : vector<1x13x128xf32>
    %c9_i32_322 = arith.constant 9 : i32
    %766 = arith.addi %626, %c9_i32_322 : i32
    %c0_323 = arith.constant 0 : index
    %767 = arith.index_cast %766 : i32 to index
    %c0_324 = arith.constant 0 : index
    %c0_325 = arith.constant 0 : index
    %768 = vector.load %arg3[%c0_323, %767, %c0_324, %c0_325] : memref<1x19x16x128xf32, #tpu.memory_space<vmem>>, vector<1x1x13x128xf32>
    %769 = vector.shape_cast %768 : vector<1x1x13x128xf32> to vector<1x13x128xf32>
    %770 = vector.broadcast %640 : vector<1x1x128xf32> to vector<1x13x128xf32>
    %771 = arith.mulf %769, %770 : vector<1x13x128xf32>
    %772 = arith.addf %759, %771 : vector<1x13x128xf32>
    %773 = vector.broadcast %642 : vector<1x1x128xf32> to vector<1x13x128xf32>
    %774 = arith.mulf %769, %773 : vector<1x13x128xf32>
    %775 = arith.addf %762, %774 : vector<1x13x128xf32>
    %c10_i32_326 = arith.constant 10 : i32
    %776 = arith.addi %626, %c10_i32_326 : i32
    %c0_327 = arith.constant 0 : index
    %777 = arith.index_cast %776 : i32 to index
    %c0_328 = arith.constant 0 : index
    %c0_329 = arith.constant 0 : index
    %778 = vector.load %arg3[%c0_327, %777, %c0_328, %c0_329] : memref<1x19x16x128xf32, #tpu.memory_space<vmem>>, vector<1x1x13x128xf32>
    %779 = vector.shape_cast %778 : vector<1x1x13x128xf32> to vector<1x13x128xf32>
    %780 = vector.broadcast %642 : vector<1x1x128xf32> to vector<1x13x128xf32>
    %781 = arith.mulf %779, %780 : vector<1x13x128xf32>
    %782 = arith.addf %772, %781 : vector<1x13x128xf32>
    %c0_330 = arith.constant 0 : index
    %c0_331 = arith.constant 0 : index
    %c1_332 = arith.constant 1 : index
    %c0_333 = arith.constant 0 : index
    %783 = vector.load %arg4[%c0_330, %c0_331, %c1_332, %c0_333] : memref<1x4x4x128xf32, #tpu.memory_space<vmem>>, vector<1x1x1x128xf32>
    %784 = vector.shape_cast %783 : vector<1x1x1x128xf32> to vector<1x1x128xf32>
    %c0_334 = arith.constant 0 : index
    %c1_335 = arith.constant 1 : index
    %c1_336 = arith.constant 1 : index
    %c0_337 = arith.constant 0 : index
    %785 = vector.load %arg4[%c0_334, %c1_335, %c1_336, %c0_337] : memref<1x4x4x128xf32, #tpu.memory_space<vmem>>, vector<1x1x1x128xf32>
    %786 = vector.shape_cast %785 : vector<1x1x1x128xf32> to vector<1x1x128xf32>
    %c0_338 = arith.constant 0 : index
    %c2_339 = arith.constant 2 : index
    %c1_340 = arith.constant 1 : index
    %c0_341 = arith.constant 0 : index
    %787 = vector.load %arg4[%c0_338, %c2_339, %c1_340, %c0_341] : memref<1x4x4x128xf32, #tpu.memory_space<vmem>>, vector<1x1x1x128xf32>
    %788 = vector.shape_cast %787 : vector<1x1x1x128xf32> to vector<1x1x128xf32>
    %c0_342 = arith.constant 0 : index
    %c3_343 = arith.constant 3 : index
    %c1_344 = arith.constant 1 : index
    %c0_345 = arith.constant 0 : index
    %789 = vector.load %arg4[%c0_342, %c3_343, %c1_344, %c0_345] : memref<1x4x4x128xf32, #tpu.memory_space<vmem>>, vector<1x1x1x128xf32>
    %790 = vector.shape_cast %789 : vector<1x1x1x128xf32> to vector<1x1x128xf32>
    %c0_i32_346 = arith.constant 0 : i32
    %791 = arith.addi %626, %c0_i32_346 : i32
    %c0_347 = arith.constant 0 : index
    %792 = arith.index_cast %791 : i32 to index
    %c1_348 = arith.constant 1 : index
    %c0_349 = arith.constant 0 : index
    %793 = vector.load %arg3[%c0_347, %792, %c1_348, %c0_349] : memref<1x19x16x128xf32, #tpu.memory_space<vmem>>, vector<1x1x13x128xf32>
    %794 = vector.shape_cast %793 : vector<1x1x13x128xf32> to vector<1x13x128xf32>
    %795 = vector.broadcast %784 : vector<1x1x128xf32> to vector<1x13x128xf32>
    %796 = arith.mulf %794, %795 : vector<1x13x128xf32>
    %797 = arith.addf %688, %796 : vector<1x13x128xf32>
    %c1_i32_350 = arith.constant 1 : i32
    %798 = arith.addi %626, %c1_i32_350 : i32
    %c0_351 = arith.constant 0 : index
    %799 = arith.index_cast %798 : i32 to index
    %c1_352 = arith.constant 1 : index
    %c0_353 = arith.constant 0 : index
    %800 = vector.load %arg3[%c0_351, %799, %c1_352, %c0_353] : memref<1x19x16x128xf32, #tpu.memory_space<vmem>>, vector<1x1x13x128xf32>
    %801 = vector.shape_cast %800 : vector<1x1x13x128xf32> to vector<1x13x128xf32>
    %802 = vector.broadcast %784 : vector<1x1x128xf32> to vector<1x13x128xf32>
    %803 = arith.mulf %801, %802 : vector<1x13x128xf32>
    %804 = arith.addf %704, %803 : vector<1x13x128xf32>
    %805 = vector.broadcast %786 : vector<1x1x128xf32> to vector<1x13x128xf32>
    %806 = arith.mulf %801, %805 : vector<1x13x128xf32>
    %807 = arith.addf %797, %806 : vector<1x13x128xf32>
    %c2_i32_354 = arith.constant 2 : i32
    %808 = arith.addi %626, %c2_i32_354 : i32
    %c0_355 = arith.constant 0 : index
    %809 = arith.index_cast %808 : i32 to index
    %c1_356 = arith.constant 1 : index
    %c0_357 = arith.constant 0 : index
    %810 = vector.load %arg3[%c0_355, %809, %c1_356, %c0_357] : memref<1x19x16x128xf32, #tpu.memory_space<vmem>>, vector<1x1x13x128xf32>
    %811 = vector.shape_cast %810 : vector<1x1x13x128xf32> to vector<1x13x128xf32>
    %812 = vector.broadcast %784 : vector<1x1x128xf32> to vector<1x13x128xf32>
    %813 = arith.mulf %811, %812 : vector<1x13x128xf32>
    %814 = arith.addf %720, %813 : vector<1x13x128xf32>
    %815 = vector.broadcast %786 : vector<1x1x128xf32> to vector<1x13x128xf32>
    %816 = arith.mulf %811, %815 : vector<1x13x128xf32>
    %817 = arith.addf %804, %816 : vector<1x13x128xf32>
    %818 = vector.broadcast %788 : vector<1x1x128xf32> to vector<1x13x128xf32>
    %819 = arith.mulf %811, %818 : vector<1x13x128xf32>
    %820 = arith.addf %807, %819 : vector<1x13x128xf32>
    %c3_i32_358 = arith.constant 3 : i32
    %821 = arith.addi %626, %c3_i32_358 : i32
    %c0_359 = arith.constant 0 : index
    %822 = arith.index_cast %821 : i32 to index
    %c1_360 = arith.constant 1 : index
    %c0_361 = arith.constant 0 : index
    %823 = vector.load %arg3[%c0_359, %822, %c1_360, %c0_361] : memref<1x19x16x128xf32, #tpu.memory_space<vmem>>, vector<1x1x13x128xf32>
    %824 = vector.shape_cast %823 : vector<1x1x13x128xf32> to vector<1x13x128xf32>
    %825 = vector.broadcast %784 : vector<1x1x128xf32> to vector<1x13x128xf32>
    %826 = arith.mulf %824, %825 : vector<1x13x128xf32>
    %827 = arith.addf %736, %826 : vector<1x13x128xf32>
    %828 = vector.broadcast %786 : vector<1x1x128xf32> to vector<1x13x128xf32>
    %829 = arith.mulf %824, %828 : vector<1x13x128xf32>
    %830 = arith.addf %814, %829 : vector<1x13x128xf32>
    %831 = vector.broadcast %788 : vector<1x1x128xf32> to vector<1x13x128xf32>
    %832 = arith.mulf %824, %831 : vector<1x13x128xf32>
    %833 = arith.addf %817, %832 : vector<1x13x128xf32>
    %834 = vector.broadcast %790 : vector<1x1x128xf32> to vector<1x13x128xf32>
    %835 = arith.mulf %824, %834 : vector<1x13x128xf32>
    %836 = arith.addf %820, %835 : vector<1x13x128xf32>
    %c4_i32_362 = arith.constant 4 : i32
    %837 = arith.addi %626, %c4_i32_362 : i32
    %c0_363 = arith.constant 0 : index
    %838 = arith.index_cast %837 : i32 to index
    %c1_364 = arith.constant 1 : index
    %c0_365 = arith.constant 0 : index
    %839 = vector.load %arg3[%c0_363, %838, %c1_364, %c0_365] : memref<1x19x16x128xf32, #tpu.memory_space<vmem>>, vector<1x1x13x128xf32>
    %840 = vector.shape_cast %839 : vector<1x1x13x128xf32> to vector<1x13x128xf32>
    %841 = vector.broadcast %784 : vector<1x1x128xf32> to vector<1x13x128xf32>
    %842 = arith.mulf %840, %841 : vector<1x13x128xf32>
    %843 = arith.addf %752, %842 : vector<1x13x128xf32>
    %844 = vector.broadcast %786 : vector<1x1x128xf32> to vector<1x13x128xf32>
    %845 = arith.mulf %840, %844 : vector<1x13x128xf32>
    %846 = arith.addf %827, %845 : vector<1x13x128xf32>
    %847 = vector.broadcast %788 : vector<1x1x128xf32> to vector<1x13x128xf32>
    %848 = arith.mulf %840, %847 : vector<1x13x128xf32>
    %849 = arith.addf %830, %848 : vector<1x13x128xf32>
    %850 = vector.broadcast %790 : vector<1x1x128xf32> to vector<1x13x128xf32>
    %851 = arith.mulf %840, %850 : vector<1x13x128xf32>
    %852 = arith.addf %833, %851 : vector<1x13x128xf32>
    %c5_i32_366 = arith.constant 5 : i32
    %853 = arith.addi %626, %c5_i32_366 : i32
    %c0_367 = arith.constant 0 : index
    %854 = arith.index_cast %853 : i32 to index
    %c1_368 = arith.constant 1 : index
    %c0_369 = arith.constant 0 : index
    %855 = vector.load %arg3[%c0_367, %854, %c1_368, %c0_369] : memref<1x19x16x128xf32, #tpu.memory_space<vmem>>, vector<1x1x13x128xf32>
    %856 = vector.shape_cast %855 : vector<1x1x13x128xf32> to vector<1x13x128xf32>
    %857 = vector.broadcast %784 : vector<1x1x128xf32> to vector<1x13x128xf32>
    %858 = arith.mulf %856, %857 : vector<1x13x128xf32>
    %859 = arith.addf %765, %858 : vector<1x13x128xf32>
    %860 = vector.broadcast %786 : vector<1x1x128xf32> to vector<1x13x128xf32>
    %861 = arith.mulf %856, %860 : vector<1x13x128xf32>
    %862 = arith.addf %843, %861 : vector<1x13x128xf32>
    %863 = vector.broadcast %788 : vector<1x1x128xf32> to vector<1x13x128xf32>
    %864 = arith.mulf %856, %863 : vector<1x13x128xf32>
    %865 = arith.addf %846, %864 : vector<1x13x128xf32>
    %866 = vector.broadcast %790 : vector<1x1x128xf32> to vector<1x13x128xf32>
    %867 = arith.mulf %856, %866 : vector<1x13x128xf32>
    %868 = arith.addf %849, %867 : vector<1x13x128xf32>
    %c6_i32_370 = arith.constant 6 : i32
    %869 = arith.addi %626, %c6_i32_370 : i32
    %c0_371 = arith.constant 0 : index
    %870 = arith.index_cast %869 : i32 to index
    %c1_372 = arith.constant 1 : index
    %c0_373 = arith.constant 0 : index
    %871 = vector.load %arg3[%c0_371, %870, %c1_372, %c0_373] : memref<1x19x16x128xf32, #tpu.memory_space<vmem>>, vector<1x1x13x128xf32>
    %872 = vector.shape_cast %871 : vector<1x1x13x128xf32> to vector<1x13x128xf32>
    %873 = vector.broadcast %784 : vector<1x1x128xf32> to vector<1x13x128xf32>
    %874 = arith.mulf %872, %873 : vector<1x13x128xf32>
    %875 = arith.addf %775, %874 : vector<1x13x128xf32>
    %876 = vector.broadcast %786 : vector<1x1x128xf32> to vector<1x13x128xf32>
    %877 = arith.mulf %872, %876 : vector<1x13x128xf32>
    %878 = arith.addf %859, %877 : vector<1x13x128xf32>
    %879 = vector.broadcast %788 : vector<1x1x128xf32> to vector<1x13x128xf32>
    %880 = arith.mulf %872, %879 : vector<1x13x128xf32>
    %881 = arith.addf %862, %880 : vector<1x13x128xf32>
    %882 = vector.broadcast %790 : vector<1x1x128xf32> to vector<1x13x128xf32>
    %883 = arith.mulf %872, %882 : vector<1x13x128xf32>
    %884 = arith.addf %865, %883 : vector<1x13x128xf32>
    %c7_i32_374 = arith.constant 7 : i32
    %885 = arith.addi %626, %c7_i32_374 : i32
    %c0_375 = arith.constant 0 : index
    %886 = arith.index_cast %885 : i32 to index
    %c1_376 = arith.constant 1 : index
    %c0_377 = arith.constant 0 : index
    %887 = vector.load %arg3[%c0_375, %886, %c1_376, %c0_377] : memref<1x19x16x128xf32, #tpu.memory_space<vmem>>, vector<1x1x13x128xf32>
    %888 = vector.shape_cast %887 : vector<1x1x13x128xf32> to vector<1x13x128xf32>
    %889 = vector.broadcast %784 : vector<1x1x128xf32> to vector<1x13x128xf32>
    %890 = arith.mulf %888, %889 : vector<1x13x128xf32>
    %891 = arith.addf %782, %890 : vector<1x13x128xf32>
    %892 = vector.broadcast %786 : vector<1x1x128xf32> to vector<1x13x128xf32>
    %893 = arith.mulf %888, %892 : vector<1x13x128xf32>
    %894 = arith.addf %875, %893 : vector<1x13x128xf32>
    %895 = vector.broadcast %788 : vector<1x1x128xf32> to vector<1x13x128xf32>
    %896 = arith.mulf %888, %895 : vector<1x13x128xf32>
    %897 = arith.addf %878, %896 : vector<1x13x128xf32>
    %898 = vector.broadcast %790 : vector<1x1x128xf32> to vector<1x13x128xf32>
    %899 = arith.mulf %888, %898 : vector<1x13x128xf32>
    %900 = arith.addf %881, %899 : vector<1x13x128xf32>
    %c8_i32_378 = arith.constant 8 : i32
    %901 = arith.addi %626, %c8_i32_378 : i32
    %c0_379 = arith.constant 0 : index
    %902 = arith.index_cast %901 : i32 to index
    %c1_380 = arith.constant 1 : index
    %c0_381 = arith.constant 0 : index
    %903 = vector.load %arg3[%c0_379, %902, %c1_380, %c0_381] : memref<1x19x16x128xf32, #tpu.memory_space<vmem>>, vector<1x1x13x128xf32>
    %904 = vector.shape_cast %903 : vector<1x1x13x128xf32> to vector<1x13x128xf32>
    %905 = vector.broadcast %786 : vector<1x1x128xf32> to vector<1x13x128xf32>
    %906 = arith.mulf %904, %905 : vector<1x13x128xf32>
    %907 = arith.addf %891, %906 : vector<1x13x128xf32>
    %908 = vector.broadcast %788 : vector<1x1x128xf32> to vector<1x13x128xf32>
    %909 = arith.mulf %904, %908 : vector<1x13x128xf32>
    %910 = arith.addf %894, %909 : vector<1x13x128xf32>
    %911 = vector.broadcast %790 : vector<1x1x128xf32> to vector<1x13x128xf32>
    %912 = arith.mulf %904, %911 : vector<1x13x128xf32>
    %913 = arith.addf %897, %912 : vector<1x13x128xf32>
    %c9_i32_382 = arith.constant 9 : i32
    %914 = arith.addi %626, %c9_i32_382 : i32
    %c0_383 = arith.constant 0 : index
    %915 = arith.index_cast %914 : i32 to index
    %c1_384 = arith.constant 1 : index
    %c0_385 = arith.constant 0 : index
    %916 = vector.load %arg3[%c0_383, %915, %c1_384, %c0_385] : memref<1x19x16x128xf32, #tpu.memory_space<vmem>>, vector<1x1x13x128xf32>
    %917 = vector.shape_cast %916 : vector<1x1x13x128xf32> to vector<1x13x128xf32>
    %918 = vector.broadcast %788 : vector<1x1x128xf32> to vector<1x13x128xf32>
    %919 = arith.mulf %917, %918 : vector<1x13x128xf32>
    %920 = arith.addf %907, %919 : vector<1x13x128xf32>
    %921 = vector.broadcast %790 : vector<1x1x128xf32> to vector<1x13x128xf32>
    %922 = arith.mulf %917, %921 : vector<1x13x128xf32>
    %923 = arith.addf %910, %922 : vector<1x13x128xf32>
    %c10_i32_386 = arith.constant 10 : i32
    %924 = arith.addi %626, %c10_i32_386 : i32
    %c0_387 = arith.constant 0 : index
    %925 = arith.index_cast %924 : i32 to index
    %c1_388 = arith.constant 1 : index
    %c0_389 = arith.constant 0 : index
    %926 = vector.load %arg3[%c0_387, %925, %c1_388, %c0_389] : memref<1x19x16x128xf32, #tpu.memory_space<vmem>>, vector<1x1x13x128xf32>
    %927 = vector.shape_cast %926 : vector<1x1x13x128xf32> to vector<1x13x128xf32>
    %928 = vector.broadcast %790 : vector<1x1x128xf32> to vector<1x13x128xf32>
    %929 = arith.mulf %927, %928 : vector<1x13x128xf32>
    %930 = arith.addf %920, %929 : vector<1x13x128xf32>
    %c0_390 = arith.constant 0 : index
    %c0_391 = arith.constant 0 : index
    %c2_392 = arith.constant 2 : index
    %c0_393 = arith.constant 0 : index
    %931 = vector.load %arg4[%c0_390, %c0_391, %c2_392, %c0_393] : memref<1x4x4x128xf32, #tpu.memory_space<vmem>>, vector<1x1x1x128xf32>
    %932 = vector.shape_cast %931 : vector<1x1x1x128xf32> to vector<1x1x128xf32>
    %c0_394 = arith.constant 0 : index
    %c1_395 = arith.constant 1 : index
    %c2_396 = arith.constant 2 : index
    %c0_397 = arith.constant 0 : index
    %933 = vector.load %arg4[%c0_394, %c1_395, %c2_396, %c0_397] : memref<1x4x4x128xf32, #tpu.memory_space<vmem>>, vector<1x1x1x128xf32>
    %934 = vector.shape_cast %933 : vector<1x1x1x128xf32> to vector<1x1x128xf32>
    %c0_398 = arith.constant 0 : index
    %c2_399 = arith.constant 2 : index
    %c2_400 = arith.constant 2 : index
    %c0_401 = arith.constant 0 : index
    %935 = vector.load %arg4[%c0_398, %c2_399, %c2_400, %c0_401] : memref<1x4x4x128xf32, #tpu.memory_space<vmem>>, vector<1x1x1x128xf32>
    %936 = vector.shape_cast %935 : vector<1x1x1x128xf32> to vector<1x1x128xf32>
    %c0_402 = arith.constant 0 : index
    %c3_403 = arith.constant 3 : index
    %c2_404 = arith.constant 2 : index
    %c0_405 = arith.constant 0 : index
    %937 = vector.load %arg4[%c0_402, %c3_403, %c2_404, %c0_405] : memref<1x4x4x128xf32, #tpu.memory_space<vmem>>, vector<1x1x1x128xf32>
    %938 = vector.shape_cast %937 : vector<1x1x1x128xf32> to vector<1x1x128xf32>
    %c0_i32_406 = arith.constant 0 : i32
    %939 = arith.addi %626, %c0_i32_406 : i32
    %c0_407 = arith.constant 0 : index
    %940 = arith.index_cast %939 : i32 to index
    %c2_408 = arith.constant 2 : index
    %c0_409 = arith.constant 0 : index
    %941 = vector.load %arg3[%c0_407, %940, %c2_408, %c0_409] : memref<1x19x16x128xf32, #tpu.memory_space<vmem>>, vector<1x1x13x128xf32>
    %942 = vector.shape_cast %941 : vector<1x1x13x128xf32> to vector<1x13x128xf32>
    %943 = vector.broadcast %932 : vector<1x1x128xf32> to vector<1x13x128xf32>
    %944 = arith.mulf %942, %943 : vector<1x13x128xf32>
    %945 = arith.addf %836, %944 : vector<1x13x128xf32>
    %c1_i32_410 = arith.constant 1 : i32
    %946 = arith.addi %626, %c1_i32_410 : i32
    %c0_411 = arith.constant 0 : index
    %947 = arith.index_cast %946 : i32 to index
    %c2_412 = arith.constant 2 : index
    %c0_413 = arith.constant 0 : index
    %948 = vector.load %arg3[%c0_411, %947, %c2_412, %c0_413] : memref<1x19x16x128xf32, #tpu.memory_space<vmem>>, vector<1x1x13x128xf32>
    %949 = vector.shape_cast %948 : vector<1x1x13x128xf32> to vector<1x13x128xf32>
    %950 = vector.broadcast %932 : vector<1x1x128xf32> to vector<1x13x128xf32>
    %951 = arith.mulf %949, %950 : vector<1x13x128xf32>
    %952 = arith.addf %852, %951 : vector<1x13x128xf32>
    %953 = vector.broadcast %934 : vector<1x1x128xf32> to vector<1x13x128xf32>
    %954 = arith.mulf %949, %953 : vector<1x13x128xf32>
    %955 = arith.addf %945, %954 : vector<1x13x128xf32>
    %c2_i32_414 = arith.constant 2 : i32
    %956 = arith.addi %626, %c2_i32_414 : i32
    %c0_415 = arith.constant 0 : index
    %957 = arith.index_cast %956 : i32 to index
    %c2_416 = arith.constant 2 : index
    %c0_417 = arith.constant 0 : index
    %958 = vector.load %arg3[%c0_415, %957, %c2_416, %c0_417] : memref<1x19x16x128xf32, #tpu.memory_space<vmem>>, vector<1x1x13x128xf32>
    %959 = vector.shape_cast %958 : vector<1x1x13x128xf32> to vector<1x13x128xf32>
    %960 = vector.broadcast %932 : vector<1x1x128xf32> to vector<1x13x128xf32>
    %961 = arith.mulf %959, %960 : vector<1x13x128xf32>
    %962 = arith.addf %868, %961 : vector<1x13x128xf32>
    %963 = vector.broadcast %934 : vector<1x1x128xf32> to vector<1x13x128xf32>
    %964 = arith.mulf %959, %963 : vector<1x13x128xf32>
    %965 = arith.addf %952, %964 : vector<1x13x128xf32>
    %966 = vector.broadcast %936 : vector<1x1x128xf32> to vector<1x13x128xf32>
    %967 = arith.mulf %959, %966 : vector<1x13x128xf32>
    %968 = arith.addf %955, %967 : vector<1x13x128xf32>
    %c3_i32_418 = arith.constant 3 : i32
    %969 = arith.addi %626, %c3_i32_418 : i32
    %c0_419 = arith.constant 0 : index
    %970 = arith.index_cast %969 : i32 to index
    %c2_420 = arith.constant 2 : index
    %c0_421 = arith.constant 0 : index
    %971 = vector.load %arg3[%c0_419, %970, %c2_420, %c0_421] : memref<1x19x16x128xf32, #tpu.memory_space<vmem>>, vector<1x1x13x128xf32>
    %972 = vector.shape_cast %971 : vector<1x1x13x128xf32> to vector<1x13x128xf32>
    %973 = vector.broadcast %932 : vector<1x1x128xf32> to vector<1x13x128xf32>
    %974 = arith.mulf %972, %973 : vector<1x13x128xf32>
    %975 = arith.addf %884, %974 : vector<1x13x128xf32>
    %976 = vector.broadcast %934 : vector<1x1x128xf32> to vector<1x13x128xf32>
    %977 = arith.mulf %972, %976 : vector<1x13x128xf32>
    %978 = arith.addf %962, %977 : vector<1x13x128xf32>
    %979 = vector.broadcast %936 : vector<1x1x128xf32> to vector<1x13x128xf32>
    %980 = arith.mulf %972, %979 : vector<1x13x128xf32>
    %981 = arith.addf %965, %980 : vector<1x13x128xf32>
    %982 = vector.broadcast %938 : vector<1x1x128xf32> to vector<1x13x128xf32>
    %983 = arith.mulf %972, %982 : vector<1x13x128xf32>
    %984 = arith.addf %968, %983 : vector<1x13x128xf32>
    %c4_i32_422 = arith.constant 4 : i32
    %985 = arith.addi %626, %c4_i32_422 : i32
    %c0_423 = arith.constant 0 : index
    %986 = arith.index_cast %985 : i32 to index
    %c2_424 = arith.constant 2 : index
    %c0_425 = arith.constant 0 : index
    %987 = vector.load %arg3[%c0_423, %986, %c2_424, %c0_425] : memref<1x19x16x128xf32, #tpu.memory_space<vmem>>, vector<1x1x13x128xf32>
    %988 = vector.shape_cast %987 : vector<1x1x13x128xf32> to vector<1x13x128xf32>
    %989 = vector.broadcast %932 : vector<1x1x128xf32> to vector<1x13x128xf32>
    %990 = arith.mulf %988, %989 : vector<1x13x128xf32>
    %991 = arith.addf %900, %990 : vector<1x13x128xf32>
    %992 = vector.broadcast %934 : vector<1x1x128xf32> to vector<1x13x128xf32>
    %993 = arith.mulf %988, %992 : vector<1x13x128xf32>
    %994 = arith.addf %975, %993 : vector<1x13x128xf32>
    %995 = vector.broadcast %936 : vector<1x1x128xf32> to vector<1x13x128xf32>
    %996 = arith.mulf %988, %995 : vector<1x13x128xf32>
    %997 = arith.addf %978, %996 : vector<1x13x128xf32>
    %998 = vector.broadcast %938 : vector<1x1x128xf32> to vector<1x13x128xf32>
    %999 = arith.mulf %988, %998 : vector<1x13x128xf32>
    %1000 = arith.addf %981, %999 : vector<1x13x128xf32>
    %c5_i32_426 = arith.constant 5 : i32
    %1001 = arith.addi %626, %c5_i32_426 : i32
    %c0_427 = arith.constant 0 : index
    %1002 = arith.index_cast %1001 : i32 to index
    %c2_428 = arith.constant 2 : index
    %c0_429 = arith.constant 0 : index
    %1003 = vector.load %arg3[%c0_427, %1002, %c2_428, %c0_429] : memref<1x19x16x128xf32, #tpu.memory_space<vmem>>, vector<1x1x13x128xf32>
    %1004 = vector.shape_cast %1003 : vector<1x1x13x128xf32> to vector<1x13x128xf32>
    %1005 = vector.broadcast %932 : vector<1x1x128xf32> to vector<1x13x128xf32>
    %1006 = arith.mulf %1004, %1005 : vector<1x13x128xf32>
    %1007 = arith.addf %913, %1006 : vector<1x13x128xf32>
    %1008 = vector.broadcast %934 : vector<1x1x128xf32> to vector<1x13x128xf32>
    %1009 = arith.mulf %1004, %1008 : vector<1x13x128xf32>
    %1010 = arith.addf %991, %1009 : vector<1x13x128xf32>
    %1011 = vector.broadcast %936 : vector<1x1x128xf32> to vector<1x13x128xf32>
    %1012 = arith.mulf %1004, %1011 : vector<1x13x128xf32>
    %1013 = arith.addf %994, %1012 : vector<1x13x128xf32>
    %1014 = vector.broadcast %938 : vector<1x1x128xf32> to vector<1x13x128xf32>
    %1015 = arith.mulf %1004, %1014 : vector<1x13x128xf32>
    %1016 = arith.addf %997, %1015 : vector<1x13x128xf32>
    %c6_i32_430 = arith.constant 6 : i32
    %1017 = arith.addi %626, %c6_i32_430 : i32
    %c0_431 = arith.constant 0 : index
    %1018 = arith.index_cast %1017 : i32 to index
    %c2_432 = arith.constant 2 : index
    %c0_433 = arith.constant 0 : index
    %1019 = vector.load %arg3[%c0_431, %1018, %c2_432, %c0_433] : memref<1x19x16x128xf32, #tpu.memory_space<vmem>>, vector<1x1x13x128xf32>
    %1020 = vector.shape_cast %1019 : vector<1x1x13x128xf32> to vector<1x13x128xf32>
    %1021 = vector.broadcast %932 : vector<1x1x128xf32> to vector<1x13x128xf32>
    %1022 = arith.mulf %1020, %1021 : vector<1x13x128xf32>
    %1023 = arith.addf %923, %1022 : vector<1x13x128xf32>
    %1024 = vector.broadcast %934 : vector<1x1x128xf32> to vector<1x13x128xf32>
    %1025 = arith.mulf %1020, %1024 : vector<1x13x128xf32>
    %1026 = arith.addf %1007, %1025 : vector<1x13x128xf32>
    %1027 = vector.broadcast %936 : vector<1x1x128xf32> to vector<1x13x128xf32>
    %1028 = arith.mulf %1020, %1027 : vector<1x13x128xf32>
    %1029 = arith.addf %1010, %1028 : vector<1x13x128xf32>
    %1030 = vector.broadcast %938 : vector<1x1x128xf32> to vector<1x13x128xf32>
    %1031 = arith.mulf %1020, %1030 : vector<1x13x128xf32>
    %1032 = arith.addf %1013, %1031 : vector<1x13x128xf32>
    %c7_i32_434 = arith.constant 7 : i32
    %1033 = arith.addi %626, %c7_i32_434 : i32
    %c0_435 = arith.constant 0 : index
    %1034 = arith.index_cast %1033 : i32 to index
    %c2_436 = arith.constant 2 : index
    %c0_437 = arith.constant 0 : index
    %1035 = vector.load %arg3[%c0_435, %1034, %c2_436, %c0_437] : memref<1x19x16x128xf32, #tpu.memory_space<vmem>>, vector<1x1x13x128xf32>
    %1036 = vector.shape_cast %1035 : vector<1x1x13x128xf32> to vector<1x13x128xf32>
    %1037 = vector.broadcast %932 : vector<1x1x128xf32> to vector<1x13x128xf32>
    %1038 = arith.mulf %1036, %1037 : vector<1x13x128xf32>
    %1039 = arith.addf %930, %1038 : vector<1x13x128xf32>
    %1040 = vector.broadcast %934 : vector<1x1x128xf32> to vector<1x13x128xf32>
    %1041 = arith.mulf %1036, %1040 : vector<1x13x128xf32>
    %1042 = arith.addf %1023, %1041 : vector<1x13x128xf32>
    %1043 = vector.broadcast %936 : vector<1x1x128xf32> to vector<1x13x128xf32>
    %1044 = arith.mulf %1036, %1043 : vector<1x13x128xf32>
    %1045 = arith.addf %1026, %1044 : vector<1x13x128xf32>
    %1046 = vector.broadcast %938 : vector<1x1x128xf32> to vector<1x13x128xf32>
    %1047 = arith.mulf %1036, %1046 : vector<1x13x128xf32>
    %1048 = arith.addf %1029, %1047 : vector<1x13x128xf32>
    %c8_i32_438 = arith.constant 8 : i32
    %1049 = arith.addi %626, %c8_i32_438 : i32
    %c0_439 = arith.constant 0 : index
    %1050 = arith.index_cast %1049 : i32 to index
    %c2_440 = arith.constant 2 : index
    %c0_441 = arith.constant 0 : index
    %1051 = vector.load %arg3[%c0_439, %1050, %c2_440, %c0_441] : memref<1x19x16x128xf32, #tpu.memory_space<vmem>>, vector<1x1x13x128xf32>
    %1052 = vector.shape_cast %1051 : vector<1x1x13x128xf32> to vector<1x13x128xf32>
    %1053 = vector.broadcast %934 : vector<1x1x128xf32> to vector<1x13x128xf32>
    %1054 = arith.mulf %1052, %1053 : vector<1x13x128xf32>
    %1055 = arith.addf %1039, %1054 : vector<1x13x128xf32>
    %1056 = vector.broadcast %936 : vector<1x1x128xf32> to vector<1x13x128xf32>
    %1057 = arith.mulf %1052, %1056 : vector<1x13x128xf32>
    %1058 = arith.addf %1042, %1057 : vector<1x13x128xf32>
    %1059 = vector.broadcast %938 : vector<1x1x128xf32> to vector<1x13x128xf32>
    %1060 = arith.mulf %1052, %1059 : vector<1x13x128xf32>
    %1061 = arith.addf %1045, %1060 : vector<1x13x128xf32>
    %c9_i32_442 = arith.constant 9 : i32
    %1062 = arith.addi %626, %c9_i32_442 : i32
    %c0_443 = arith.constant 0 : index
    %1063 = arith.index_cast %1062 : i32 to index
    %c2_444 = arith.constant 2 : index
    %c0_445 = arith.constant 0 : index
    %1064 = vector.load %arg3[%c0_443, %1063, %c2_444, %c0_445] : memref<1x19x16x128xf32, #tpu.memory_space<vmem>>, vector<1x1x13x128xf32>
    %1065 = vector.shape_cast %1064 : vector<1x1x13x128xf32> to vector<1x13x128xf32>
    %1066 = vector.broadcast %936 : vector<1x1x128xf32> to vector<1x13x128xf32>
    %1067 = arith.mulf %1065, %1066 : vector<1x13x128xf32>
    %1068 = arith.addf %1055, %1067 : vector<1x13x128xf32>
    %1069 = vector.broadcast %938 : vector<1x1x128xf32> to vector<1x13x128xf32>
    %1070 = arith.mulf %1065, %1069 : vector<1x13x128xf32>
    %1071 = arith.addf %1058, %1070 : vector<1x13x128xf32>
    %c10_i32_446 = arith.constant 10 : i32
    %1072 = arith.addi %626, %c10_i32_446 : i32
    %c0_447 = arith.constant 0 : index
    %1073 = arith.index_cast %1072 : i32 to index
    %c2_448 = arith.constant 2 : index
    %c0_449 = arith.constant 0 : index
    %1074 = vector.load %arg3[%c0_447, %1073, %c2_448, %c0_449] : memref<1x19x16x128xf32, #tpu.memory_space<vmem>>, vector<1x1x13x128xf32>
    %1075 = vector.shape_cast %1074 : vector<1x1x13x128xf32> to vector<1x13x128xf32>
    %1076 = vector.broadcast %938 : vector<1x1x128xf32> to vector<1x13x128xf32>
    %1077 = arith.mulf %1075, %1076 : vector<1x13x128xf32>
    %1078 = arith.addf %1068, %1077 : vector<1x13x128xf32>
    %c0_450 = arith.constant 0 : index
    %c0_451 = arith.constant 0 : index
    %c3_452 = arith.constant 3 : index
    %c0_453 = arith.constant 0 : index
    %1079 = vector.load %arg4[%c0_450, %c0_451, %c3_452, %c0_453] : memref<1x4x4x128xf32, #tpu.memory_space<vmem>>, vector<1x1x1x128xf32>
    %1080 = vector.shape_cast %1079 : vector<1x1x1x128xf32> to vector<1x1x128xf32>
    %c0_454 = arith.constant 0 : index
    %c1_455 = arith.constant 1 : index
    %c3_456 = arith.constant 3 : index
    %c0_457 = arith.constant 0 : index
    %1081 = vector.load %arg4[%c0_454, %c1_455, %c3_456, %c0_457] : memref<1x4x4x128xf32, #tpu.memory_space<vmem>>, vector<1x1x1x128xf32>
    %1082 = vector.shape_cast %1081 : vector<1x1x1x128xf32> to vector<1x1x128xf32>
    %c0_458 = arith.constant 0 : index
    %c2_459 = arith.constant 2 : index
    %c3_460 = arith.constant 3 : index
    %c0_461 = arith.constant 0 : index
    %1083 = vector.load %arg4[%c0_458, %c2_459, %c3_460, %c0_461] : memref<1x4x4x128xf32, #tpu.memory_space<vmem>>, vector<1x1x1x128xf32>
    %1084 = vector.shape_cast %1083 : vector<1x1x1x128xf32> to vector<1x1x128xf32>
    %c0_462 = arith.constant 0 : index
    %c3_463 = arith.constant 3 : index
    %c3_464 = arith.constant 3 : index
    %c0_465 = arith.constant 0 : index
    %1085 = vector.load %arg4[%c0_462, %c3_463, %c3_464, %c0_465] : memref<1x4x4x128xf32, #tpu.memory_space<vmem>>, vector<1x1x1x128xf32>
    %1086 = vector.shape_cast %1085 : vector<1x1x1x128xf32> to vector<1x1x128xf32>
    %c0_i32_466 = arith.constant 0 : i32
    %1087 = arith.addi %626, %c0_i32_466 : i32
    %c0_467 = arith.constant 0 : index
    %1088 = arith.index_cast %1087 : i32 to index
    %c3_468 = arith.constant 3 : index
    %c0_469 = arith.constant 0 : index
    %1089 = vector.load %arg3[%c0_467, %1088, %c3_468, %c0_469] : memref<1x19x16x128xf32, #tpu.memory_space<vmem>>, vector<1x1x13x128xf32>
    %1090 = vector.shape_cast %1089 : vector<1x1x13x128xf32> to vector<1x13x128xf32>
    %1091 = vector.broadcast %1080 : vector<1x1x128xf32> to vector<1x13x128xf32>
    %1092 = arith.mulf %1090, %1091 : vector<1x13x128xf32>
    %1093 = arith.addf %984, %1092 : vector<1x13x128xf32>
    %c1_i32_470 = arith.constant 1 : i32
    %1094 = arith.addi %626, %c1_i32_470 : i32
    %c0_471 = arith.constant 0 : index
    %1095 = arith.index_cast %1094 : i32 to index
    %c3_472 = arith.constant 3 : index
    %c0_473 = arith.constant 0 : index
    %1096 = vector.load %arg3[%c0_471, %1095, %c3_472, %c0_473] : memref<1x19x16x128xf32, #tpu.memory_space<vmem>>, vector<1x1x13x128xf32>
    %1097 = vector.shape_cast %1096 : vector<1x1x13x128xf32> to vector<1x13x128xf32>
    %1098 = vector.broadcast %1080 : vector<1x1x128xf32> to vector<1x13x128xf32>
    %1099 = arith.mulf %1097, %1098 : vector<1x13x128xf32>
    %1100 = arith.addf %1000, %1099 : vector<1x13x128xf32>
    %1101 = vector.broadcast %1082 : vector<1x1x128xf32> to vector<1x13x128xf32>
    %1102 = arith.mulf %1097, %1101 : vector<1x13x128xf32>
    %1103 = arith.addf %1093, %1102 : vector<1x13x128xf32>
    %c2_i32_474 = arith.constant 2 : i32
    %1104 = arith.addi %626, %c2_i32_474 : i32
    %c0_475 = arith.constant 0 : index
    %1105 = arith.index_cast %1104 : i32 to index
    %c3_476 = arith.constant 3 : index
    %c0_477 = arith.constant 0 : index
    %1106 = vector.load %arg3[%c0_475, %1105, %c3_476, %c0_477] : memref<1x19x16x128xf32, #tpu.memory_space<vmem>>, vector<1x1x13x128xf32>
    %1107 = vector.shape_cast %1106 : vector<1x1x13x128xf32> to vector<1x13x128xf32>
    %1108 = vector.broadcast %1080 : vector<1x1x128xf32> to vector<1x13x128xf32>
    %1109 = arith.mulf %1107, %1108 : vector<1x13x128xf32>
    %1110 = arith.addf %1016, %1109 : vector<1x13x128xf32>
    %1111 = vector.broadcast %1082 : vector<1x1x128xf32> to vector<1x13x128xf32>
    %1112 = arith.mulf %1107, %1111 : vector<1x13x128xf32>
    %1113 = arith.addf %1100, %1112 : vector<1x13x128xf32>
    %1114 = vector.broadcast %1084 : vector<1x1x128xf32> to vector<1x13x128xf32>
    %1115 = arith.mulf %1107, %1114 : vector<1x13x128xf32>
    %1116 = arith.addf %1103, %1115 : vector<1x13x128xf32>
    %c3_i32_478 = arith.constant 3 : i32
    %1117 = arith.addi %626, %c3_i32_478 : i32
    %c0_479 = arith.constant 0 : index
    %1118 = arith.index_cast %1117 : i32 to index
    %c3_480 = arith.constant 3 : index
    %c0_481 = arith.constant 0 : index
    %1119 = vector.load %arg3[%c0_479, %1118, %c3_480, %c0_481] : memref<1x19x16x128xf32, #tpu.memory_space<vmem>>, vector<1x1x13x128xf32>
    %1120 = vector.shape_cast %1119 : vector<1x1x13x128xf32> to vector<1x13x128xf32>
    %1121 = vector.broadcast %1080 : vector<1x1x128xf32> to vector<1x13x128xf32>
    %1122 = arith.mulf %1120, %1121 : vector<1x13x128xf32>
    %1123 = arith.addf %1032, %1122 : vector<1x13x128xf32>
    %1124 = vector.broadcast %1082 : vector<1x1x128xf32> to vector<1x13x128xf32>
    %1125 = arith.mulf %1120, %1124 : vector<1x13x128xf32>
    %1126 = arith.addf %1110, %1125 : vector<1x13x128xf32>
    %1127 = vector.broadcast %1084 : vector<1x1x128xf32> to vector<1x13x128xf32>
    %1128 = arith.mulf %1120, %1127 : vector<1x13x128xf32>
    %1129 = arith.addf %1113, %1128 : vector<1x13x128xf32>
    %1130 = vector.broadcast %1086 : vector<1x1x128xf32> to vector<1x13x128xf32>
    %1131 = arith.mulf %1120, %1130 : vector<1x13x128xf32>
    %1132 = arith.addf %1116, %1131 : vector<1x13x128xf32>
    %c4_i32_482 = arith.constant 4 : i32
    %1133 = arith.addi %626, %c4_i32_482 : i32
    %c0_483 = arith.constant 0 : index
    %1134 = arith.index_cast %1133 : i32 to index
    %c3_484 = arith.constant 3 : index
    %c0_485 = arith.constant 0 : index
    %1135 = vector.load %arg3[%c0_483, %1134, %c3_484, %c0_485] : memref<1x19x16x128xf32, #tpu.memory_space<vmem>>, vector<1x1x13x128xf32>
    %1136 = vector.shape_cast %1135 : vector<1x1x13x128xf32> to vector<1x13x128xf32>
    %1137 = vector.broadcast %1080 : vector<1x1x128xf32> to vector<1x13x128xf32>
    %1138 = arith.mulf %1136, %1137 : vector<1x13x128xf32>
    %1139 = arith.addf %1048, %1138 : vector<1x13x128xf32>
    %1140 = vector.broadcast %1082 : vector<1x1x128xf32> to vector<1x13x128xf32>
    %1141 = arith.mulf %1136, %1140 : vector<1x13x128xf32>
    %1142 = arith.addf %1123, %1141 : vector<1x13x128xf32>
    %1143 = vector.broadcast %1084 : vector<1x1x128xf32> to vector<1x13x128xf32>
    %1144 = arith.mulf %1136, %1143 : vector<1x13x128xf32>
    %1145 = arith.addf %1126, %1144 : vector<1x13x128xf32>
    %1146 = vector.broadcast %1086 : vector<1x1x128xf32> to vector<1x13x128xf32>
    %1147 = arith.mulf %1136, %1146 : vector<1x13x128xf32>
    %1148 = arith.addf %1129, %1147 : vector<1x13x128xf32>
    %c5_i32_486 = arith.constant 5 : i32
    %1149 = arith.addi %626, %c5_i32_486 : i32
    %c0_487 = arith.constant 0 : index
    %1150 = arith.index_cast %1149 : i32 to index
    %c3_488 = arith.constant 3 : index
    %c0_489 = arith.constant 0 : index
    %1151 = vector.load %arg3[%c0_487, %1150, %c3_488, %c0_489] : memref<1x19x16x128xf32, #tpu.memory_space<vmem>>, vector<1x1x13x128xf32>
    %1152 = vector.shape_cast %1151 : vector<1x1x13x128xf32> to vector<1x13x128xf32>
    %1153 = vector.broadcast %1080 : vector<1x1x128xf32> to vector<1x13x128xf32>
    %1154 = arith.mulf %1152, %1153 : vector<1x13x128xf32>
    %1155 = arith.addf %1061, %1154 : vector<1x13x128xf32>
    %1156 = vector.broadcast %1082 : vector<1x1x128xf32> to vector<1x13x128xf32>
    %1157 = arith.mulf %1152, %1156 : vector<1x13x128xf32>
    %1158 = arith.addf %1139, %1157 : vector<1x13x128xf32>
    %1159 = vector.broadcast %1084 : vector<1x1x128xf32> to vector<1x13x128xf32>
    %1160 = arith.mulf %1152, %1159 : vector<1x13x128xf32>
    %1161 = arith.addf %1142, %1160 : vector<1x13x128xf32>
    %1162 = vector.broadcast %1086 : vector<1x1x128xf32> to vector<1x13x128xf32>
    %1163 = arith.mulf %1152, %1162 : vector<1x13x128xf32>
    %1164 = arith.addf %1145, %1163 : vector<1x13x128xf32>
    %c6_i32_490 = arith.constant 6 : i32
    %1165 = arith.addi %626, %c6_i32_490 : i32
    %c0_491 = arith.constant 0 : index
    %1166 = arith.index_cast %1165 : i32 to index
    %c3_492 = arith.constant 3 : index
    %c0_493 = arith.constant 0 : index
    %1167 = vector.load %arg3[%c0_491, %1166, %c3_492, %c0_493] : memref<1x19x16x128xf32, #tpu.memory_space<vmem>>, vector<1x1x13x128xf32>
    %1168 = vector.shape_cast %1167 : vector<1x1x13x128xf32> to vector<1x13x128xf32>
    %1169 = vector.broadcast %1080 : vector<1x1x128xf32> to vector<1x13x128xf32>
    %1170 = arith.mulf %1168, %1169 : vector<1x13x128xf32>
    %1171 = arith.addf %1071, %1170 : vector<1x13x128xf32>
    %1172 = vector.broadcast %1082 : vector<1x1x128xf32> to vector<1x13x128xf32>
    %1173 = arith.mulf %1168, %1172 : vector<1x13x128xf32>
    %1174 = arith.addf %1155, %1173 : vector<1x13x128xf32>
    %1175 = vector.broadcast %1084 : vector<1x1x128xf32> to vector<1x13x128xf32>
    %1176 = arith.mulf %1168, %1175 : vector<1x13x128xf32>
    %1177 = arith.addf %1158, %1176 : vector<1x13x128xf32>
    %1178 = vector.broadcast %1086 : vector<1x1x128xf32> to vector<1x13x128xf32>
    %1179 = arith.mulf %1168, %1178 : vector<1x13x128xf32>
    %1180 = arith.addf %1161, %1179 : vector<1x13x128xf32>
    %c7_i32_494 = arith.constant 7 : i32
    %1181 = arith.addi %626, %c7_i32_494 : i32
    %c0_495 = arith.constant 0 : index
    %1182 = arith.index_cast %1181 : i32 to index
    %c3_496 = arith.constant 3 : index
    %c0_497 = arith.constant 0 : index
    %1183 = vector.load %arg3[%c0_495, %1182, %c3_496, %c0_497] : memref<1x19x16x128xf32, #tpu.memory_space<vmem>>, vector<1x1x13x128xf32>
    %1184 = vector.shape_cast %1183 : vector<1x1x13x128xf32> to vector<1x13x128xf32>
    %1185 = vector.broadcast %1080 : vector<1x1x128xf32> to vector<1x13x128xf32>
    %1186 = arith.mulf %1184, %1185 : vector<1x13x128xf32>
    %1187 = arith.addf %1078, %1186 : vector<1x13x128xf32>
    %1188 = vector.broadcast %1082 : vector<1x1x128xf32> to vector<1x13x128xf32>
    %1189 = arith.mulf %1184, %1188 : vector<1x13x128xf32>
    %1190 = arith.addf %1171, %1189 : vector<1x13x128xf32>
    %1191 = vector.broadcast %1084 : vector<1x1x128xf32> to vector<1x13x128xf32>
    %1192 = arith.mulf %1184, %1191 : vector<1x13x128xf32>
    %1193 = arith.addf %1174, %1192 : vector<1x13x128xf32>
    %1194 = vector.broadcast %1086 : vector<1x1x128xf32> to vector<1x13x128xf32>
    %1195 = arith.mulf %1184, %1194 : vector<1x13x128xf32>
    %1196 = arith.addf %1177, %1195 : vector<1x13x128xf32>
    %c8_i32_498 = arith.constant 8 : i32
    %1197 = arith.addi %626, %c8_i32_498 : i32
    %c0_499 = arith.constant 0 : index
    %1198 = arith.index_cast %1197 : i32 to index
    %c3_500 = arith.constant 3 : index
    %c0_501 = arith.constant 0 : index
    %1199 = vector.load %arg3[%c0_499, %1198, %c3_500, %c0_501] : memref<1x19x16x128xf32, #tpu.memory_space<vmem>>, vector<1x1x13x128xf32>
    %1200 = vector.shape_cast %1199 : vector<1x1x13x128xf32> to vector<1x13x128xf32>
    %1201 = vector.broadcast %1082 : vector<1x1x128xf32> to vector<1x13x128xf32>
    %1202 = arith.mulf %1200, %1201 : vector<1x13x128xf32>
    %1203 = arith.addf %1187, %1202 : vector<1x13x128xf32>
    %1204 = vector.broadcast %1084 : vector<1x1x128xf32> to vector<1x13x128xf32>
    %1205 = arith.mulf %1200, %1204 : vector<1x13x128xf32>
    %1206 = arith.addf %1190, %1205 : vector<1x13x128xf32>
    %1207 = vector.broadcast %1086 : vector<1x1x128xf32> to vector<1x13x128xf32>
    %1208 = arith.mulf %1200, %1207 : vector<1x13x128xf32>
    %1209 = arith.addf %1193, %1208 : vector<1x13x128xf32>
    %c9_i32_502 = arith.constant 9 : i32
    %1210 = arith.addi %626, %c9_i32_502 : i32
    %c0_503 = arith.constant 0 : index
    %1211 = arith.index_cast %1210 : i32 to index
    %c3_504 = arith.constant 3 : index
    %c0_505 = arith.constant 0 : index
    %1212 = vector.load %arg3[%c0_503, %1211, %c3_504, %c0_505] : memref<1x19x16x128xf32, #tpu.memory_space<vmem>>, vector<1x1x13x128xf32>
    %1213 = vector.shape_cast %1212 : vector<1x1x13x128xf32> to vector<1x13x128xf32>
    %1214 = vector.broadcast %1084 : vector<1x1x128xf32> to vector<1x13x128xf32>
    %1215 = arith.mulf %1213, %1214 : vector<1x13x128xf32>
    %1216 = arith.addf %1203, %1215 : vector<1x13x128xf32>
    %1217 = vector.broadcast %1086 : vector<1x1x128xf32> to vector<1x13x128xf32>
    %1218 = arith.mulf %1213, %1217 : vector<1x13x128xf32>
    %1219 = arith.addf %1206, %1218 : vector<1x13x128xf32>
    %c10_i32_506 = arith.constant 10 : i32
    %1220 = arith.addi %626, %c10_i32_506 : i32
    %c0_507 = arith.constant 0 : index
    %1221 = arith.index_cast %1220 : i32 to index
    %c3_508 = arith.constant 3 : index
    %c0_509 = arith.constant 0 : index
    %1222 = vector.load %arg3[%c0_507, %1221, %c3_508, %c0_509] : memref<1x19x16x128xf32, #tpu.memory_space<vmem>>, vector<1x1x13x128xf32>
    %1223 = vector.shape_cast %1222 : vector<1x1x13x128xf32> to vector<1x13x128xf32>
    %1224 = vector.broadcast %1086 : vector<1x1x128xf32> to vector<1x13x128xf32>
    %1225 = arith.mulf %1223, %1224 : vector<1x13x128xf32>
    %1226 = arith.addf %1216, %1225 : vector<1x13x128xf32>
    %c0_510 = arith.constant 0 : index
    %c8 = arith.constant 8 : index
    %c0_511 = arith.constant 0 : index
    %c0_512 = arith.constant 0 : index
    %1227 = vector.load %arg5[%c0_510, %c8, %c0_511, %c0_512] : memref<1x16x13x128xf32, #tpu.memory_space<vmem>>, vector<1x1x13x128xf32>
    %1228 = vector.shape_cast %1227 : vector<1x1x13x128xf32> to vector<1x13x128xf32>
    %1229 = vector.shape_cast %1132 : vector<1x13x128xf32> to vector<1x1x13x128xf32>
    tpu.vector_store %arg5[%c0_510, %c8, %c0_511, %c0_512], %1229 {strides = array<i32>} : memref<1x16x13x128xf32, #tpu.memory_space<vmem>>, vector<1x1x13x128xf32>,
    %c0_513 = arith.constant 0 : index
    %c9 = arith.constant 9 : index
    %c0_514 = arith.constant 0 : index
    %c0_515 = arith.constant 0 : index
    %1230 = vector.load %arg5[%c0_513, %c9, %c0_514, %c0_515] : memref<1x16x13x128xf32, #tpu.memory_space<vmem>>, vector<1x1x13x128xf32>
    %1231 = vector.shape_cast %1230 : vector<1x1x13x128xf32> to vector<1x13x128xf32>
    %1232 = vector.shape_cast %1148 : vector<1x13x128xf32> to vector<1x1x13x128xf32>
    tpu.vector_store %arg5[%c0_513, %c9, %c0_514, %c0_515], %1232 {strides = array<i32>} : memref<1x16x13x128xf32, #tpu.memory_space<vmem>>, vector<1x1x13x128xf32>,
    %c0_516 = arith.constant 0 : index
    %c10 = arith.constant 10 : index
    %c0_517 = arith.constant 0 : index
    %c0_518 = arith.constant 0 : index
    %1233 = vector.load %arg5[%c0_516, %c10, %c0_517, %c0_518] : memref<1x16x13x128xf32, #tpu.memory_space<vmem>>, vector<1x1x13x128xf32>
    %1234 = vector.shape_cast %1233 : vector<1x1x13x128xf32> to vector<1x13x128xf32>
    %1235 = vector.shape_cast %1164 : vector<1x13x128xf32> to vector<1x1x13x128xf32>
    tpu.vector_store %arg5[%c0_516, %c10, %c0_517, %c0_518], %1235 {strides = array<i32>} : memref<1x16x13x128xf32, #tpu.memory_space<vmem>>, vector<1x1x13x128xf32>,
    %c0_519 = arith.constant 0 : index
    %c11 = arith.constant 11 : index
    %c0_520 = arith.constant 0 : index
    %c0_521 = arith.constant 0 : index
    %1236 = vector.load %arg5[%c0_519, %c11, %c0_520, %c0_521] : memref<1x16x13x128xf32, #tpu.memory_space<vmem>>, vector<1x1x13x128xf32>
    %1237 = vector.shape_cast %1236 : vector<1x1x13x128xf32> to vector<1x13x128xf32>
    %1238 = vector.shape_cast %1180 : vector<1x13x128xf32> to vector<1x1x13x128xf32>
    tpu.vector_store %arg5[%c0_519, %c11, %c0_520, %c0_521], %1238 {strides = array<i32>} : memref<1x16x13x128xf32, #tpu.memory_space<vmem>>, vector<1x1x13x128xf32>,
    %c0_522 = arith.constant 0 : index
    %c12 = arith.constant 12 : index
    %c0_523 = arith.constant 0 : index
    %c0_524 = arith.constant 0 : index
    %1239 = vector.load %arg5[%c0_522, %c12, %c0_523, %c0_524] : memref<1x16x13x128xf32, #tpu.memory_space<vmem>>, vector<1x1x13x128xf32>
    %1240 = vector.shape_cast %1239 : vector<1x1x13x128xf32> to vector<1x13x128xf32>
    %1241 = vector.shape_cast %1196 : vector<1x13x128xf32> to vector<1x1x13x128xf32>
    tpu.vector_store %arg5[%c0_522, %c12, %c0_523, %c0_524], %1241 {strides = array<i32>} : memref<1x16x13x128xf32, #tpu.memory_space<vmem>>, vector<1x1x13x128xf32>,
    %c0_525 = arith.constant 0 : index
    %c13 = arith.constant 13 : index
    %c0_526 = arith.constant 0 : index
    %c0_527 = arith.constant 0 : index
    %1242 = vector.load %arg5[%c0_525, %c13, %c0_526, %c0_527] : memref<1x16x13x128xf32, #tpu.memory_space<vmem>>, vector<1x1x13x128xf32>
    %1243 = vector.shape_cast %1242 : vector<1x1x13x128xf32> to vector<1x13x128xf32>
    %1244 = vector.shape_cast %1209 : vector<1x13x128xf32> to vector<1x1x13x128xf32>
    tpu.vector_store %arg5[%c0_525, %c13, %c0_526, %c0_527], %1244 {strides = array<i32>} : memref<1x16x13x128xf32, #tpu.memory_space<vmem>>, vector<1x1x13x128xf32>,
    %c0_528 = arith.constant 0 : index
    %c14 = arith.constant 14 : index
    %c0_529 = arith.constant 0 : index
    %c0_530 = arith.constant 0 : index
    %1245 = vector.load %arg5[%c0_528, %c14, %c0_529, %c0_530] : memref<1x16x13x128xf32, #tpu.memory_space<vmem>>, vector<1x1x13x128xf32>
    %1246 = vector.shape_cast %1245 : vector<1x1x13x128xf32> to vector<1x13x128xf32>
    %1247 = vector.shape_cast %1219 : vector<1x13x128xf32> to vector<1x1x13x128xf32>
    tpu.vector_store %arg5[%c0_528, %c14, %c0_529, %c0_530], %1247 {strides = array<i32>} : memref<1x16x13x128xf32, #tpu.memory_space<vmem>>, vector<1x1x13x128xf32>,
    %c0_531 = arith.constant 0 : index
    %c15 = arith.constant 15 : index
    %c0_532 = arith.constant 0 : index
    %c0_533 = arith.constant 0 : index
    %1248 = vector.load %arg5[%c0_531, %c15, %c0_532, %c0_533] : memref<1x16x13x128xf32, #tpu.memory_space<vmem>>, vector<1x1x13x128xf32>
    %1249 = vector.shape_cast %1248 : vector<1x1x13x128xf32> to vector<1x13x128xf32>
    %1250 = vector.shape_cast %1226 : vector<1x13x128xf32> to vector<1x1x13x128xf32>
    tpu.vector_store %arg5[%c0_531, %c15, %c0_532, %c0_533], %1250 {strides = array<i32>} : memref<1x16x13x128xf32, #tpu.memory_space<vmem>>, vector<1x1x13x128xf32>,
    return
  }
  func.func @transform_0(%arg0: i32, %arg1: i32, %arg2: i32) -> (i32, i32, i32, i32) {
    %c0_i32 = arith.constant 0 : i32
    %c0_i32_0 = arith.constant 0 : i32
    %c0_i32_1 = arith.constant 0 : i32
    return %arg0, %c0_i32, %c0_i32_0, %arg1 : i32, i32, i32, i32
  }
  func.func @transform_1(%arg0: i32, %arg1: i32, %arg2: i32) -> (i32, i32, i32, i32) {
    %c0_i32 = arith.constant 0 : i32
    %c0_i32_0 = arith.constant 0 : i32
    %c0_i32_1 = arith.constant 0 : i32
    return %arg0, %c0_i32, %c0_i32_0, %arg1 : i32, i32, i32, i32
  }
  func.func @transform_2(%arg0: i32, %arg1: i32, %arg2: i32) -> (i32, i32, i32, i32) {
    %c0_i32 = arith.constant 0 : i32
    %c0_i32_0 = arith.constant 0 : i32
    return %arg0, %arg2, %c0_i32, %arg1 : i32, i32, i32, i32
  }
}

</mosaic_0001>

<llo_original>
// kernel: ban_xcorr_depthwise_nhwc.1
$region0: #{ban_xcorr_depthwise_nhwc.1}
  #allocation0 [shape = 'u32[]', space=smem, size = 0x4, offset = 0x4, fixed_abs, tag = 'smem constant byte address 0x4 - core index']
  #allocation1 [shape = 'u32[144,128]{1,0:T(1,128)}', space=vmem, size = 0x12000, scoped, tag = 'internal scratch']
  %s0 = inlined_call_operand.vmem [shape: f32[2,19,16,128], index: 0, kind: input, shape index: {}]
  %s1 = inlined_call_operand.vmem [shape: f32[2,4,4,128], index: 1, kind: input, shape index: {}]
  %s2 = inlined_call_operand.vmem [shape: f32[2,16,13,128], index: 2, kind: output, shape index: {}]
  %s3 = sld [smem:[#allocation0]]
  $region41: #{ban_xcorr_depthwise_nhwc.1} parent=0
    _
  %s5 = ssub.s32 1, %s3
  %s6 = scalar_select 0, %s5, %s3
  loop: start=0, step=1, limit=4
  $region2: #{ban_xcorr_depthwise_nhwc.1} parent=0 // loop_pre_header
    _
  $region3: #{ban_xcorr_depthwise_nhwc.1} parent=0 // loop_header
    %s8 = sphi 0, %s12
    %p9 = scmp.ge.s32.totalorder %s8, 4
    %s15 = sphi 0, %s34
    %s16 = sphi 0, %s30
    %s17 = sphi 0, %s26
    %s18 = sphi 0, %s15
    %s19 = sphi 0, %s16
    %s20 = sphi 0, %s17
    %s21 = sphi 0, %s18
    %s22 = sphi 0, %s19
    %s23 = sphi 0, %s20
    %s39 = sphi 0, %s41
    %s42 = sphi 0, %s39
    %s43 = sphi 0, %s42
    %s59 = sphi 0, %s43
    %s67 = sphi 0, %s69
    %s70 = sphi 0, %s67
    %s71 = sphi 0, %s70
    %s87 = sphi 0, %s71
    %s97 = sphi 0, %s99
    %s100 = sphi 0, %s97
    %s101 = sphi 0, %s100
    %s117 = sphi 0, %s101
  $region4: #{ban_xcorr_depthwise_nhwc.1} parent=0 // loop_header_branch
    %11 = sbr.rel (%p9) target = $region8
  $region5: #{ban_xcorr_depthwise_nhwc.1} parent=0 // loop_body
    %s13 = ssub.s32 %s8, 1
    %s14 = ssub.s32 %s8, 2
    %s24 = sadd.s32 1, %s17
    %p25 = scmp.ge.s32.totalorder %s24, 1
    %s26 = scalar_select %p25, 0, %s24
    %s27 = sadd.s32 1, %s16
    %s28 = scalar_select %p25, %s27, %s16
    %p29 = scmp.ge.s32.totalorder %s28, 1
    %s30 = scalar_select %p29, 0, %s28
    %s31 = sadd.s32 1, %s15
    %s32 = scalar_select %p29, %s31, %s15
    %p33 = scmp.ge.s32.totalorder %s32, 2
    %s34 = scalar_select %p33, 0, %s32
    %s35 = ssub.s32 %s15, %s34
    %s36 = ssub.s32 %s16, %s30
    %s37 = sor.u32 %s35, %s36
    %p38 = scmp.eq.s32.totalorder %s37, 0
    %s40 = sadd.s32 %s39, 1
    %s41 = scalar_select %p38, %s39, %s40
    %p44 = pneg %p38
    %p45 = scmp.eq.s32.totalorder %s8, 1
    %p46 = por %p44, %p45
    %p47 = scmp.ne.s32.totalorder %s39, %s42
    %p48 = scmp.eq.s32.totalorder %s8, 0
    %p49 = por %p47, %p48
    %p50 = scmp.ne.s32.totalorder %s39, %s42
    %p51 = scmp.eq.s32.totalorder %s13, 1
    %p52 = por %p50, %p51
    %p53 = scmp.ne.s32.totalorder %s42, %s43
    %p54 = scmp.eq.s32.totalorder %s13, 0
    %p55 = por %p53, %p54
    %p56 = scmp.ne.s32.totalorder %s42, %s43
    %p57 = scmp.eq.s32.totalorder %s14, 1
    %p58 = por %p56, %p57
    %p60 = scmp.ne.s32.totalorder %s43, %s59
    %p61 = scmp.eq.s32.totalorder %s14, 0
    %p62 = por %p60, %p61
    %s63 = ssub.s32 %s15, %s34
    %s64 = ssub.s32 %s16, %s30
    %s65 = sor.u32 %s63, %s64
    %p66 = scmp.eq.s32.totalorder %s65, 0
    %s68 = sadd.s32 %s67, 1
    %s69 = scalar_select %p66, %s67, %s68
    %p72 = pneg %p66
    %p73 = scmp.eq.s32.totalorder %s8, 1
    %p74 = por %p72, %p73
    %p75 = scmp.ne.s32.totalorder %s67, %s70
    %p76 = scmp.eq.s32.totalorder %s8, 0
    %p77 = por %p75, %p76
    %p78 = scmp.ne.s32.totalorder %s67, %s70
    %p79 = scmp.eq.s32.totalorder %s13, 1
    %p80 = por %p78, %p79
    %p81 = scmp.ne.s32.totalorder %s70, %s71
    %p82 = scmp.eq.s32.totalorder %s13, 0
    %p83 = por %p81, %p82
    %p84 = scmp.ne.s32.totalorder %s70, %s71
    %p85 = scmp.eq.s32.totalorder %s14, 1
    %p86 = por %p84, %p85
    %p88 = scmp.ne.s32.totalorder %s71, %s87
    %p89 = scmp.eq.s32.totalorder %s14, 0
    %p90 = por %p88, %p89
    %s91 = ssub.s32 %s15, %s34
    %s92 = ssub.s32 %s17, %s26
    %s93 = sor.u32 %s91, %s92
    %s94 = ssub.s32 %s16, %s30
    %s95 = sor.u32 %s93, %s94
    %p96 = scmp.eq.s32.totalorder %s95, 0
    %s98 = sadd.s32 %s97, 1
    %s99 = scalar_select %p96, %s97, %s98
    %p102 = pneg %p96
    %p103 = scmp.eq.s32.totalorder %s8, 1
    %p104 = por %p102, %p103
    %p105 = scmp.ne.s32.totalorder %s97, %s100
    %p106 = scmp.eq.s32.totalorder %s8, 0
    %p107 = por %p105, %p106
    %p108 = scmp.ne.s32.totalorder %s97, %s100
    %p109 = scmp.eq.s32.totalorder %s13, 1
    %p110 = por %p108, %p109
    %p111 = scmp.ne.s32.totalorder %s100, %s101
    %p112 = scmp.eq.s32.totalorder %s13, 0
    %p113 = por %p111, %p112
    %p114 = scmp.ne.s32.totalorder %s100, %s101
    %p115 = scmp.eq.s32.totalorder %s14, 1
    %p116 = por %p114, %p115
    %p118 = scmp.ne.s32.totalorder %s101, %s117
    %p119 = scmp.eq.s32.totalorder %s14, 0
    %p120 = por %p118, %p119
    %p121 = scmp.le.s32.totalorder 1, %s8
    %p122 = scmp.lt.s32.totalorder %s8, 3
    %p123 = pnand %p121, %p122
    %p124 = pneg %p123
    // Predicated region
    $region9: #{ban_xcorr_depthwise_nhwc.1} parent=5 // pred_check
      _
    $region10: #{ban_xcorr_depthwise_nhwc.1} parent=5 // pred_check_branch
      %126 = sbr.rel (%p123) target = $region12
    $region11: #{ban_xcorr_depthwise_nhwc.1} parent=5 // pred_region
      %s127 = ssub.s32 %s8, 1
    $region12: #{ban_xcorr_depthwise_nhwc.1} parent=5 // pred_fallthru
      _
    %p128 = scmp.lt.s32.totalorder %s8, 2
    // Predicated region
    $region13: #{ban_xcorr_depthwise_nhwc.1} parent=5 // pred_check
      %p129 = pneg %p128
    $region14: #{ban_xcorr_depthwise_nhwc.1} parent=5 // pred_check_branch
      %131 = sbr.rel (%p129) target = $region16
    $region15: #{ban_xcorr_depthwise_nhwc.1} parent=5 // pred_region
      // Predicated region
      $region17: #{ban_xcorr_depthwise_nhwc.1} parent=15 // pred_check
        %p132 = pneg %p49
      $region18: #{ban_xcorr_depthwise_nhwc.1} parent=15 // pred_check_branch
        %134 = sbr.rel (%p132) target = $region20
      $region19: #{ban_xcorr_depthwise_nhwc.1} parent=15 // pred_region
        %p135 = scmp.lt.s32.totalorder %s15, 1
        %s136 = scalar_select %p135, %s15, 1
        %p137 = scmp.lt.s32.totalorder %s16, 0
        %s138 = scalar_select %p137, %s16, 0
        %s139 = smul.addr %s136, 38
        %s140 = sadd.s32 %s138, %s139
        %s141 = smul.addr %s140, 8
        %s142 = scalar_lea.vmem %s0, %s141
      $region20: #{ban_xcorr_depthwise_nhwc.1} parent=15 // pred_fallthru
        _
      // Predicated region
      $region21: #{ban_xcorr_depthwise_nhwc.1} parent=15 // pred_check
        %p143 = pneg %p77
      $region22: #{ban_xcorr_depthwise_nhwc.1} parent=15 // pred_check_branch
        %145 = sbr.rel (%p143) target = $region24
      $region23: #{ban_xcorr_depthwise_nhwc.1} parent=15 // pred_region
        %p146 = scmp.lt.s32.totalorder %s15, 1
        %s147 = scalar_select %p146, %s15, 1
        %p148 = scmp.lt.s32.totalorder %s16, 0
        %s149 = scalar_select %p148, %s16, 0
        %s150 = smul.addr %s147, 4
        %s151 = sadd.s32 %s149, %s150
        %s152 = smul.addr %s151, 4
        %s153 = scalar_lea.vmem %s1, %s152
      $region24: #{ban_xcorr_depthwise_nhwc.1} parent=15 // pred_fallthru
        _
    $region16: #{ban_xcorr_depthwise_nhwc.1} parent=5 // pred_fallthru
      _
    %p154 = scmp.le.s32.totalorder 1, %s8
    %p155 = scmp.lt.s32.totalorder %s8, 3
    %p156 = pnand %p154, %p155
    %p157 = pneg %p156
    // Predicated region
    $region25: #{ban_xcorr_depthwise_nhwc.1} parent=5 // pred_check
      _
    $region26: #{ban_xcorr_depthwise_nhwc.1} parent=5 // pred_check_branch
      %159 = sbr.rel (%p156) target = $region28
    $region27: #{ban_xcorr_depthwise_nhwc.1} parent=5 // pred_region
      %s160 = ssub.s32 %s8, 1
      %p161 = scmp.lt.s32.totalorder %s18, 1
      %s162 = scalar_select %p161, %s18, 1
      %p163 = scmp.lt.s32.totalorder %s19, 0
      %s164 = scalar_select %p163, %s19, 0
      %s165 = smul.addr %s162, 38
      %s166 = sadd.s32 %s164, %s165
      %s167 = smul.addr %s166, 8
      %s168 = scalar_lea.vmem %s0, %s167
      %p169 = pneg %p55
      %p170 = pneg %p52
      %p171 = scmp.lt.s32.totalorder %s18, 1
      %s172 = scalar_select %p171, %s18, 1
      %p173 = scmp.lt.s32.totalorder %s19, 0
      %s174 = scalar_select %p173, %s19, 0
      %s175 = smul.addr %s172, 4
      %s176 = sadd.s32 %s174, %s175
      %s177 = smul.addr %s176, 4
      %s178 = scalar_lea.vmem %s1, %s177
      %p179 = pneg %p83
      %p180 = pneg %p80
      %p181 = pneg %p113
      %p182 = pneg %p110
      %s183 = smul.u32 16, %s20
      %p184 = scmp.lt.s32.totalorder %s18, 1
      %s185 = scalar_select %p184, %s18, 1
      %p186 = scmp.lt.s32.totalorder %s183, 15
      %s187 = scalar_select %p186, %s183, 15
      %p188 = scmp.lt.s32.totalorder %s19, 0
      %s189 = scalar_select %p188, %s19, 0
      %s190 = smul.addr %s187, 2
      %s191 = sadd.s32 %s189, %s190
      %s192 = smul.addr %s185, 32
      %s193 = sadd.s32 %s191, %s192
      %s194 = smul.addr %s193, 8
      %s195 = scalar_lea.vmem %s2, %s194
      %p196 = scmp.lt.s32.totalorder %s18, 1
      %s197 = scalar_select %p196, %s18, 1
      %p198 = scmp.lt.s32.totalorder %s19, 0
      %s199 = scalar_select %p198, %s19, 0
      %s200 = smul.addr %s197, 38
      %s201 = sadd.s32 %s199, %s200
      %s202 = smul.addr %s201, 8
      %s203 = scalar_lea.vmem %s0, %s202
      %p204 = scmp.lt.s32.totalorder %s18, 1
      %s205 = scalar_select %p204, %s18, 1
      %p206 = scmp.lt.s32.totalorder %s19, 0
      %s207 = scalar_select %p206, %s19, 0
      %s208 = smul.addr %s205, 4
      %s209 = sadd.s32 %s207, %s208
      %s210 = smul.addr %s209, 4
      %s211 = scalar_lea.vmem %s1, %s210
      %s212 = smul.u32 16, %s20
      %p213 = scmp.lt.s32.totalorder %s18, 1
      %s214 = scalar_select %p213, %s18, 1
      %p215 = scmp.lt.s32.totalorder %s212, 15
      %s216 = scalar_select %p215, %s212, 15
      %p217 = scmp.lt.s32.totalorder %s19, 0
      %s218 = scalar_select %p217, %s19, 0
      %s219 = smul.addr %s216, 2
      %s220 = sadd.s32 %s218, %s219
      %s221 = smul.addr %s214, 32
      %s222 = sadd.s32 %s220, %s221
      %s223 = smul.addr %s222, 8
      %s224 = scalar_lea.vmem %s2, %s223
      %s225 = smul.u32 16, %s20
      %s226 = smul.u32 %s20, 16
      %v227 = vld [vmem:[%s211] sm:$0x1]
      %s228 = scalar_lea.vmem %s211, 4
      %v229 = vld [vmem:[%s228] sm:$0x1]
      %s230 = scalar_lea.vmem %s211, 8
      %v231 = vld [vmem:[%s230] sm:$0x1]
      %s232 = scalar_lea.vmem %s211, 12
      %v233 = vld [vmem:[%s232] sm:$0x1]
      %s234 = smul.u32 %s226, 16
      %s235 = scalar_lea.vmem %s203, %s234
      %v236 = vld [vmem:[%s235] sm:$0xff]
      %v237 = vld [vmem:[%s235 + $0x8] sm:$0x1f]
      %v238 = vlaneseq
      %v239 = vshrl.u32 %v238, 7
      %v240 = vsub.s32 0, %v239
      %v241 = vrot.slane %v227, %v240
      %v242 = vmul.f32 %v236, %v241
      %v243 = vmul.f32 %v237, %v241
      %v244 = vadd.f32 %v242, 0.0
      %v245 = vadd.f32 %v243, 0.0
      %s246 = sadd.s32 %s226, 1
      %s247 = smul.u32 %s246, 16
      %s248 = scalar_lea.vmem %s203, %s247
      %v249 = vld [vmem:[%s248] sm:$0xff]
      %v250 = vld [vmem:[%s248 + $0x8] sm:$0x1f]
      %v251 = vmul.f32 %v249, %v241
      %v252 = vmul.f32 %v250, %v241
      %v253 = vadd.f32 %v251, 0.0
      %v254 = vadd.f32 %v252, 0.0
      %v255 = vlaneseq
      %v256 = vshrl.u32 %v255, 7
      %v257 = vsub.s32 0, %v256
      %v258 = vrot.slane %v229, %v257
      %v259 = vmul.f32 %v249, %v258
      %v260 = vmul.f32 %v250, %v258
      %v261 = vadd.f32 %v244, %v259
      %v262 = vadd.f32 %v245, %v260
      %s263 = sadd.s32 %s226, 2
      %s264 = smul.u32 %s263, 16
      %s265 = scalar_lea.vmem %s203, %s264
      %v266 = vld [vmem:[%s265] sm:$0xff]
      %v267 = vld [vmem:[%s265 + $0x8] sm:$0x1f]
      %v268 = vmul.f32 %v266, %v241
      %v269 = vmul.f32 %v267, %v241
      %v270 = vadd.f32 %v268, 0.0
      %v271 = vadd.f32 %v269, 0.0
      %v272 = vmul.f32 %v266, %v258
      %v273 = vmul.f32 %v267, %v258
      %v274 = vadd.f32 %v253, %v272
      %v275 = vadd.f32 %v254, %v273
      %v276 = vlaneseq
      %v277 = vshrl.u32 %v276, 7
      %v278 = vsub.s32 0, %v277
      %v279 = vrot.slane %v231, %v278
      %v280 = vmul.f32 %v266, %v279
      %v281 = vmul.f32 %v267, %v279
      %v282 = vadd.f32 %v261, %v280
      %v283 = vadd.f32 %v262, %v281
      %s284 = sadd.s32 %s226, 3
      %s285 = smul.u32 %s284, 16
      %s286 = scalar_lea.vmem %s203, %s285
      %v287 = vld [vmem:[%s286] sm:$0xff]
      %v288 = vld [vmem:[%s286 + $0x8] sm:$0x1f]
      %v289 = vmul.f32 %v287, %v241
      %v290 = vmul.f32 %v288, %v241
      %v291 = vadd.f32 %v289, 0.0
      %v292 = vadd.f32 %v290, 0.0
      %v293 = vmul.f32 %v287, %v258
      %v294 = vmul.f32 %v288, %v258
      %v295 = vadd.f32 %v270, %v293
      %v296 = vadd.f32 %v271, %v294
      %v297 = vmul.f32 %v287, %v279
      %v298 = vmul.f32 %v288, %v279
      %v299 = vadd.f32 %v274, %v297
      %v300 = vadd.f32 %v275, %v298
      %v301 = vlaneseq
      %v302 = vshrl.u32 %v301, 7
      %v303 = vsub.s32 0, %v302
      %v304 = vrot.slane %v233, %v303
      %v305 = vmul.f32 %v287, %v304
      %v306 = vmul.f32 %v288, %v304
      %v307 = vadd.f32 %v282, %v305
      %v308 = vadd.f32 %v283, %v306
      %s309 = sadd.s32 %s226, 4
      %s310 = smul.u32 %s309, 16
      %s311 = scalar_lea.vmem %s203, %s310
      %v312 = vld [vmem:[%s311] sm:$0xff]
      %v313 = vld [vmem:[%s311 + $0x8] sm:$0x1f]
      %v314 = vmul.f32 %v312, %v241
      %v315 = vmul.f32 %v313, %v241
      %v316 = vadd.f32 %v314, 0.0
      %v317 = vadd.f32 %v315, 0.0
      %v318 = vmul.f32 %v312, %v258
      %v319 = vmul.f32 %v313, %v258
      %v320 = vadd.f32 %v291, %v318
      %v321 = vadd.f32 %v292, %v319
      %v322 = vmul.f32 %v312, %v279
      %v323 = vmul.f32 %v313, %v279
      %v324 = vadd.f32 %v295, %v322
      %v325 = vadd.f32 %v296, %v323
      %v326 = vmul.f32 %v312, %v304
      %v327 = vmul.f32 %v313, %v304
      %v328 = vadd.f32 %v299, %v326
      %v329 = vadd.f32 %v300, %v327
      %s330 = sadd.s32 %s226, 5
      %s331 = smul.u32 %s330, 16
      %s332 = scalar_lea.vmem %s203, %s331
      %v333 = vld [vmem:[%s332] sm:$0xff]
      %v334 = vld [vmem:[%s332 + $0x8] sm:$0x1f]
      %v335 = vmul.f32 %v333, %v241
      %v336 = vmul.f32 %v334, %v241
      %v337 = vadd.f32 %v335, 0.0
      %v338 = vadd.f32 %v336, 0.0
      %v339 = vmul.f32 %v333, %v258
      %v340 = vmul.f32 %v334, %v258
      %v341 = vadd.f32 %v316, %v339
      %v342 = vadd.f32 %v317, %v340
      %v343 = vmul.f32 %v333, %v279
      %v344 = vmul.f32 %v334, %v279
      %v345 = vadd.f32 %v320, %v343
      %v346 = vadd.f32 %v321, %v344
      %v347 = vmul.f32 %v333, %v304
      %v348 = vmul.f32 %v334, %v304
      %v349 = vadd.f32 %v324, %v347
      %v350 = vadd.f32 %v325, %v348
      %s351 = sadd.s32 %s226, 6
      %s352 = smul.u32 %s351, 16
      %s353 = scalar_lea.vmem %s203, %s352
      %v354 = vld [vmem:[%s353] sm:$0xff]
      %v355 = vld [vmem:[%s353 + $0x8] sm:$0x1f]
      %v356 = vmul.f32 %v354, %v241
      %v357 = vmul.f32 %v355, %v241
      %v358 = vadd.f32 %v356, 0.0
      %v359 = vadd.f32 %v357, 0.0
      %v360 = vmul.f32 %v354, %v258
      %v361 = vmul.f32 %v355, %v258
      %v362 = vadd.f32 %v337, %v360
      %v363 = vadd.f32 %v338, %v361
      %v364 = vmul.f32 %v354, %v279
      %v365 = vmul.f32 %v355, %v279
      %v366 = vadd.f32 %v341, %v364
      %v367 = vadd.f32 %v342, %v365
      %v368 = vmul.f32 %v354, %v304
      %v369 = vmul.f32 %v355, %v304
      %v370 = vadd.f32 %v345, %v368
      %v371 = vadd.f32 %v346, %v369
      %s372 = sadd.s32 %s226, 7
      %s373 = smul.u32 %s372, 16
      %s374 = scalar_lea.vmem %s203, %s373
      %v375 = vld [vmem:[%s374] sm:$0xff]
      %v376 = vld [vmem:[%s374 + $0x8] sm:$0x1f]
      %v377 = vmul.f32 %v375, %v241
      %v378 = vmul.f32 %v376, %v241
      %v379 = vadd.f32 %v377, 0.0
      %v380 = vadd.f32 %v378, 0.0
      %v381 = vmul.f32 %v375, %v258
      %v382 = vmul.f32 %v376, %v258
      %v383 = vadd.f32 %v358, %v381
      %v384 = vadd.f32 %v359, %v382
      %v385 = vmul.f32 %v375, %v279
      %v386 = vmul.f32 %v376, %v279
      %v387 = vadd.f32 %v362, %v385
      %v388 = vadd.f32 %v363, %v386
      %v389 = vmul.f32 %v375, %v304
      %v390 = vmul.f32 %v376, %v304
      %v391 = vadd.f32 %v366, %v389
      %v392 = vadd.f32 %v367, %v390
      %s393 = sadd.s32 %s226, 8
      %s394 = smul.u32 %s393, 16
      %s395 = scalar_lea.vmem %s203, %s394
      %v396 = vld [vmem:[%s395] sm:$0xff]
      %v397 = vld [vmem:[%s395 + $0x8] sm:$0x1f]
      %v398 = vmul.f32 %v396, %v258
      %v399 = vmul.f32 %v397, %v258
      %v400 = vadd.f32 %v379, %v398
      %v401 = vadd.f32 %v380, %v399
      %v402 = vmul.f32 %v396, %v279
      %v403 = vmul.f32 %v397, %v279
      %v404 = vadd.f32 %v383, %v402
      %v405 = vadd.f32 %v384, %v403
      %v406 = vmul.f32 %v396, %v304
      %v407 = vmul.f32 %v397, %v304
      %v408 = vadd.f32 %v387, %v406
      %v409 = vadd.f32 %v388, %v407
      %s410 = sadd.s32 %s226, 9
      %s411 = smul.u32 %s410, 16
      %s412 = scalar_lea.vmem %s203, %s411
      %v413 = vld [vmem:[%s412] sm:$0xff]
      %v414 = vld [vmem:[%s412 + $0x8] sm:$0x1f]
      %v415 = vmul.f32 %v413, %v279
      %v416 = vmul.f32 %v414, %v279
      %v417 = vadd.f32 %v400, %v415
      %v418 = vadd.f32 %v401, %v416
      %v419 = vmul.f32 %v413, %v304
      %v420 = vmul.f32 %v414, %v304
      %v421 = vadd.f32 %v404, %v419
      %v422 = vadd.f32 %v405, %v420
      %s423 = sadd.s32 %s226, 10
      %s424 = smul.u32 %s423, 16
      %s425 = scalar_lea.vmem %s203, %s424
      %v426 = vld [vmem:[%s425] sm:$0xff]
      %v427 = vld [vmem:[%s425 + $0x8] sm:$0x1f]
      %v428 = vmul.f32 %v426, %v304
      %v429 = vmul.f32 %v427, %v304
      %v430 = vadd.f32 %v417, %v428
      %v431 = vadd.f32 %v418, %v429
      %v432 = vld [vmem:[%s211 + $0x1] sm:$0x1]
      %v433 = vld [vmem:[%s228 + $0x1] sm:$0x1]
      %v434 = vld [vmem:[%s230 + $0x1] sm:$0x1]
      %v435 = vld [vmem:[%s232 + $0x1] sm:$0x1]
      %v436 = vld [vmem:[%s235 + $0x1] sm:$0xff]
      %v437 = vld [vmem:[%s235 + $0x9] sm:$0x1f]
      %v438 = vlaneseq
      %v439 = vshrl.u32 %v438, 7
      %v440 = vsub.s32 0, %v439
      %v441 = vrot.slane %v432, %v440
      %v442 = vmul.f32 %v436, %v441
      %v443 = vmul.f32 %v437, %v441
      %v444 = vadd.f32 %v307, %v442
      %v445 = vadd.f32 %v308, %v443
      %v446 = vld [vmem:[%s248 + $0x1] sm:$0xff]
      %v447 = vld [vmem:[%s248 + $0x9] sm:$0x1f]
      %v448 = vmul.f32 %v446, %v441
      %v449 = vmul.f32 %v447, %v441
      %v450 = vadd.f32 %v328, %v448
      %v451 = vadd.f32 %v329, %v449
      %v452 = vlaneseq
      %v453 = vshrl.u32 %v452, 7
      %v454 = vsub.s32 0, %v453
      %v455 = vrot.slane %v433, %v454
      %v456 = vmul.f32 %v446, %v455
      %v457 = vmul.f32 %v447, %v455
      %v458 = vadd.f32 %v444, %v456
      %v459 = vadd.f32 %v445, %v457
      %v460 = vld [vmem:[%s265 + $0x1] sm:$0xff]
      %v461 = vld [vmem:[%s265 + $0x9] sm:$0x1f]
      %v462 = vmul.f32 %v460, %v441
      %v463 = vmul.f32 %v461, %v441
      %v464 = vadd.f32 %v349, %v462
      %v465 = vadd.f32 %v350, %v463
      %v466 = vmul.f32 %v460, %v455
      %v467 = vmul.f32 %v461, %v455
      %v468 = vadd.f32 %v450, %v466
      %v469 = vadd.f32 %v451, %v467
      %v470 = vlaneseq
      %v471 = vshrl.u32 %v470, 7
      %v472 = vsub.s32 0, %v471
      %v473 = vrot.slane %v434, %v472
      %v474 = vmul.f32 %v460, %v473
      %v475 = vmul.f32 %v461, %v473
      %v476 = vadd.f32 %v458, %v474
      %v477 = vadd.f32 %v459, %v475
      %v478 = vld [vmem:[%s286 + $0x1] sm:$0xff]
      %v479 = vld [vmem:[%s286 + $0x9] sm:$0x1f]
      %v480 = vmul.f32 %v478, %v441
      %v481 = vmul.f32 %v479, %v441
      %v482 = vadd.f32 %v370, %v480
      %v483 = vadd.f32 %v371, %v481
      %v484 = vmul.f32 %v478, %v455
      %v485 = vmul.f32 %v479, %v455
      %v486 = vadd.f32 %v464, %v484
      %v487 = vadd.f32 %v465, %v485
      %v488 = vmul.f32 %v478, %v473
      %v489 = vmul.f32 %v479, %v473
      %v490 = vadd.f32 %v468, %v488
      %v491 = vadd.f32 %v469, %v489
      %v492 = vlaneseq
      %v493 = vshrl.u32 %v492, 7
      %v494 = vsub.s32 0, %v493
      %v495 = vrot.slane %v435, %v494
      %v496 = vmul.f32 %v478, %v495
      %v497 = vmul.f32 %v479, %v495
      %v498 = vadd.f32 %v476, %v496
      %v499 = vadd.f32 %v477, %v497
      %v500 = vld [vmem:[%s311 + $0x1] sm:$0xff]
      %v501 = vld [vmem:[%s311 + $0x9] sm:$0x1f]
      %v502 = vmul.f32 %v500, %v441
      %v503 = vmul.f32 %v501, %v441
      %v504 = vadd.f32 %v391, %v502
      %v505 = vadd.f32 %v392, %v503
      %v506 = vmul.f32 %v500, %v455
      %v507 = vmul.f32 %v501, %v455
      %v508 = vadd.f32 %v482, %v506
      %v509 = vadd.f32 %v483, %v507
      %v510 = vmul.f32 %v500, %v473
      %v511 = vmul.f32 %v501, %v473
      %v512 = vadd.f32 %v486, %v510
      %v513 = vadd.f32 %v487, %v511
      %v514 = vmul.f32 %v500, %v495
      %v515 = vmul.f32 %v501, %v495
      %v516 = vadd.f32 %v490, %v514
      %v517 = vadd.f32 %v491, %v515
      %v518 = vld [vmem:[%s332 + $0x1] sm:$0xff]
      %v519 = vld [vmem:[%s332 + $0x9] sm:$0x1f]
      %v520 = vmul.f32 %v518, %v441
      %v521 = vmul.f32 %v519, %v441
      %v522 = vadd.f32 %v408, %v520
      %v523 = vadd.f32 %v409, %v521
      %v524 = vmul.f32 %v518, %v455
      %v525 = vmul.f32 %v519, %v455
      %v526 = vadd.f32 %v504, %v524
      %v527 = vadd.f32 %v505, %v525
      %v528 = vmul.f32 %v518, %v473
      %v529 = vmul.f32 %v519, %v473
      %v530 = vadd.f32 %v508, %v528
      %v531 = vadd.f32 %v509, %v529
      %v532 = vmul.f32 %v518, %v495
      %v533 = vmul.f32 %v519, %v495
      %v534 = vadd.f32 %v512, %v532
      %v535 = vadd.f32 %v513, %v533
      %v536 = vld [vmem:[%s353 + $0x1] sm:$0xff]
      %v537 = vld [vmem:[%s353 + $0x9] sm:$0x1f]
      %v538 = vmul.f32 %v536, %v441
      %v539 = vmul.f32 %v537, %v441
      %v540 = vadd.f32 %v421, %v538
      %v541 = vadd.f32 %v422, %v539
      %v542 = vmul.f32 %v536, %v455
      %v543 = vmul.f32 %v537, %v455
      %v544 = vadd.f32 %v522, %v542
      %v545 = vadd.f32 %v523, %v543
      %v546 = vmul.f32 %v536, %v473
      %v547 = vmul.f32 %v537, %v473
      %v548 = vadd.f32 %v526, %v546
      %v549 = vadd.f32 %v527, %v547
      %v550 = vmul.f32 %v536, %v495
      %v551 = vmul.f32 %v537, %v495
      %v552 = vadd.f32 %v530, %v550
      %v553 = vadd.f32 %v531, %v551
      %v554 = vld [vmem:[%s374 + $0x1] sm:$0xff]
      %v555 = vld [vmem:[%s374 + $0x9] sm:$0x1f]
      %v556 = vmul.f32 %v554, %v441
      %v557 = vmul.f32 %v555, %v441
      %v558 = vadd.f32 %v430, %v556
      %v559 = vadd.f32 %v431, %v557
      %v560 = vmul.f32 %v554, %v455
      %v561 = vmul.f32 %v555, %v455
      %v562 = vadd.f32 %v540, %v560
      %v563 = vadd.f32 %v541, %v561
      %v564 = vmul.f32 %v554, %v473
      %v565 = vmul.f32 %v555, %v473
      %v566 = vadd.f32 %v544, %v564
      %v567 = vadd.f32 %v545, %v565
      %v568 = vmul.f32 %v554, %v495
      %v569 = vmul.f32 %v555, %v495
      %v570 = vadd.f32 %v548, %v568
      %v571 = vadd.f32 %v549, %v569
      %v572 = vld [vmem:[%s395 + $0x1] sm:$0xff]
      %v573 = vld [vmem:[%s395 + $0x9] sm:$0x1f]
      %v574 = vmul.f32 %v572, %v455
      %v575 = vmul.f32 %v573, %v455
      %v576 = vadd.f32 %v558, %v574
      %v577 = vadd.f32 %v559, %v575
      %v578 = vmul.f32 %v572, %v473
      %v579 = vmul.f32 %v573, %v473
      %v580 = vadd.f32 %v562, %v578
      %v581 = vadd.f32 %v563, %v579
      %v582 = vmul.f32 %v572, %v495
      %v583 = vmul.f32 %v573, %v495
      %v584 = vadd.f32 %v566, %v582
      %v585 = vadd.f32 %v567, %v583
      %v586 = vld [vmem:[%s412 + $0x1] sm:$0xff]
      %v587 = vld [vmem:[%s412 + $0x9] sm:$0x1f]
      %v588 = vmul.f32 %v586, %v473
      %v589 = vmul.f32 %v587, %v473
      %v590 = vadd.f32 %v576, %v588
      %v591 = vadd.f32 %v577, %v589
      %v592 = vmul.f32 %v586, %v495
      %v593 = vmul.f32 %v587, %v495
      %v594 = vadd.f32 %v580, %v592
      %v595 = vadd.f32 %v581, %v593
      %v596 = vld [vmem:[%s425 + $0x1] sm:$0xff]
      %v597 = vld [vmem:[%s425 + $0x9] sm:$0x1f]
      %v598 = vmul.f32 %v596, %v495
      %v599 = vmul.f32 %v597, %v495
      %v600 = vadd.f32 %v590, %v598
      %v601 = vadd.f32 %v591, %v599
      %v602 = vld [vmem:[%s211 + $0x2] sm:$0x1]
      %v603 = vld [vmem:[%s228 + $0x2] sm:$0x1]
      %v604 = vld [vmem:[%s230 + $0x2] sm:$0x1]
      %v605 = vld [vmem:[%s232 + $0x2] sm:$0x1]
      %v606 = vld [vmem:[%s235 + $0x2] sm:$0xff]
      %v607 = vld [vmem:[%s235 + $0xa] sm:$0x1f]
      %v608 = vlaneseq
      %v609 = vshrl.u32 %v608, 7
      %v610 = vsub.s32 0, %v609
      %v611 = vrot.slane %v602, %v610
      %v612 = vmul.f32 %v606, %v611
      %v613 = vmul.f32 %v607, %v611
      %v614 = vadd.f32 %v498, %v612
      %v615 = vadd.f32 %v499, %v613
      %v616 = vld [vmem:[%s248 + $0x2] sm:$0xff]
      %v617 = vld [vmem:[%s248 + $0xa] sm:$0x1f]
      %v618 = vmul.f32 %v616, %v611
      %v619 = vmul.f32 %v617, %v611
      %v620 = vadd.f32 %v516, %v618
      %v621 = vadd.f32 %v517, %v619
      %v622 = vlaneseq
      %v623 = vshrl.u32 %v622, 7
      %v624 = vsub.s32 0, %v623
      %v625 = vrot.slane %v603, %v624
      %v626 = vmul.f32 %v616, %v625
      %v627 = vmul.f32 %v617, %v625
      %v628 = vadd.f32 %v614, %v626
      %v629 = vadd.f32 %v615, %v627
      %v630 = vld [vmem:[%s265 + $0x2] sm:$0xff]
      %v631 = vld [vmem:[%s265 + $0xa] sm:$0x1f]
      %v632 = vmul.f32 %v630, %v611
      %v633 = vmul.f32 %v631, %v611
      %v634 = vadd.f32 %v534, %v632
      %v635 = vadd.f32 %v535, %v633
      %v636 = vmul.f32 %v630, %v625
      %v637 = vmul.f32 %v631, %v625
      %v638 = vadd.f32 %v620, %v636
      %v639 = vadd.f32 %v621, %v637
      %v640 = vlaneseq
      %v641 = vshrl.u32 %v640, 7
      %v642 = vsub.s32 0, %v641
      %v643 = vrot.slane %v604, %v642
      %v644 = vmul.f32 %v630, %v643
      %v645 = vmul.f32 %v631, %v643
      %v646 = vadd.f32 %v628, %v644
      %v647 = vadd.f32 %v629, %v645
      %v648 = vld [vmem:[%s286 + $0x2] sm:$0xff]
      %v649 = vld [vmem:[%s286 + $0xa] sm:$0x1f]
      %v650 = vmul.f32 %v648, %v611
      %v651 = vmul.f32 %v649, %v611
      %v652 = vadd.f32 %v552, %v650
      %v653 = vadd.f32 %v553, %v651
      %v654 = vmul.f32 %v648, %v625
      %v655 = vmul.f32 %v649, %v625
      %v656 = vadd.f32 %v634, %v654
      %v657 = vadd.f32 %v635, %v655
      %v658 = vmul.f32 %v648, %v643
      %v659 = vmul.f32 %v649, %v643
      %v660 = vadd.f32 %v638, %v658
      %v661 = vadd.f32 %v639, %v659
      %v662 = vlaneseq
      %v663 = vshrl.u32 %v662, 7
      %v664 = vsub.s32 0, %v663
      %v665 = vrot.slane %v605, %v664
      %v666 = vmul.f32 %v648, %v665
      %v667 = vmul.f32 %v649, %v665
      %v668 = vadd.f32 %v646, %v666
      %v669 = vadd.f32 %v647, %v667
      %v670 = vld [vmem:[%s311 + $0x2] sm:$0xff]
      %v671 = vld [vmem:[%s311 + $0xa] sm:$0x1f]
      %v672 = vmul.f32 %v670, %v611
      %v673 = vmul.f32 %v671, %v611
      %v674 = vadd.f32 %v570, %v672
      %v675 = vadd.f32 %v571, %v673
      %v676 = vmul.f32 %v670, %v625
      %v677 = vmul.f32 %v671, %v625
      %v678 = vadd.f32 %v652, %v676
      %v679 = vadd.f32 %v653, %v677
      %v680 = vmul.f32 %v670, %v643
      %v681 = vmul.f32 %v671, %v643
      %v682 = vadd.f32 %v656, %v680
      %v683 = vadd.f32 %v657, %v681
      %v684 = vmul.f32 %v670, %v665
      %v685 = vmul.f32 %v671, %v665
      %v686 = vadd.f32 %v660, %v684
      %v687 = vadd.f32 %v661, %v685
      %v688 = vld [vmem:[%s332 + $0x2] sm:$0xff]
      %v689 = vld [vmem:[%s332 + $0xa] sm:$0x1f]
      %v690 = vmul.f32 %v688, %v611
      %v691 = vmul.f32 %v689, %v611
      %v692 = vadd.f32 %v584, %v690
      %v693 = vadd.f32 %v585, %v691
      %v694 = vmul.f32 %v688, %v625
      %v695 = vmul.f32 %v689, %v625
      %v696 = vadd.f32 %v674, %v694
      %v697 = vadd.f32 %v675, %v695
      %v698 = vmul.f32 %v688, %v643
      %v699 = vmul.f32 %v689, %v643
      %v700 = vadd.f32 %v678, %v698
      %v701 = vadd.f32 %v679, %v699
      %v702 = vmul.f32 %v688, %v665
      %v703 = vmul.f32 %v689, %v665
      %v704 = vadd.f32 %v682, %v702
      %v705 = vadd.f32 %v683, %v703
      %v706 = vld [vmem:[%s353 + $0x2] sm:$0xff]
      %v707 = vld [vmem:[%s353 + $0xa] sm:$0x1f]
      %v708 = vmul.f32 %v706, %v611
      %v709 = vmul.f32 %v707, %v611
      %v710 = vadd.f32 %v594, %v708
      %v711 = vadd.f32 %v595, %v709
      %v712 = vmul.f32 %v706, %v625
      %v713 = vmul.f32 %v707, %v625
      %v714 = vadd.f32 %v692, %v712
      %v715 = vadd.f32 %v693, %v713
      %v716 = vmul.f32 %v706, %v643
      %v717 = vmul.f32 %v707, %v643
      %v718 = vadd.f32 %v696, %v716
      %v719 = vadd.f32 %v697, %v717
      %v720 = vmul.f32 %v706, %v665
      %v721 = vmul.f32 %v707, %v665
      %v722 = vadd.f32 %v700, %v720
      %v723 = vadd.f32 %v701, %v721
      %v724 = vld [vmem:[%s374 + $0x2] sm:$0xff]
      %v725 = vld [vmem:[%s374 + $0xa] sm:$0x1f]
      %v726 = vmul.f32 %v724, %v611
      %v727 = vmul.f32 %v725, %v611
      %v728 = vadd.f32 %v600, %v726
      %v729 = vadd.f32 %v601, %v727
      %v730 = vmul.f32 %v724, %v625
      %v731 = vmul.f32 %v725, %v625
      %v732 = vadd.f32 %v710, %v730
      %v733 = vadd.f32 %v711, %v731
      %v734 = vmul.f32 %v724, %v643
      %v735 = vmul.f32 %v725, %v643
      %v736 = vadd.f32 %v714, %v734
      %v737 = vadd.f32 %v715, %v735
      %v738 = vmul.f32 %v724, %v665
      %v739 = vmul.f32 %v725, %v665
      %v740 = vadd.f32 %v718, %v738
      %v741 = vadd.f32 %v719, %v739
      %v742 = vld [vmem:[%s395 + $0x2] sm:$0xff]
      %v743 = vld [vmem:[%s395 + $0xa] sm:$0x1f]
      %v744 = vmul.f32 %v742, %v625
      %v745 = vmul.f32 %v743, %v625
      %v746 = vadd.f32 %v728, %v744
      %v747 = vadd.f32 %v729, %v745
      %v748 = vmul.f32 %v742, %v643
      %v749 = vmul.f32 %v743, %v643
      %v750 = vadd.f32 %v732, %v748
      %v751 = vadd.f32 %v733, %v749
      %v752 = vmul.f32 %v742, %v665
      %v753 = vmul.f32 %v743, %v665
      %v754 = vadd.f32 %v736, %v752
      %v755 = vadd.f32 %v737, %v753
      %v756 = vld [vmem:[%s412 + $0x2] sm:$0xff]
      %v757 = vld [vmem:[%s412 + $0xa] sm:$0x1f]
      %v758 = vmul.f32 %v756, %v643
      %v759 = vmul.f32 %v757, %v643
      %v760 = vadd.f32 %v746, %v758
      %v761 = vadd.f32 %v747, %v759
      %v762 = vmul.f32 %v756, %v665
      %v763 = vmul.f32 %v757, %v665
      %v764 = vadd.f32 %v750, %v762
      %v765 = vadd.f32 %v751, %v763
      %v766 = vld [vmem:[%s425 + $0x2] sm:$0xff]
      %v767 = vld [vmem:[%s425 + $0xa] sm:$0x1f]
      %v768 = vmul.f32 %v766, %v665
      %v769 = vmul.f32 %v767, %v665
      %v770 = vadd.f32 %v760, %v768
      %v771 = vadd.f32 %v761, %v769
      %v772 = vld [vmem:[%s211 + $0x3] sm:$0x1]
      %v773 = vld [vmem:[%s228 + $0x3] sm:$0x1]
      %v774 = vld [vmem:[%s230 + $0x3] sm:$0x1]
      %v775 = vld [vmem:[%s232 + $0x3] sm:$0x1]
      %v776 = vld [vmem:[%s235 + $0x3] sm:$0xff]
      %v777 = vld [vmem:[%s235 + $0xb] sm:$0x1f]
      %v778 = vlaneseq
      %v779 = vshrl.u32 %v778, 7
      %v780 = vsub.s32 0, %v779
      %v781 = vrot.slane %v772, %v780
      %v782 = vmul.f32 %v776, %v781
      %v783 = vmul.f32 %v777, %v781
      %v784 = vadd.f32 %v668, %v782
      %v785 = vadd.f32 %v669, %v783
      %v786 = vld [vmem:[%s248 + $0x3] sm:$0xff]
      %v787 = vld [vmem:[%s248 + $0xb] sm:$0x1f]
      %v788 = vmul.f32 %v786, %v781
      %v789 = vmul.f32 %v787, %v781
      %v790 = vadd.f32 %v686, %v788
      %v791 = vadd.f32 %v687, %v789
      %v792 = vlaneseq
      %v793 = vshrl.u32 %v792, 7
      %v794 = vsub.s32 0, %v793
      %v795 = vrot.slane %v773, %v794
      %v796 = vmul.f32 %v786, %v795
      %v797 = vmul.f32 %v787, %v795
      %v798 = vadd.f32 %v784, %v796
      %v799 = vadd.f32 %v785, %v797
      %v800 = vld [vmem:[%s265 + $0x3] sm:$0xff]
      %v801 = vld [vmem:[%s265 + $0xb] sm:$0x1f]
      %v802 = vmul.f32 %v800, %v781
      %v803 = vmul.f32 %v801, %v781
      %v804 = vadd.f32 %v704, %v802
      %v805 = vadd.f32 %v705, %v803
      %v806 = vmul.f32 %v800, %v795
      %v807 = vmul.f32 %v801, %v795
      %v808 = vadd.f32 %v790, %v806
      %v809 = vadd.f32 %v791, %v807
      %v810 = vlaneseq
      %v811 = vshrl.u32 %v810, 7
      %v812 = vsub.s32 0, %v811
      %v813 = vrot.slane %v774, %v812
      %v814 = vmul.f32 %v800, %v813
      %v815 = vmul.f32 %v801, %v813
      %v816 = vadd.f32 %v798, %v814
      %v817 = vadd.f32 %v799, %v815
      %v818 = vld [vmem:[%s286 + $0x3] sm:$0xff]
      %v819 = vld [vmem:[%s286 + $0xb] sm:$0x1f]
      %v820 = vmul.f32 %v818, %v781
      %v821 = vmul.f32 %v819, %v781
      %v822 = vadd.f32 %v722, %v820
      %v823 = vadd.f32 %v723, %v821
      %v824 = vmul.f32 %v818, %v795
      %v825 = vmul.f32 %v819, %v795
      %v826 = vadd.f32 %v804, %v824
      %v827 = vadd.f32 %v805, %v825
      %v828 = vmul.f32 %v818, %v813
      %v829 = vmul.f32 %v819, %v813
      %v830 = vadd.f32 %v808, %v828
      %v831 = vadd.f32 %v809, %v829
      %v832 = vlaneseq
      %v833 = vshrl.u32 %v832, 7
      %v834 = vsub.s32 0, %v833
      %v835 = vrot.slane %v775, %v834
      %v836 = vmul.f32 %v818, %v835
      %v837 = vmul.f32 %v819, %v835
      %v838 = vadd.f32 %v816, %v836
      %v839 = vadd.f32 %v817, %v837
      %v840 = vld [vmem:[%s311 + $0x3] sm:$0xff]
      %v841 = vld [vmem:[%s311 + $0xb] sm:$0x1f]
      %v842 = vmul.f32 %v840, %v781
      %v843 = vmul.f32 %v841, %v781
      %v844 = vadd.f32 %v740, %v842
      %v845 = vadd.f32 %v741, %v843
      %v846 = vmul.f32 %v840, %v795
      %v847 = vmul.f32 %v841, %v795
      %v848 = vadd.f32 %v822, %v846
      %v849 = vadd.f32 %v823, %v847
      %v850 = vmul.f32 %v840, %v813
      %v851 = vmul.f32 %v841, %v813
      %v852 = vadd.f32 %v826, %v850
      %v853 = vadd.f32 %v827, %v851
      %v854 = vmul.f32 %v840, %v835
      %v855 = vmul.f32 %v841, %v835
      %v856 = vadd.f32 %v830, %v854
      %v857 = vadd.f32 %v831, %v855
      %v858 = vld [vmem:[%s332 + $0x3] sm:$0xff]
      %v859 = vld [vmem:[%s332 + $0xb] sm:$0x1f]
      %v860 = vmul.f32 %v858, %v781
      %v861 = vmul.f32 %v859, %v781
      %v862 = vadd.f32 %v754, %v860
      %v863 = vadd.f32 %v755, %v861
      %v864 = vmul.f32 %v858, %v795
      %v865 = vmul.f32 %v859, %v795
      %v866 = vadd.f32 %v844, %v864
      %v867 = vadd.f32 %v845, %v865
      %v868 = vmul.f32 %v858, %v813
      %v869 = vmul.f32 %v859, %v813
      %v870 = vadd.f32 %v848, %v868
      %v871 = vadd.f32 %v849, %v869
      %v872 = vmul.f32 %v858, %v835
      %v873 = vmul.f32 %v859, %v835
      %v874 = vadd.f32 %v852, %v872
      %v875 = vadd.f32 %v853, %v873
      %v876 = vld [vmem:[%s353 + $0x3] sm:$0xff]
      %v877 = vld [vmem:[%s353 + $0xb] sm:$0x1f]
      %v878 = vmul.f32 %v876, %v781
      %v879 = vmul.f32 %v877, %v781
      %v880 = vadd.f32 %v764, %v878
      %v881 = vadd.f32 %v765, %v879
      %v882 = vmul.f32 %v876, %v795
      %v883 = vmul.f32 %v877, %v795
      %v884 = vadd.f32 %v862, %v882
      %v885 = vadd.f32 %v863, %v883
      %v886 = vmul.f32 %v876, %v813
      %v887 = vmul.f32 %v877, %v813
      %v888 = vadd.f32 %v866, %v886
      %v889 = vadd.f32 %v867, %v887
      %v890 = vmul.f32 %v876, %v835
      %v891 = vmul.f32 %v877, %v835
      %v892 = vadd.f32 %v870, %v890
      %v893 = vadd.f32 %v871, %v891
      %v894 = vld [vmem:[%s374 + $0x3] sm:$0xff]
      %v895 = vld [vmem:[%s374 + $0xb] sm:$0x1f]
      %v896 = vmul.f32 %v894, %v781
      %v897 = vmul.f32 %v895, %v781
      %v898 = vadd.f32 %v770, %v896
      %v899 = vadd.f32 %v771, %v897
      %v900 = vmul.f32 %v894, %v795
      %v901 = vmul.f32 %v895, %v795
      %v902 = vadd.f32 %v880, %v900
      %v903 = vadd.f32 %v881, %v901
      %v904 = vmul.f32 %v894, %v813
      %v905 = vmul.f32 %v895, %v813
      %v906 = vadd.f32 %v884, %v904
      %v907 = vadd.f32 %v885, %v905
      %v908 = vmul.f32 %v894, %v835
      %v909 = vmul.f32 %v895, %v835
      %v910 = vadd.f32 %v888, %v908
      %v911 = vadd.f32 %v889, %v909
      %v912 = vld [vmem:[%s395 + $0x3] sm:$0xff]
      %v913 = vld [vmem:[%s395 + $0xb] sm:$0x1f]
      %v914 = vmul.f32 %v912, %v795
      %v915 = vmul.f32 %v913, %v795
      %v916 = vadd.f32 %v898, %v914
      %v917 = vadd.f32 %v899, %v915
      %v918 = vmul.f32 %v912, %v813
      %v919 = vmul.f32 %v913, %v813
      %v920 = vadd.f32 %v902, %v918
      %v921 = vadd.f32 %v903, %v919
      %v922 = vmul.f32 %v912, %v835
      %v923 = vmul.f32 %v913, %v835
      %v924 = vadd.f32 %v906, %v922
      %v925 = vadd.f32 %v907, %v923
      %v926 = vld [vmem:[%s412 + $0x3] sm:$0xff]
      %v927 = vld [vmem:[%s412 + $0xb] sm:$0x1f]
      %v928 = vmul.f32 %v926, %v813
      %v929 = vmul.f32 %v927, %v813
      %v930 = vadd.f32 %v916, %v928
      %v931 = vadd.f32 %v917, %v929
      %v932 = vmul.f32 %v926, %v835
      %v933 = vmul.f32 %v927, %v835
      %v934 = vadd.f32 %v920, %v932
      %v935 = vadd.f32 %v921, %v933
      %v936 = vld [vmem:[%s425 + $0x3] sm:$0xff]
      %v937 = vld [vmem:[%s425 + $0xb] sm:$0x1f]
      %v938 = vmul.f32 %v936, %v835
      %v939 = vmul.f32 %v937, %v835
      %v940 = vadd.f32 %v930, %v938
      %v941 = vadd.f32 %v931, %v939
      %942 = vst [vmem:[%s224] sm:$0xff] %v838
      %943 = vst [vmem:[%s224 + $0x8] sm:$0x1f] %v839
      %s944 = scalar_lea.vmem %s224, 16
      %945 = vst [vmem:[%s944] sm:$0xff] %v856
      %946 = vst [vmem:[%s944 + $0x8] sm:$0x1f] %v857
      %s947 = scalar_lea.vmem %s224, 32
      %948 = vst [vmem:[%s947] sm:$0xff] %v874
      %949 = vst [vmem:[%s947 + $0x8] sm:$0x1f] %v875
      %s950 = scalar_lea.vmem %s224, 48
      %951 = vst [vmem:[%s950] sm:$0xff] %v892
      %952 = vst [vmem:[%s950 + $0x8] sm:$0x1f] %v893
      %s953 = scalar_lea.vmem %s224, 64
      %954 = vst [vmem:[%s953] sm:$0xff] %v910
      %955 = vst [vmem:[%s953 + $0x8] sm:$0x1f] %v911
      %s956 = scalar_lea.vmem %s224, 80
      %957 = vst [vmem:[%s956] sm:$0xff] %v924
      %958 = vst [vmem:[%s956 + $0x8] sm:$0x1f] %v925
      %s959 = scalar_lea.vmem %s224, 96
      %960 = vst [vmem:[%s959] sm:$0xff] %v934
      %961 = vst [vmem:[%s959 + $0x8] sm:$0x1f] %v935
      %s962 = scalar_lea.vmem %s224, 112
      %963 = vst [vmem:[%s962] sm:$0xff] %v940
      %964 = vst [vmem:[%s962 + $0x8] sm:$0x1f] %v941
      %v965 = vld [vmem:[%s211] sm:$0x1]
      %v966 = vld [vmem:[%s228] sm:$0x1]
      %v967 = vld [vmem:[%s230] sm:$0x1]
      %v968 = vld [vmem:[%s232] sm:$0x1]
      %v969 = vld [vmem:[%s395] sm:$0xff]
      %v970 = vld [vmem:[%s395 + $0x8] sm:$0x1f]
      %v971 = vlaneseq
      %v972 = vshrl.u32 %v971, 7
      %v973 = vsub.s32 0, %v972
      %v974 = vrot.slane %v965, %v973
      %v975 = vmul.f32 %v969, %v974
      %v976 = vmul.f32 %v970, %v974
      %v977 = vadd.f32 %v975, 0.0
      %v978 = vadd.f32 %v976, 0.0
      %v979 = vld [vmem:[%s412] sm:$0xff]
      %v980 = vld [vmem:[%s412 + $0x8] sm:$0x1f]
      %v981 = vmul.f32 %v979, %v974
      %v982 = vmul.f32 %v980, %v974
      %v983 = vadd.f32 %v981, 0.0
      %v984 = vadd.f32 %v982, 0.0
      %v985 = vlaneseq
      %v986 = vshrl.u32 %v985, 7
      %v987 = vsub.s32 0, %v986
      %v988 = vrot.slane %v966, %v987
      %v989 = vmul.f32 %v979, %v988
      %v990 = vmul.f32 %v980, %v988
      %v991 = vadd.f32 %v977, %v989
      %v992 = vadd.f32 %v978, %v990
      %v993 = vld [vmem:[%s425] sm:$0xff]
      %v994 = vld [vmem:[%s425 + $0x8] sm:$0x1f]
      %v995 = vmul.f32 %v993, %v974
      %v996 = vmul.f32 %v994, %v974
      %v997 = vadd.f32 %v995, 0.0
      %v998 = vadd.f32 %v996, 0.0
      %v999 = vmul.f32 %v993, %v988
      %v1000 = vmul.f32 %v994, %v988
      %v1001 = vadd.f32 %v983, %v999
      %v1002 = vadd.f32 %v984, %v1000
      %v1003 = vlaneseq
      %v1004 = vshrl.u32 %v1003, 7
      %v1005 = vsub.s32 0, %v1004
      %v1006 = vrot.slane %v967, %v1005
      %v1007 = vmul.f32 %v993, %v1006
      %v1008 = vmul.f32 %v994, %v1006
      %v1009 = vadd.f32 %v991, %v1007
      %v1010 = vadd.f32 %v992, %v1008
      %s1011 = sadd.s32 %s226, 11
      %s1012 = smul.u32 %s1011, 16
      %s1013 = scalar_lea.vmem %s203, %s1012
      %v1014 = vld [vmem:[%s1013] sm:$0xff]
      %v1015 = vld [vmem:[%s1013 + $0x8] sm:$0x1f]
      %v1016 = vmul.f32 %v1014, %v974
      %v1017 = vmul.f32 %v1015, %v974
      %v1018 = vadd.f32 %v1016, 0.0
      %v1019 = vadd.f32 %v1017, 0.0
      %v1020 = vmul.f32 %v1014, %v988
      %v1021 = vmul.f32 %v1015, %v988
      %v1022 = vadd.f32 %v997, %v1020
      %v1023 = vadd.f32 %v998, %v1021
      %v1024 = vmul.f32 %v1014, %v1006
      %v1025 = vmul.f32 %v1015, %v1006
      %v1026 = vadd.f32 %v1001, %v1024
      %v1027 = vadd.f32 %v1002, %v1025
      %v1028 = vlaneseq
      %v1029 = vshrl.u32 %v1028, 7
      %v1030 = vsub.s32 0, %v1029
      %v1031 = vrot.slane %v968, %v1030
      %v1032 = vmul.f32 %v1014, %v1031
      %v1033 = vmul.f32 %v1015, %v1031
      %v1034 = vadd.f32 %v1009, %v1032
      %v1035 = vadd.f32 %v1010, %v1033
      %s1036 = sadd.s32 %s226, 12
      %s1037 = smul.u32 %s1036, 16
      %s1038 = scalar_lea.vmem %s203, %s1037
      %v1039 = vld [vmem:[%s1038] sm:$0xff]
      %v1040 = vld [vmem:[%s1038 + $0x8] sm:$0x1f]
      %v1041 = vmul.f32 %v1039, %v974
      %v1042 = vmul.f32 %v1040, %v974
      %v1043 = vadd.f32 %v1041, 0.0
      %v1044 = vadd.f32 %v1042, 0.0
      %v1045 = vmul.f32 %v1039, %v988
      %v1046 = vmul.f32 %v1040, %v988
      %v1047 = vadd.f32 %v1018, %v1045
      %v1048 = vadd.f32 %v1019, %v1046
      %v1049 = vmul.f32 %v1039, %v1006
      %v1050 = vmul.f32 %v1040, %v1006
      %v1051 = vadd.f32 %v1022, %v1049
      %v1052 = vadd.f32 %v1023, %v1050
      %v1053 = vmul.f32 %v1039, %v1031
      %v1054 = vmul.f32 %v1040, %v1031
      %v1055 = vadd.f32 %v1026, %v1053
      %v1056 = vadd.f32 %v1027, %v1054
      %s1057 = sadd.s32 %s226, 13
      %s1058 = smul.u32 %s1057, 16
      %s1059 = scalar_lea.vmem %s203, %s1058
      %v1060 = vld [vmem:[%s1059] sm:$0xff]
      %v1061 = vld [vmem:[%s1059 + $0x8] sm:$0x1f]
      %v1062 = vmul.f32 %v1060, %v974
      %v1063 = vmul.f32 %v1061, %v974
      %v1064 = vadd.f32 %v1062, 0.0
      %v1065 = vadd.f32 %v1063, 0.0
      %v1066 = vmul.f32 %v1060, %v988
      %v1067 = vmul.f32 %v1061, %v988
      %v1068 = vadd.f32 %v1043, %v1066
      %v1069 = vadd.f32 %v1044, %v1067
      %v1070 = vmul.f32 %v1060, %v1006
      %v1071 = vmul.f32 %v1061, %v1006
      %v1072 = vadd.f32 %v1047, %v1070
      %v1073 = vadd.f32 %v1048, %v1071
      %v1074 = vmul.f32 %v1060, %v1031
      %v1075 = vmul.f32 %v1061, %v1031
      %v1076 = vadd.f32 %v1051, %v1074
      %v1077 = vadd.f32 %v1052, %v1075
      %s1078 = sadd.s32 %s226, 14
      %s1079 = smul.u32 %s1078, 16
      %s1080 = scalar_lea.vmem %s203, %s1079
      %v1081 = vld [vmem:[%s1080] sm:$0xff]
      %v1082 = vld [vmem:[%s1080 + $0x8] sm:$0x1f]
      %v1083 = vmul.f32 %v1081, %v974
      %v1084 = vmul.f32 %v1082, %v974
      %v1085 = vadd.f32 %v1083, 0.0
      %v1086 = vadd.f32 %v1084, 0.0
      %v1087 = vmul.f32 %v1081, %v988
      %v1088 = vmul.f32 %v1082, %v988
      %v1089 = vadd.f32 %v1064, %v1087
      %v1090 = vadd.f32 %v1065, %v1088
      %v1091 = vmul.f32 %v1081, %v1006
      %v1092 = vmul.f32 %v1082, %v1006
      %v1093 = vadd.f32 %v1068, %v1091
      %v1094 = vadd.f32 %v1069, %v1092
      %v1095 = vmul.f32 %v1081, %v1031
      %v1096 = vmul.f32 %v1082, %v1031
      %v1097 = vadd.f32 %v1072, %v1095
      %v1098 = vadd.f32 %v1073, %v1096
      %s1099 = sadd.s32 %s226, 15
      %s1100 = smul.u32 %s1099, 16
      %s1101 = scalar_lea.vmem %s203, %s1100
      %v1102 = vld [vmem:[%s1101] sm:$0xff]
      %v1103 = vld [vmem:[%s1101 + $0x8] sm:$0x1f]
      %v1104 = vmul.f32 %v1102, %v974
      %v1105 = vmul.f32 %v1103, %v974
      %v1106 = vadd.f32 %v1104, 0.0
      %v1107 = vadd.f32 %v1105, 0.0
      %v1108 = vmul.f32 %v1102, %v988
      %v1109 = vmul.f32 %v1103, %v988
      %v1110 = vadd.f32 %v1085, %v1108
      %v1111 = vadd.f32 %v1086, %v1109
      %v1112 = vmul.f32 %v1102, %v1006
      %v1113 = vmul.f32 %v1103, %v1006
      %v1114 = vadd.f32 %v1089, %v1112
      %v1115 = vadd.f32 %v1090, %v1113
      %v1116 = vmul.f32 %v1102, %v1031
      %v1117 = vmul.f32 %v1103, %v1031
      %v1118 = vadd.f32 %v1093, %v1116
      %v1119 = vadd.f32 %v1094, %v1117
      %s1120 = sadd.s32 %s226, 16
      %s1121 = smul.u32 %s1120, 16
      %s1122 = scalar_lea.vmem %s203, %s1121
      %v1123 = vld [vmem:[%s1122] sm:$0xff]
      %v1124 = vld [vmem:[%s1122 + $0x8] sm:$0x1f]
      %v1125 = vmul.f32 %v1123, %v988
      %v1126 = vmul.f32 %v1124, %v988
      %v1127 = vadd.f32 %v1106, %v1125
      %v1128 = vadd.f32 %v1107, %v1126
      %v1129 = vmul.f32 %v1123, %v1006
      %v1130 = vmul.f32 %v1124, %v1006
      %v1131 = vadd.f32 %v1110, %v1129
      %v1132 = vadd.f32 %v1111, %v1130
      %v1133 = vmul.f32 %v1123, %v1031
      %v1134 = vmul.f32 %v1124, %v1031
      %v1135 = vadd.f32 %v1114, %v1133
      %v1136 = vadd.f32 %v1115, %v1134
      %s1137 = sadd.s32 %s226, 17
      %s1138 = smul.u32 %s1137, 16
      %s1139 = scalar_lea.vmem %s203, %s1138
      %v1140 = vld [vmem:[%s1139] sm:$0xff]
      %v1141 = vld [vmem:[%s1139 + $0x8] sm:$0x1f]
      %v1142 = vmul.f32 %v1140, %v1006
      %v1143 = vmul.f32 %v1141, %v1006
      %v1144 = vadd.f32 %v1127, %v1142
      %v1145 = vadd.f32 %v1128, %v1143
      %v1146 = vmul.f32 %v1140, %v1031
      %v1147 = vmul.f32 %v1141, %v1031
      %v1148 = vadd.f32 %v1131, %v1146
      %v1149 = vadd.f32 %v1132, %v1147
      %s1150 = sadd.s32 %s226, 18
      %s1151 = smul.u32 %s1150, 16
      %s1152 = scalar_lea.vmem %s203, %s1151
      %v1153 = vld [vmem:[%s1152] sm:$0xff]
      %v1154 = vld [vmem:[%s1152 + $0x8] sm:$0x1f]
      %v1155 = vmul.f32 %v1153, %v1031
      %v1156 = vmul.f32 %v1154, %v1031
      %v1157 = vadd.f32 %v1144, %v1155
      %v1158 = vadd.f32 %v1145, %v1156
      %v1159 = vld [vmem:[%s211 + $0x1] sm:$0x1]
      %v1160 = vld [vmem:[%s228 + $0x1] sm:$0x1]
      %v1161 = vld [vmem:[%s230 + $0x1] sm:$0x1]
      %v1162 = vld [vmem:[%s232 + $0x1] sm:$0x1]
      %v1163 = vld [vmem:[%s395 + $0x1] sm:$0xff]
      %v1164 = vld [vmem:[%s395 + $0x9] sm:$0x1f]
      %v1165 = vlaneseq
      %v1166 = vshrl.u32 %v1165, 7
      %v1167 = vsub.s32 0, %v1166
      %v1168 = vrot.slane %v1159, %v1167
      %v1169 = vmul.f32 %v1163, %v1168
      %v1170 = vmul.f32 %v1164, %v1168
      %v1171 = vadd.f32 %v1034, %v1169
      %v1172 = vadd.f32 %v1035, %v1170
      %v1173 = vld [vmem:[%s412 + $0x1] sm:$0xff]
      %v1174 = vld [vmem:[%s412 + $0x9] sm:$0x1f]
      %v1175 = vmul.f32 %v1173, %v1168
      %v1176 = vmul.f32 %v1174, %v1168
      %v1177 = vadd.f32 %v1055, %v1175
      %v1178 = vadd.f32 %v1056, %v1176
      %v1179 = vlaneseq
      %v1180 = vshrl.u32 %v1179, 7
      %v1181 = vsub.s32 0, %v1180
      %v1182 = vrot.slane %v1160, %v1181
      %v1183 = vmul.f32 %v1173, %v1182
      %v1184 = vmul.f32 %v1174, %v1182
      %v1185 = vadd.f32 %v1171, %v1183
      %v1186 = vadd.f32 %v1172, %v1184
      %v1187 = vld [vmem:[%s425 + $0x1] sm:$0xff]
      %v1188 = vld [vmem:[%s425 + $0x9] sm:$0x1f]
      %v1189 = vmul.f32 %v1187, %v1168
      %v1190 = vmul.f32 %v1188, %v1168
      %v1191 = vadd.f32 %v1076, %v1189
      %v1192 = vadd.f32 %v1077, %v1190
      %v1193 = vmul.f32 %v1187, %v1182
      %v1194 = vmul.f32 %v1188, %v1182
      %v1195 = vadd.f32 %v1177, %v1193
      %v1196 = vadd.f32 %v1178, %v1194
      %v1197 = vlaneseq
      %v1198 = vshrl.u32 %v1197, 7
      %v1199 = vsub.s32 0, %v1198
      %v1200 = vrot.slane %v1161, %v1199
      %v1201 = vmul.f32 %v1187, %v1200
      %v1202 = vmul.f32 %v1188, %v1200
      %v1203 = vadd.f32 %v1185, %v1201
      %v1204 = vadd.f32 %v1186, %v1202
      %v1205 = vld [vmem:[%s1013 + $0x1] sm:$0xff]
      %v1206 = vld [vmem:[%s1013 + $0x9] sm:$0x1f]
      %v1207 = vmul.f32 %v1205, %v1168
      %v1208 = vmul.f32 %v1206, %v1168
      %v1209 = vadd.f32 %v1097, %v1207
      %v1210 = vadd.f32 %v1098, %v1208
      %v1211 = vmul.f32 %v1205, %v1182
      %v1212 = vmul.f32 %v1206, %v1182
      %v1213 = vadd.f32 %v1191, %v1211
      %v1214 = vadd.f32 %v1192, %v1212
      %v1215 = vmul.f32 %v1205, %v1200
      %v1216 = vmul.f32 %v1206, %v1200
      %v1217 = vadd.f32 %v1195, %v1215
      %v1218 = vadd.f32 %v1196, %v1216
      %v1219 = vlaneseq
      %v1220 = vshrl.u32 %v1219, 7
      %v1221 = vsub.s32 0, %v1220
      %v1222 = vrot.slane %v1162, %v1221
      %v1223 = vmul.f32 %v1205, %v1222
      %v1224 = vmul.f32 %v1206, %v1222
      %v1225 = vadd.f32 %v1203, %v1223
      %v1226 = vadd.f32 %v1204, %v1224
      %v1227 = vld [vmem:[%s1038 + $0x1] sm:$0xff]
      %v1228 = vld [vmem:[%s1038 + $0x9] sm:$0x1f]
      %v1229 = vmul.f32 %v1227, %v1168
      %v1230 = vmul.f32 %v1228, %v1168
      %v1231 = vadd.f32 %v1118, %v1229
      %v1232 = vadd.f32 %v1119, %v1230
      %v1233 = vmul.f32 %v1227, %v1182
      %v1234 = vmul.f32 %v1228, %v1182
      %v1235 = vadd.f32 %v1209, %v1233
      %v1236 = vadd.f32 %v1210, %v1234
      %v1237 = vmul.f32 %v1227, %v1200
      %v1238 = vmul.f32 %v1228, %v1200
      %v1239 = vadd.f32 %v1213, %v1237
      %v1240 = vadd.f32 %v1214, %v1238
      %v1241 = vmul.f32 %v1227, %v1222
      %v1242 = vmul.f32 %v1228, %v1222
      %v1243 = vadd.f32 %v1217, %v1241
      %v1244 = vadd.f32 %v1218, %v1242
      %v1245 = vld [vmem:[%s1059 + $0x1] sm:$0xff]
      %v1246 = vld [vmem:[%s1059 + $0x9] sm:$0x1f]
      %v1247 = vmul.f32 %v1245, %v1168
      %v1248 = vmul.f32 %v1246, %v1168
      %v1249 = vadd.f32 %v1135, %v1247
      %v1250 = vadd.f32 %v1136, %v1248
      %v1251 = vmul.f32 %v1245, %v1182
      %v1252 = vmul.f32 %v1246, %v1182
      %v1253 = vadd.f32 %v1231, %v1251
      %v1254 = vadd.f32 %v1232, %v1252
      %v1255 = vmul.f32 %v1245, %v1200
      %v1256 = vmul.f32 %v1246, %v1200
      %v1257 = vadd.f32 %v1235, %v1255
      %v1258 = vadd.f32 %v1236, %v1256
      %v1259 = vmul.f32 %v1245, %v1222
      %v1260 = vmul.f32 %v1246, %v1222
      %v1261 = vadd.f32 %v1239, %v1259
      %v1262 = vadd.f32 %v1240, %v1260
      %v1263 = vld [vmem:[%s1080 + $0x1] sm:$0xff]
      %v1264 = vld [vmem:[%s1080 + $0x9] sm:$0x1f]
      %v1265 = vmul.f32 %v1263, %v1168
      %v1266 = vmul.f32 %v1264, %v1168
      %v1267 = vadd.f32 %v1148, %v1265
      %v1268 = vadd.f32 %v1149, %v1266
      %v1269 = vmul.f32 %v1263, %v1182
      %v1270 = vmul.f32 %v1264, %v1182
      %v1271 = vadd.f32 %v1249, %v1269
      %v1272 = vadd.f32 %v1250, %v1270
      %v1273 = vmul.f32 %v1263, %v1200
      %v1274 = vmul.f32 %v1264, %v1200
      %v1275 = vadd.f32 %v1253, %v1273
      %v1276 = vadd.f32 %v1254, %v1274
      %v1277 = vmul.f32 %v1263, %v1222
      %v1278 = vmul.f32 %v1264, %v1222
      %v1279 = vadd.f32 %v1257, %v1277
      %v1280 = vadd.f32 %v1258, %v1278
      %v1281 = vld [vmem:[%s1101 + $0x1] sm:$0xff]
      %v1282 = vld [vmem:[%s1101 + $0x9] sm:$0x1f]
      %v1283 = vmul.f32 %v1281, %v1168
      %v1284 = vmul.f32 %v1282, %v1168
      %v1285 = vadd.f32 %v1157, %v1283
      %v1286 = vadd.f32 %v1158, %v1284
      %v1287 = vmul.f32 %v1281, %v1182
      %v1288 = vmul.f32 %v1282, %v1182
      %v1289 = vadd.f32 %v1267, %v1287
      %v1290 = vadd.f32 %v1268, %v1288
      %v1291 = vmul.f32 %v1281, %v1200
      %v1292 = vmul.f32 %v1282, %v1200
      %v1293 = vadd.f32 %v1271, %v1291
      %v1294 = vadd.f32 %v1272, %v1292
      %v1295 = vmul.f32 %v1281, %v1222
      %v1296 = vmul.f32 %v1282, %v1222
      %v1297 = vadd.f32 %v1275, %v1295
      %v1298 = vadd.f32 %v1276, %v1296
      %v1299 = vld [vmem:[%s1122 + $0x1] sm:$0xff]
      %v1300 = vld [vmem:[%s1122 + $0x9] sm:$0x1f]
      %v1301 = vmul.f32 %v1299, %v1182
      %v1302 = vmul.f32 %v1300, %v1182
      %v1303 = vadd.f32 %v1285, %v1301
      %v1304 = vadd.f32 %v1286, %v1302
      %v1305 = vmul.f32 %v1299, %v1200
      %v1306 = vmul.f32 %v1300, %v1200
      %v1307 = vadd.f32 %v1289, %v1305
      %v1308 = vadd.f32 %v1290, %v1306
      %v1309 = vmul.f32 %v1299, %v1222
      %v1310 = vmul.f32 %v1300, %v1222
      %v1311 = vadd.f32 %v1293, %v1309
      %v1312 = vadd.f32 %v1294, %v1310
      %v1313 = vld [vmem:[%s1139 + $0x1] sm:$0xff]
      %v1314 = vld [vmem:[%s1139 + $0x9] sm:$0x1f]
      %v1315 = vmul.f32 %v1313, %v1200
      %v1316 = vmul.f32 %v1314, %v1200
      %v1317 = vadd.f32 %v1303, %v1315
      %v1318 = vadd.f32 %v1304, %v1316
      %v1319 = vmul.f32 %v1313, %v1222
      %v1320 = vmul.f32 %v1314, %v1222
      %v1321 = vadd.f32 %v1307, %v1319
      %v1322 = vadd.f32 %v1308, %v1320
      %v1323 = vld [vmem:[%s1152 + $0x1] sm:$0xff]
      %v1324 = vld [vmem:[%s1152 + $0x9] sm:$0x1f]
      %v1325 = vmul.f32 %v1323, %v1222
      %v1326 = vmul.f32 %v1324, %v1222
      %v1327 = vadd.f32 %v1317, %v1325
      %v1328 = vadd.f32 %v1318, %v1326
      %v1329 = vld [vmem:[%s211 + $0x2] sm:$0x1]
      %v1330 = vld [vmem:[%s228 + $0x2] sm:$0x1]
      %v1331 = vld [vmem:[%s230 + $0x2] sm:$0x1]
      %v1332 = vld [vmem:[%s232 + $0x2] sm:$0x1]
      %v1333 = vld [vmem:[%s395 + $0x2] sm:$0xff]
      %v1334 = vld [vmem:[%s395 + $0xa] sm:$0x1f]
      %v1335 = vlaneseq
      %v1336 = vshrl.u32 %v1335, 7
      %v1337 = vsub.s32 0, %v1336
      %v1338 = vrot.slane %v1329, %v1337
      %v1339 = vmul.f32 %v1333, %v1338
      %v1340 = vmul.f32 %v1334, %v1338
      %v1341 = vadd.f32 %v1225, %v1339
      %v1342 = vadd.f32 %v1226, %v1340
      %v1343 = vld [vmem:[%s412 + $0x2] sm:$0xff]
      %v1344 = vld [vmem:[%s412 + $0xa] sm:$0x1f]
      %v1345 = vmul.f32 %v1343, %v1338
      %v1346 = vmul.f32 %v1344, %v1338
      %v1347 = vadd.f32 %v1243, %v1345
      %v1348 = vadd.f32 %v1244, %v1346
      %v1349 = vlaneseq
      %v1350 = vshrl.u32 %v1349, 7
      %v1351 = vsub.s32 0, %v1350
      %v1352 = vrot.slane %v1330, %v1351
      %v1353 = vmul.f32 %v1343, %v1352
      %v1354 = vmul.f32 %v1344, %v1352
      %v1355 = vadd.f32 %v1341, %v1353
      %v1356 = vadd.f32 %v1342, %v1354
      %v1357 = vld [vmem:[%s425 + $0x2] sm:$0xff]
      %v1358 = vld [vmem:[%s425 + $0xa] sm:$0x1f]
      %v1359 = vmul.f32 %v1357, %v1338
      %v1360 = vmul.f32 %v1358, %v1338
      %v1361 = vadd.f32 %v1261, %v1359
      %v1362 = vadd.f32 %v1262, %v1360
      %v1363 = vmul.f32 %v1357, %v1352
      %v1364 = vmul.f32 %v1358, %v1352
      %v1365 = vadd.f32 %v1347, %v1363
      %v1366 = vadd.f32 %v1348, %v1364
      %v1367 = vlaneseq
      %v1368 = vshrl.u32 %v1367, 7
      %v1369 = vsub.s32 0, %v1368
      %v1370 = vrot.slane %v1331, %v1369
      %v1371 = vmul.f32 %v1357, %v1370
      %v1372 = vmul.f32 %v1358, %v1370
      %v1373 = vadd.f32 %v1355, %v1371
      %v1374 = vadd.f32 %v1356, %v1372
      %v1375 = vld [vmem:[%s1013 + $0x2] sm:$0xff]
      %v1376 = vld [vmem:[%s1013 + $0xa] sm:$0x1f]
      %v1377 = vmul.f32 %v1375, %v1338
      %v1378 = vmul.f32 %v1376, %v1338
      %v1379 = vadd.f32 %v1279, %v1377
      %v1380 = vadd.f32 %v1280, %v1378
      %v1381 = vmul.f32 %v1375, %v1352
      %v1382 = vmul.f32 %v1376, %v1352
      %v1383 = vadd.f32 %v1361, %v1381
      %v1384 = vadd.f32 %v1362, %v1382
      %v1385 = vmul.f32 %v1375, %v1370
      %v1386 = vmul.f32 %v1376, %v1370
      %v1387 = vadd.f32 %v1365, %v1385
      %v1388 = vadd.f32 %v1366, %v1386
      %v1389 = vlaneseq
      %v1390 = vshrl.u32 %v1389, 7
      %v1391 = vsub.s32 0, %v1390
      %v1392 = vrot.slane %v1332, %v1391
      %v1393 = vmul.f32 %v1375, %v1392
      %v1394 = vmul.f32 %v1376, %v1392
      %v1395 = vadd.f32 %v1373, %v1393
      %v1396 = vadd.f32 %v1374, %v1394
      %v1397 = vld [vmem:[%s1038 + $0x2] sm:$0xff]
      %v1398 = vld [vmem:[%s1038 + $0xa] sm:$0x1f]
      %v1399 = vmul.f32 %v1397, %v1338
      %v1400 = vmul.f32 %v1398, %v1338
      %v1401 = vadd.f32 %v1297, %v1399
      %v1402 = vadd.f32 %v1298, %v1400
      %v1403 = vmul.f32 %v1397, %v1352
      %v1404 = vmul.f32 %v1398, %v1352
      %v1405 = vadd.f32 %v1379, %v1403
      %v1406 = vadd.f32 %v1380, %v1404
      %v1407 = vmul.f32 %v1397, %v1370
      %v1408 = vmul.f32 %v1398, %v1370
      %v1409 = vadd.f32 %v1383, %v1407
      %v1410 = vadd.f32 %v1384, %v1408
      %v1411 = vmul.f32 %v1397, %v1392
      %v1412 = vmul.f32 %v1398, %v1392
      %v1413 = vadd.f32 %v1387, %v1411
      %v1414 = vadd.f32 %v1388, %v1412
      %v1415 = vld [vmem:[%s1059 + $0x2] sm:$0xff]
      %v1416 = vld [vmem:[%s1059 + $0xa] sm:$0x1f]
      %v1417 = vmul.f32 %v1415, %v1338
      %v1418 = vmul.f32 %v1416, %v1338
      %v1419 = vadd.f32 %v1311, %v1417
      %v1420 = vadd.f32 %v1312, %v1418
      %v1421 = vmul.f32 %v1415, %v1352
      %v1422 = vmul.f32 %v1416, %v1352
      %v1423 = vadd.f32 %v1401, %v1421
      %v1424 = vadd.f32 %v1402, %v1422
      %v1425 = vmul.f32 %v1415, %v1370
      %v1426 = vmul.f32 %v1416, %v1370
      %v1427 = vadd.f32 %v1405, %v1425
      %v1428 = vadd.f32 %v1406, %v1426
      %v1429 = vmul.f32 %v1415, %v1392
      %v1430 = vmul.f32 %v1416, %v1392
      %v1431 = vadd.f32 %v1409, %v1429
      %v1432 = vadd.f32 %v1410, %v1430
      %v1433 = vld [vmem:[%s1080 + $0x2] sm:$0xff]
      %v1434 = vld [vmem:[%s1080 + $0xa] sm:$0x1f]
      %v1435 = vmul.f32 %v1433, %v1338
      %v1436 = vmul.f32 %v1434, %v1338
      %v1437 = vadd.f32 %v1321, %v1435
      %v1438 = vadd.f32 %v1322, %v1436
      %v1439 = vmul.f32 %v1433, %v1352
      %v1440 = vmul.f32 %v1434, %v1352
      %v1441 = vadd.f32 %v1419, %v1439
      %v1442 = vadd.f32 %v1420, %v1440
      %v1443 = vmul.f32 %v1433, %v1370
      %v1444 = vmul.f32 %v1434, %v1370
      %v1445 = vadd.f32 %v1423, %v1443
      %v1446 = vadd.f32 %v1424, %v1444
      %v1447 = vmul.f32 %v1433, %v1392
      %v1448 = vmul.f32 %v1434, %v1392
      %v1449 = vadd.f32 %v1427, %v1447
      %v1450 = vadd.f32 %v1428, %v1448
      %v1451 = vld [vmem:[%s1101 + $0x2] sm:$0xff]
      %v1452 = vld [vmem:[%s1101 + $0xa] sm:$0x1f]
      %v1453 = vmul.f32 %v1451, %v1338
      %v1454 = vmul.f32 %v1452, %v1338
      %v1455 = vadd.f32 %v1327, %v1453
      %v1456 = vadd.f32 %v1328, %v1454
      %v1457 = vmul.f32 %v1451, %v1352
      %v1458 = vmul.f32 %v1452, %v1352
      %v1459 = vadd.f32 %v1437, %v1457
      %v1460 = vadd.f32 %v1438, %v1458
      %v1461 = vmul.f32 %v1451, %v1370
      %v1462 = vmul.f32 %v1452, %v1370
      %v1463 = vadd.f32 %v1441, %v1461
      %v1464 = vadd.f32 %v1442, %v1462
      %v1465 = vmul.f32 %v1451, %v1392
      %v1466 = vmul.f32 %v1452, %v1392
      %v1467 = vadd.f32 %v1445, %v1465
      %v1468 = vadd.f32 %v1446, %v1466
      %v1469 = vld [vmem:[%s1122 + $0x2] sm:$0xff]
      %v1470 = vld [vmem:[%s1122 + $0xa] sm:$0x1f]
      %v1471 = vmul.f32 %v1469, %v1352
      %v1472 = vmul.f32 %v1470, %v1352
      %v1473 = vadd.f32 %v1455, %v1471
      %v1474 = vadd.f32 %v1456, %v1472
      %v1475 = vmul.f32 %v1469, %v1370
      %v1476 = vmul.f32 %v1470, %v1370
      %v1477 = vadd.f32 %v1459, %v1475
      %v1478 = vadd.f32 %v1460, %v1476
      %v1479 = vmul.f32 %v1469, %v1392
      %v1480 = vmul.f32 %v1470, %v1392
      %v1481 = vadd.f32 %v1463, %v1479
      %v1482 = vadd.f32 %v1464, %v1480
      %v1483 = vld [vmem:[%s1139 + $0x2] sm:$0xff]
      %v1484 = vld [vmem:[%s1139 + $0xa] sm:$0x1f]
      %v1485 = vmul.f32 %v1483, %v1370
      %v1486 = vmul.f32 %v1484, %v1370
      %v1487 = vadd.f32 %v1473, %v1485
      %v1488 = vadd.f32 %v1474, %v1486
      %v1489 = vmul.f32 %v1483, %v1392
      %v1490 = vmul.f32 %v1484, %v1392
      %v1491 = vadd.f32 %v1477, %v1489
      %v1492 = vadd.f32 %v1478, %v1490
      %v1493 = vld [vmem:[%s1152 + $0x2] sm:$0xff]
      %v1494 = vld [vmem:[%s1152 + $0xa] sm:$0x1f]
      %v1495 = vmul.f32 %v1493, %v1392
      %v1496 = vmul.f32 %v1494, %v1392
      %v1497 = vadd.f32 %v1487, %v1495
      %v1498 = vadd.f32 %v1488, %v1496
      %v1499 = vld [vmem:[%s211 + $0x3] sm:$0x1]
      %v1500 = vld [vmem:[%s228 + $0x3] sm:$0x1]
      %v1501 = vld [vmem:[%s230 + $0x3] sm:$0x1]
      %v1502 = vld [vmem:[%s232 + $0x3] sm:$0x1]
      %v1503 = vld [vmem:[%s395 + $0x3] sm:$0xff]
      %v1504 = vld [vmem:[%s395 + $0xb] sm:$0x1f]
      %v1505 = vlaneseq
      %v1506 = vshrl.u32 %v1505, 7
      %v1507 = vsub.s32 0, %v1506
      %v1508 = vrot.slane %v1499, %v1507
      %v1509 = vmul.f32 %v1503, %v1508
      %v1510 = vmul.f32 %v1504, %v1508
      %v1511 = vadd.f32 %v1395, %v1509
      %v1512 = vadd.f32 %v1396, %v1510
      %v1513 = vld [vmem:[%s412 + $0x3] sm:$0xff]
      %v1514 = vld [vmem:[%s412 + $0xb] sm:$0x1f]
      %v1515 = vmul.f32 %v1513, %v1508
      %v1516 = vmul.f32 %v1514, %v1508
      %v1517 = vadd.f32 %v1413, %v1515
      %v1518 = vadd.f32 %v1414, %v1516
      %v1519 = vlaneseq
      %v1520 = vshrl.u32 %v1519, 7
      %v1521 = vsub.s32 0, %v1520
      %v1522 = vrot.slane %v1500, %v1521
      %v1523 = vmul.f32 %v1513, %v1522
      %v1524 = vmul.f32 %v1514, %v1522
      %v1525 = vadd.f32 %v1511, %v1523
      %v1526 = vadd.f32 %v1512, %v1524
      %v1527 = vld [vmem:[%s425 + $0x3] sm:$0xff]
      %v1528 = vld [vmem:[%s425 + $0xb] sm:$0x1f]
      %v1529 = vmul.f32 %v1527, %v1508
      %v1530 = vmul.f32 %v1528, %v1508
      %v1531 = vadd.f32 %v1431, %v1529
      %v1532 = vadd.f32 %v1432, %v1530
      %v1533 = vmul.f32 %v1527, %v1522
      %v1534 = vmul.f32 %v1528, %v1522
      %v1535 = vadd.f32 %v1517, %v1533
      %v1536 = vadd.f32 %v1518, %v1534
      %v1537 = vlaneseq
      %v1538 = vshrl.u32 %v1537, 7
      %v1539 = vsub.s32 0, %v1538
      %v1540 = vrot.slane %v1501, %v1539
      %v1541 = vmul.f32 %v1527, %v1540
      %v1542 = vmul.f32 %v1528, %v1540
      %v1543 = vadd.f32 %v1525, %v1541
      %v1544 = vadd.f32 %v1526, %v1542
      %v1545 = vld [vmem:[%s1013 + $0x3] sm:$0xff]
      %v1546 = vld [vmem:[%s1013 + $0xb] sm:$0x1f]
      %v1547 = vmul.f32 %v1545, %v1508
      %v1548 = vmul.f32 %v1546, %v1508
      %v1549 = vadd.f32 %v1449, %v1547
      %v1550 = vadd.f32 %v1450, %v1548
      %v1551 = vmul.f32 %v1545, %v1522
      %v1552 = vmul.f32 %v1546, %v1522
      %v1553 = vadd.f32 %v1531, %v1551
      %v1554 = vadd.f32 %v1532, %v1552
      %v1555 = vmul.f32 %v1545, %v1540
      %v1556 = vmul.f32 %v1546, %v1540
      %v1557 = vadd.f32 %v1535, %v1555
      %v1558 = vadd.f32 %v1536, %v1556
      %v1559 = vlaneseq
      %v1560 = vshrl.u32 %v1559, 7
      %v1561 = vsub.s32 0, %v1560
      %v1562 = vrot.slane %v1502, %v1561
      %v1563 = vmul.f32 %v1545, %v1562
      %v1564 = vmul.f32 %v1546, %v1562
      %v1565 = vadd.f32 %v1543, %v1563
      %v1566 = vadd.f32 %v1544, %v1564
      %v1567 = vld [vmem:[%s1038 + $0x3] sm:$0xff]
      %v1568 = vld [vmem:[%s1038 + $0xb] sm:$0x1f]
      %v1569 = vmul.f32 %v1567, %v1508
      %v1570 = vmul.f32 %v1568, %v1508
      %v1571 = vadd.f32 %v1467, %v1569
      %v1572 = vadd.f32 %v1468, %v1570
      %v1573 = vmul.f32 %v1567, %v1522
      %v1574 = vmul.f32 %v1568, %v1522
      %v1575 = vadd.f32 %v1549, %v1573
      %v1576 = vadd.f32 %v1550, %v1574
      %v1577 = vmul.f32 %v1567, %v1540
      %v1578 = vmul.f32 %v1568, %v1540
      %v1579 = vadd.f32 %v1553, %v1577
      %v1580 = vadd.f32 %v1554, %v1578
      %v1581 = vmul.f32 %v1567, %v1562
      %v1582 = vmul.f32 %v1568, %v1562
      %v1583 = vadd.f32 %v1557, %v1581
      %v1584 = vadd.f32 %v1558, %v1582
      %v1585 = vld [vmem:[%s1059 + $0x3] sm:$0xff]
      %v1586 = vld [vmem:[%s1059 + $0xb] sm:$0x1f]
      %v1587 = vmul.f32 %v1585, %v1508
      %v1588 = vmul.f32 %v1586, %v1508
      %v1589 = vadd.f32 %v1481, %v1587
      %v1590 = vadd.f32 %v1482, %v1588
      %v1591 = vmul.f32 %v1585, %v1522
      %v1592 = vmul.f32 %v1586, %v1522
      %v1593 = vadd.f32 %v1571, %v1591
      %v1594 = vadd.f32 %v1572, %v1592
      %v1595 = vmul.f32 %v1585, %v1540
      %v1596 = vmul.f32 %v1586, %v1540
      %v1597 = vadd.f32 %v1575, %v1595
      %v1598 = vadd.f32 %v1576, %v1596
      %v1599 = vmul.f32 %v1585, %v1562
      %v1600 = vmul.f32 %v1586, %v1562
      %v1601 = vadd.f32 %v1579, %v1599
      %v1602 = vadd.f32 %v1580, %v1600
      %v1603 = vld [vmem:[%s1080 + $0x3] sm:$0xff]
      %v1604 = vld [vmem:[%s1080 + $0xb] sm:$0x1f]
      %v1605 = vmul.f32 %v1603, %v1508
      %v1606 = vmul.f32 %v1604, %v1508
      %v1607 = vadd.f32 %v1491, %v1605
      %v1608 = vadd.f32 %v1492, %v1606
      %v1609 = vmul.f32 %v1603, %v1522
      %v1610 = vmul.f32 %v1604, %v1522
      %v1611 = vadd.f32 %v1589, %v1609
      %v1612 = vadd.f32 %v1590, %v1610
      %v1613 = vmul.f32 %v1603, %v1540
      %v1614 = vmul.f32 %v1604, %v1540
      %v1615 = vadd.f32 %v1593, %v1613
      %v1616 = vadd.f32 %v1594, %v1614
      %v1617 = vmul.f32 %v1603, %v1562
      %v1618 = vmul.f32 %v1604, %v1562
      %v1619 = vadd.f32 %v1597, %v1617
      %v1620 = vadd.f32 %v1598, %v1618
      %v1621 = vld [vmem:[%s1101 + $0x3] sm:$0xff]
      %v1622 = vld [vmem:[%s1101 + $0xb] sm:$0x1f]
      %v1623 = vmul.f32 %v1621, %v1508
      %v1624 = vmul.f32 %v1622, %v1508
      %v1625 = vadd.f32 %v1497, %v1623
      %v1626 = vadd.f32 %v1498, %v1624
      %v1627 = vmul.f32 %v1621, %v1522
      %v1628 = vmul.f32 %v1622, %v1522
      %v1629 = vadd.f32 %v1607, %v1627
      %v1630 = vadd.f32 %v1608, %v1628
      %v1631 = vmul.f32 %v1621, %v1540
      %v1632 = vmul.f32 %v1622, %v1540
      %v1633 = vadd.f32 %v1611, %v1631
      %v1634 = vadd.f32 %v1612, %v1632
      %v1635 = vmul.f32 %v1621, %v1562
      %v1636 = vmul.f32 %v1622, %v1562
      %v1637 = vadd.f32 %v1615, %v1635
      %v1638 = vadd.f32 %v1616, %v1636
      %v1639 = vld [vmem:[%s1122 + $0x3] sm:$0xff]
      %v1640 = vld [vmem:[%s1122 + $0xb] sm:$0x1f]
      %v1641 = vmul.f32 %v1639, %v1522
      %v1642 = vmul.f32 %v1640, %v1522
      %v1643 = vadd.f32 %v1625, %v1641
      %v1644 = vadd.f32 %v1626, %v1642
      %v1645 = vmul.f32 %v1639, %v1540
      %v1646 = vmul.f32 %v1640, %v1540
      %v1647 = vadd.f32 %v1629, %v1645
      %v1648 = vadd.f32 %v1630, %v1646
      %v1649 = vmul.f32 %v1639, %v1562
      %v1650 = vmul.f32 %v1640, %v1562
      %v1651 = vadd.f32 %v1633, %v1649
      %v1652 = vadd.f32 %v1634, %v1650
      %v1653 = vld [vmem:[%s1139 + $0x3] sm:$0xff]
      %v1654 = vld [vmem:[%s1139 + $0xb] sm:$0x1f]
      %v1655 = vmul.f32 %v1653, %v1540
      %v1656 = vmul.f32 %v1654, %v1540
      %v1657 = vadd.f32 %v1643, %v1655
      %v1658 = vadd.f32 %v1644, %v1656
      %v1659 = vmul.f32 %v1653, %v1562
      %v1660 = vmul.f32 %v1654, %v1562
      %v1661 = vadd.f32 %v1647, %v1659
      %v1662 = vadd.f32 %v1648, %v1660
      %v1663 = vld [vmem:[%s1152 + $0x3] sm:$0xff]
      %v1664 = vld [vmem:[%s1152 + $0xb] sm:$0x1f]
      %v1665 = vmul.f32 %v1663, %v1562
      %v1666 = vmul.f32 %v1664, %v1562
      %v1667 = vadd.f32 %v1657, %v1665
      %v1668 = vadd.f32 %v1658, %v1666
      %s1669 = scalar_lea.vmem %s224, 128
      %1670 = vst [vmem:[%s1669] sm:$0xff] %v1565
      %1671 = vst [vmem:[%s1669 + $0x8] sm:$0x1f] %v1566
      %s1672 = scalar_lea.vmem %s224, 144
      %1673 = vst [vmem:[%s1672] sm:$0xff] %v1583
      %1674 = vst [vmem:[%s1672 + $0x8] sm:$0x1f] %v1584
      %s1675 = scalar_lea.vmem %s224, 160
      %1676 = vst [vmem:[%s1675] sm:$0xff] %v1601
      %1677 = vst [vmem:[%s1675 + $0x8] sm:$0x1f] %v1602
      %s1678 = scalar_lea.vmem %s224, 176
      %1679 = vst [vmem:[%s1678] sm:$0xff] %v1619
      %1680 = vst [vmem:[%s1678 + $0x8] sm:$0x1f] %v1620
      %s1681 = scalar_lea.vmem %s224, 192
      %1682 = vst [vmem:[%s1681] sm:$0xff] %v1637
      %1683 = vst [vmem:[%s1681 + $0x8] sm:$0x1f] %v1638
      %s1684 = scalar_lea.vmem %s224, 208
      %1685 = vst [vmem:[%s1684] sm:$0xff] %v1651
      %1686 = vst [vmem:[%s1684 + $0x8] sm:$0x1f] %v1652
      %s1687 = scalar_lea.vmem %s224, 224
      %1688 = vst [vmem:[%s1687] sm:$0xff] %v1661
      %1689 = vst [vmem:[%s1687 + $0x8] sm:$0x1f] %v1662
      %s1690 = scalar_lea.vmem %s224, 240
      %1691 = vst [vmem:[%s1690] sm:$0xff] %v1667
      %1692 = vst [vmem:[%s1690 + $0x8] sm:$0x1f] %v1668
      %s1693 = smul.u32 16, %s20
      %p1694 = scmp.lt.s32.totalorder %s18, 1
      %s1695 = scalar_select %p1694, %s18, 1
      %p1696 = scmp.lt.s32.totalorder %s1693, 15
      %s1697 = scalar_select %p1696, %s1693, 15
      %p1698 = scmp.lt.s32.totalorder %s19, 0
      %s1699 = scalar_select %p1698, %s19, 0
      %s1700 = smul.addr %s1697, 2
      %s1701 = sadd.s32 %s1699, %s1700
      %s1702 = smul.addr %s1695, 32
      %s1703 = sadd.s32 %s1701, %s1702
      %s1704 = smul.addr %s1703, 8
      %s1705 = scalar_lea.vmem %s2, %s1704
      // Predicated region
      $region29: #{ban_xcorr_depthwise_nhwc.1} parent=27 // pred_check
        %p1706 = pneg %p110
      $region30: #{ban_xcorr_depthwise_nhwc.1} parent=27 // pred_check_branch
        %1708 = sbr.rel (%p1706) target = $region32
      $region31: #{ban_xcorr_depthwise_nhwc.1} parent=27 // pred_region
        %s1709 = smul.u32 16, %s20
      $region32: #{ban_xcorr_depthwise_nhwc.1} parent=27 // pred_fallthru
        _
    $region28: #{ban_xcorr_depthwise_nhwc.1} parent=5 // pred_fallthru
      _
    %p1710 = scmp.le.s32.totalorder 2, %s8
    // Predicated region
    $region33: #{ban_xcorr_depthwise_nhwc.1} parent=5 // pred_check
      %p1711 = pneg %p1710
    $region34: #{ban_xcorr_depthwise_nhwc.1} parent=5 // pred_check_branch
      %1713 = sbr.rel (%p1711) target = $region36
    $region35: #{ban_xcorr_depthwise_nhwc.1} parent=5 // pred_region
      %s1714 = ssub.s32 %s8, 2
      // Predicated region
      $region37: #{ban_xcorr_depthwise_nhwc.1} parent=35 // pred_check
        %p1715 = pneg %p116
      $region38: #{ban_xcorr_depthwise_nhwc.1} parent=35 // pred_check_branch
        %1717 = sbr.rel (%p1715) target = $region40
      $region39: #{ban_xcorr_depthwise_nhwc.1} parent=35 // pred_region
        %s1718 = smul.u32 16, %s23
        %p1719 = scmp.lt.s32.totalorder %s21, 1
        %s1720 = scalar_select %p1719, %s21, 1
        %p1721 = scmp.lt.s32.totalorder %s1718, 15
        %s1722 = scalar_select %p1721, %s1718, 15
        %p1723 = scmp.lt.s32.totalorder %s22, 0
        %s1724 = scalar_select %p1723, %s22, 0
        %s1725 = smul.addr %s1722, 2
        %s1726 = sadd.s32 %s1724, %s1725
        %s1727 = smul.addr %s1720, 32
        %s1728 = sadd.s32 %s1726, %s1727
        %s1729 = smul.addr %s1728, 8
        %s1730 = scalar_lea.vmem %s2, %s1729
      $region40: #{ban_xcorr_depthwise_nhwc.1} parent=35 // pred_fallthru
        _
    $region36: #{ban_xcorr_depthwise_nhwc.1} parent=5 // pred_fallthru
      _
  $region6: #{ban_xcorr_depthwise_nhwc.1} parent=0 // loop_footer
    %s12 = sadd.s32 1, %s8
  $region7: #{ban_xcorr_depthwise_nhwc.1} parent=0 // loop_footer_branch
    %7 = sbr.rel target = $region3
  $region8: #{ban_xcorr_depthwise_nhwc.1} parent=0 // loop_exit
    _

</llo_original>
